<compile_context>
chip_gen: v7x
topology: tpu7x:2x2x1
jax: 0.10.0
libtpu: 0.0.40
codegen_flags: <defaults>
</compile_context>

<pallas_src>
import functools

import numpy as np
import jax
import jax.numpy as jnp
from jax import lax
from jax.experimental import pallas as pl
from jax.experimental.pallas import tpu as pltpu


# Conv hyper-parameters fixed by the module definition.
_K1, _S1 = 300, 100          # conv1: kernel 300, stride 100, no padding
_C2 = dict(k=5, s=2, p=2)    # conv2
_C3 = dict(k=4, s=2, p=2)    # conv3
_C4 = dict(k=3, s=1, p=1)    # conv1d4


# ---------------------------------------------------------------------------
# Fused Pallas kernel: conv1+relu+maxpool+conv2..4+relu+adapt+fc1..fc
# ---------------------------------------------------------------------------
def _fused_forward_kernel(xr_ref, w1_ref, b1_ref, w2_ref, b2_ref, w3_ref,
                          b3_ref, w4_ref, b4_ref, fw1_ref, fb1_ref, fw2_ref,
                          fb2_ref, fw_ref, fb_ref, out_ref,
                          *, L1, L1p, L2, L3, L4, F):
    f32 = jnp.float32

    def shift_sel(L_out, L_in, stride, offset):
        # 0/1 matrix S with S[j, q] = 1 iff q == stride*j + offset and q is in
        # range; S @ h gathers rows stride*j+offset of h and yields zero rows
        # outside (implicit zero padding).  Runs on the otherwise idle MXU.
        r = lax.broadcasted_iota(jnp.int32, (L_out, L_in), 0)
        c = lax.broadcasted_iota(jnp.int32, (L_out, L_in), 1)
        return (c == stride * r + offset).astype(f32)

    def conv_cl(h, w_ref, b_ref, *, stride, pad, L_out):
        # channels-last Conv1d + bias + ReLU: h (L_in, C_in) -> (L_out, C_out)
        L_in = h.shape[0]
        k = w_ref.shape[0]
        acc = None
        for t in range(k):
            sel = shift_sel(L_out, L_in, stride, t - pad)
            part = jnp.dot(jnp.dot(sel, h, preferred_element_type=f32),
                           w_ref[t], preferred_element_type=f32)
            acc = part if acc is None else acc + part
        return jnp.maximum(acc + b_ref[...], 0.0)

    # ---- conv1 + relu1: (k=300, s=100) as 3 block matmuls, bf16 in / f32 acc
    xw = xr_ref[0]                                          # (M1, C_in*100) bf16
    acc = None
    for u in range(w1_ref.shape[0]):
        y = jnp.dot(xw, w1_ref[u], preferred_element_type=f32)   # (M1, C1)
        y = y[u:u + L1, :]
        acc = y if acc is None else acc + y
    h = jnp.maximum(acc + b1_ref[...], 0.0)                 # (L1, C1)

    # ---- maxpool1 (kernel 2, floor): even/odd row selection + max
    h = jnp.maximum(
        jnp.dot(shift_sel(L1p, L1, 2, 0), h, preferred_element_type=f32),
        jnp.dot(shift_sel(L1p, L1, 2, 1), h, preferred_element_type=f32))

    # ---- conv2 / conv3 / conv1d4 (+ relu)
    h = conv_cl(h, w2_ref, b2_ref, stride=_C2["s"], pad=_C2["p"], L_out=L2)
    h = conv_cl(h, w3_ref, b3_ref, stride=_C3["s"], pad=_C3["p"], L_out=L3)
    h = conv_cl(h, w4_ref, b4_ref, stride=_C4["s"], pad=_C4["p"], L_out=L4)

    # ---- AdaptiveAvgPool1d(F) as a static averaging matmul (torch bins)
    r = lax.broadcasted_iota(jnp.int32, (F, L4), 0)
    c = lax.broadcasted_iota(jnp.int32, (F, L4), 1)
    P = jnp.zeros((F, L4), f32)
    for i in range(F):
        s = (i * L4) // F
        e = -((-(i + 1) * L4) // F)
        P = P + jnp.where((r == i) & (c >= s) & (c < e), 1.0 / (e - s), 0.0)
    pooled = jnp.dot(P, h, preferred_element_type=f32)      # (F, C4)

    # ---- flatten (torch channel-major) + fc1 + relu5, fused:
    #      y = sum_l pooled[l] @ W1_block[l]   (fc1 columns pre-permuted)
    acc = None
    for l in range(F):
        part = jnp.dot(pooled[l:l + 1, :], fw1_ref[l],
                       preferred_element_type=f32)
        acc = part if acc is None else acc + part
    h = jnp.maximum(acc + fb1_ref[...], 0.0)                # (1, 4c)

    # ---- fc2 + relu6, fc
    h = jnp.maximum(jnp.dot(h, fw2_ref[...], preferred_element_type=f32)
                    + fb2_ref[...], 0.0)                    # (1, 2c)
    out = jnp.dot(h, fw_ref[...], preferred_element_type=f32) + fb_ref[...]
    out_ref[0] = out.astype(out_ref.dtype)                  # (1, n_out)


# ---------------------------------------------------------------------------
# One-time parameter relayout (outside jit)
# ---------------------------------------------------------------------------
def prepare_params(p):
    """Relayout weights once: conv weights to tap-major channels-last, conv1
    grouped into stride-blocks (bf16), fc weights pre-transposed and fc1
    columns permuted to the channels-last flatten order."""
    C1, C_in, K1 = p["conv1_w"].shape
    assert K1 == _K1 and K1 % _S1 == 0
    U = K1 // _S1
    C4 = p["conv4_w"].shape[0]
    H1, fc1_in = p["fc1_w"].shape
    F = fc1_in // C4
    f32 = jnp.float32
    return {
        # w1[u, ci*100 + r, o] = conv1_w[o, ci, 100*u + r]
        "w1": p["conv1_w"].reshape(C1, C_in, U, _S1).transpose(2, 1, 3, 0)
                          .reshape(U, C_in * _S1, C1).astype(jnp.bfloat16),
        "b1": p["conv1_b"].reshape(1, -1).astype(f32),
        "w2": p["conv2_w"].transpose(2, 1, 0).astype(f32),   # (k, C_in, C_out)
        "b2": p["conv2_b"].reshape(1, -1).astype(f32),
        "w3": p["conv3_w"].transpose(2, 1, 0).astype(f32),
        "b3": p["conv3_b"].reshape(1, -1).astype(f32),
        "w4": p["conv4_w"].transpose(2, 1, 0).astype(f32),
        "b4": p["conv4_b"].reshape(1, -1).astype(f32),
        # fc1_w[o, c*F + l] -> fw1[l, c, o]
        "fw1": p["fc1_w"].reshape(H1, C4, F).transpose(2, 1, 0).astype(f32),
        "fb1": p["fc1_b"].reshape(1, -1).astype(f32),
        "fw2": p["fc2_w"].T.astype(f32),
        "fb2": p["fc2_b"].reshape(1, -1).astype(f32),
        "fw":  p["fc_w"].T.astype(f32),
        "fb":  p["fc_b"].reshape(1, -1).astype(f32),
    }


# ---------------------------------------------------------------------------
# Forward (single pallas_call)
# ---------------------------------------------------------------------------
def cnn_16khz_seg_forward(x, q, *, flatten_size):
    """x: (B, C_in, L) float32, q: prepare_params(...) output."""
    B, C_in, L = x.shape
    U = _K1 // _S1
    L1 = (L - _K1) // _S1 + 1
    M1 = L1 + U - 1
    L1p = L1 // 2
    L2 = (L1p + 2 * _C2["p"] - _C2["k"]) // _C2["s"] + 1
    L3 = (L2 + 2 * _C3["p"] - _C3["k"]) // _C3["s"] + 1
    L4 = (L3 + 2 * _C4["p"] - _C4["k"]) // _C4["s"] + 1
    F = flatten_size
    CK1 = C_in * _S1
    n_out = q["fb"].shape[1]

    # Stride-blocked relayout of the audio: x_r[b, m, ci*100+r] = x[b, ci, 100m+r].
    # Pure layout plumbing (same element count — no im2col duplication); bf16
    # halves the only non-trivial HBM read.
    x_r = (x[:, :, :_S1 * M1].reshape(B, C_in, M1, _S1)
           .transpose(0, 2, 1, 3).reshape(B, M1, CK1).astype(jnp.bfloat16))

    weights = (q["w1"], q["b1"], q["w2"], q["b2"], q["w3"], q["b3"],
               q["w4"], q["b4"], q["fw1"], q["fb1"], q["fw2"], q["fb2"],
               q["fw"], q["fb"])
    in_specs = [pl.BlockSpec((1, M1, CK1), lambda b: (b, 0, 0))]
    for a in weights:
        if a.ndim == 3:
            in_specs.append(pl.BlockSpec(a.shape, lambda b: (0, 0, 0)))
        else:
            in_specs.append(pl.BlockSpec(a.shape, lambda b: (0, 0)))

    kernel = functools.partial(_fused_forward_kernel,
                               L1=L1, L1p=L1p, L2=L2, L3=L3, L4=L4, F=F)
    y = pl.pallas_call(
        kernel,
        out_shape=jax.ShapeDtypeStruct((B, 1, n_out), jnp.float32),
        grid=(B,),
        in_specs=in_specs,
        out_specs=pl.BlockSpec((1, 1, n_out), lambda b: (b, 0, 0)),
        compiler_params=pltpu.CompilerParams(
            dimension_semantics=("parallel",),          # 2 TCs on v7x
            vmem_limit_bytes=32 * 1024 * 1024),         # explicit, safe on all gens
    )(x_r, *weights)
    return y.reshape(B, n_out)


# ---------------------------------------------------------------------------
# Deterministic parameter init (PyTorch-default-style uniform)
# ---------------------------------------------------------------------------
def init_params(key, n_input, n_output, n_channels, flatten_size):
    ks = jax.random.split(key, 14)

    def conv_init(kw, kb, c_out, c_in, k):
        bound = 1.0 / np.sqrt(c_in * k)
        w = jax.random.uniform(kw, (c_out, c_in, k), jnp.float32, -bound, bound)
        b = jax.random.uniform(kb, (c_out,), jnp.float32, -bound, bound)
        return w, b

    def lin_init(kw, kb, out_f, in_f):
        bound = 1.0 / np.sqrt(in_f)
        w = jax.random.uniform(kw, (out_f, in_f), jnp.float32, -bound, bound)
        b = jax.random.uniform(kb, (out_f,), jnp.float32, -bound, bound)
        return w, b

    c = n_channels
    p = {}
    p["conv1_w"], p["conv1_b"] = conv_init(ks[0], ks[1], c, n_input, 300)
    p["conv2_w"], p["conv2_b"] = conv_init(ks[2], ks[3], 2 * c, c, 5)
    p["conv3_w"], p["conv3_b"] = conv_init(ks[4], ks[5], 4 * c, 2 * c, 4)
    p["conv4_w"], p["conv4_b"] = conv_init(ks[6], ks[7], 4 * c, 4 * c, 3)
    p["fc1_w"], p["fc1_b"] = lin_init(ks[8], ks[9], 4 * c, flatten_size * 4 * c)
    p["fc2_w"], p["fc2_b"] = lin_init(ks[10], ks[11], 2 * c, 4 * c)
    p["fc_w"], p["fc_b"] = lin_init(ks[12], ks[13], n_output, 2 * c)
    return p


# ---------------------------------------------------------------------------
# Pure-JAX reference (correctness check only)
# ---------------------------------------------------------------------------
def _adaptive_pool_matrix(L, out_size):
    P = np.zeros((L, out_size), dtype=np.float32)
    for i in range(out_size):
        s = (i * L) // out_size
        e = -((-(i + 1) * L) // out_size)
        P[s:e, i] = 1.0 / (e - s)
    return jnp.asarray(P)


def reference_forward(x, p, flatten_size):
    def conv(x, w, b, stride, pad):
        y = jax.lax.conv_general_dilated(
            x, w, window_strides=(stride,), padding=[(pad, pad)],
            dimension_numbers=("NCH", "OIH", "NCH"))
        return y + b[None, :, None]

    x = jax.nn.relu(conv(x, p["conv1_w"], p["conv1_b"], 100, 0))
    B, C, L = x.shape
    x = x[:, :, : (L // 2) * 2].reshape(B, C, L // 2, 2).max(-1)
    x = jax.nn.relu(conv(x, p["conv2_w"], p["conv2_b"], 2, 2))
    x = jax.nn.relu(conv(x, p["conv3_w"], p["conv3_b"], 2, 2))
    x = jax.nn.relu(conv(x, p["conv4_w"], p["conv4_b"], 1, 1))
    B, C, L = x.shape
    x = jnp.einsum("bcl,lo->bco", x, _adaptive_pool_matrix(L, flatten_size))
    x = x.reshape(B, -1)
    x = jax.nn.relu(x @ p["fc1_w"].T + p["fc1_b"])
    x = jax.nn.relu(x @ p["fc2_w"].T + p["fc2_b"])
    return x @ p["fc_w"].T + p["fc_b"]


# ---------------------------------------------------------------------------
if __name__ == "__main__":
    # Small but valid shapes: conv1 (k=300, s=100) requires L >= 300.
    n_input, n_output, n_channels, flatten_size = 1, 3, 8, 4
    B, L = 2, 3000   # lengths: 28 -> 14 -> 7 -> 4 -> 4 -> adapt(4)

    key = jax.random.PRNGKey(0)
    pkey, xkey = jax.random.split(key)
    params = init_params(pkey, n_input, n_output, n_channels, flatten_size)
    x = jax.random.normal(xkey, (B, n_input, L), jnp.float32)

    prepped = prepare_params(params)   # one-time weight relayout (outside jit)
    fwd = jax.jit(functools.partial(cnn_16khz_seg_forward,
                                    flatten_size=flatten_size))
    out = jax.block_until_ready(fwd(x, prepped))

    assert out.shape == (B, n_output), out.shape
    ref = reference_forward(x, params, flatten_size)
    # bf16 conv1 inputs / f32 accumulation: well inside 5e-3 at these scales.
    np.testing.assert_allclose(np.asarray(out), np.asarray(ref),
                               rtol=5e-3, atol=5e-3)

    print("KERNEL_OK")
</pallas_src>

<mosaic_0001>
module attributes {stable_mosaic.version = 11 : i64} {
  func.func @_fused_forward_kernel(%arg0: i32, %arg1: memref<1x30x100xbf16, #tpu.memory_space<vmem>>, %arg2: memref<3x100x8xbf16, #tpu.memory_space<vmem>>, %arg3: memref<1x8xf32, #tpu.memory_space<vmem>>, %arg4: memref<5x8x16xf32, #tpu.memory_space<vmem>>, %arg5: memref<1x16xf32, #tpu.memory_space<vmem>>, %arg6: memref<4x16x32xf32, #tpu.memory_space<vmem>>, %arg7: memref<1x32xf32, #tpu.memory_space<vmem>>, %arg8: memref<3x32x32xf32, #tpu.memory_space<vmem>>, %arg9: memref<1x32xf32, #tpu.memory_space<vmem>>, %arg10: memref<4x32x32xf32, #tpu.memory_space<vmem>>, %arg11: memref<1x32xf32, #tpu.memory_space<vmem>>, %arg12: memref<32x16xf32, #tpu.memory_space<vmem>>, %arg13: memref<1x16xf32, #tpu.memory_space<vmem>>, %arg14: memref<16x3xf32, #tpu.memory_space<vmem>>, %arg15: memref<1x3xf32, #tpu.memory_space<vmem>>, %arg16: memref<1x1x3xf32, #tpu.memory_space<vmem>>) attributes {dimension_semantics = [#tpu.dimension_semantics<parallel>], iteration_bounds = array<i64: 2>, scalar_prefetch = 0 : i64, scratch_operands = 0 : i64, tpu.core_type = #tpu.core_type<tc>, window_params = [{transform_indices = @transform_0, window_bounds = array<i64: 1, 30, 100>}, {pipeline_mode = #tpu.pipeline_mode<synchronous>, transform_indices = @transform_1, window_bounds = array<i64: 3, 100, 8>}, {pipeline_mode = #tpu.pipeline_mode<synchronous>, transform_indices = @transform_2, window_bounds = array<i64: 1, 8>}, {pipeline_mode = #tpu.pipeline_mode<synchronous>, transform_indices = @transform_3, window_bounds = array<i64: 5, 8, 16>}, {pipeline_mode = #tpu.pipeline_mode<synchronous>, transform_indices = @transform_4, window_bounds = array<i64: 1, 16>}, {pipeline_mode = #tpu.pipeline_mode<synchronous>, transform_indices = @transform_5, window_bounds = array<i64: 4, 16, 32>}, {pipeline_mode = #tpu.pipeline_mode<synchronous>, transform_indices = @transform_6, window_bounds = array<i64: 1, 32>}, {pipeline_mode = #tpu.pipeline_mode<synchronous>, transform_indices = @transform_7, window_bounds = array<i64: 3, 32, 32>}, {pipeline_mode = #tpu.pipeline_mode<synchronous>, transform_indices = @transform_8, window_bounds = array<i64: 1, 32>}, {pipeline_mode = #tpu.pipeline_mode<synchronous>, transform_indices = @transform_9, window_bounds = array<i64: 4, 32, 32>}, {pipeline_mode = #tpu.pipeline_mode<synchronous>, transform_indices = @transform_10, window_bounds = array<i64: 1, 32>}, {pipeline_mode = #tpu.pipeline_mode<synchronous>, transform_indices = @transform_11, window_bounds = array<i64: 32, 16>}, {pipeline_mode = #tpu.pipeline_mode<synchronous>, transform_indices = @transform_12, window_bounds = array<i64: 1, 16>}, {pipeline_mode = #tpu.pipeline_mode<synchronous>, transform_indices = @transform_13, window_bounds = array<i64: 16, 3>}, {pipeline_mode = #tpu.pipeline_mode<synchronous>, transform_indices = @transform_14, window_bounds = array<i64: 1, 3>}, {transform_indices = @transform_15, window_bounds = array<i64: 1, 1, 3>}]} {
    %c0 = arith.constant 0 : index
    %c0_0 = arith.constant 0 : index
    %c0_1 = arith.constant 0 : index
    %0 = vector.load %arg1[%c0, %c0_0, %c0_1] : memref<1x30x100xbf16, #tpu.memory_space<vmem>>, vector<1x30x100xbf16>
    %1 = vector.shape_cast %0 : vector<1x30x100xbf16> to vector<30x100xbf16>
    %c0_2 = arith.constant 0 : index
    %c0_3 = arith.constant 0 : index
    %c0_4 = arith.constant 0 : index
    %2 = vector.load %arg2[%c0_2, %c0_3, %c0_4] : memref<3x100x8xbf16, #tpu.memory_space<vmem>>, vector<1x100x8xbf16>
    %3 = vector.shape_cast %2 : vector<1x100x8xbf16> to vector<100x8xbf16>
    %cst = arith.constant dense<0.000000e+00> : vector<30x8xf32>
    %4 = tpu.matmul %1, %3, %cst {dimension_numbers = #tpu.dot_dimension_numbers<[1], [0], [0], [1], [0, 0, 1, 1], [], []>} : vector<30x100xbf16>, vector<100x8xbf16>, vector<30x8xf32> -> vector<30x8xf32>
    %5 = vector.extract_strided_slice %4 {offsets = [0, 0], sizes = [28, 8], strides = [1, 1]} : vector<30x8xf32> to vector<28x8xf32>
    %c1 = arith.constant 1 : index
    %c0_5 = arith.constant 0 : index
    %c0_6 = arith.constant 0 : index
    %6 = vector.load %arg2[%c1, %c0_5, %c0_6] : memref<3x100x8xbf16, #tpu.memory_space<vmem>>, vector<1x100x8xbf16>
    %7 = vector.shape_cast %6 : vector<1x100x8xbf16> to vector<100x8xbf16>
    %cst_7 = arith.constant dense<0.000000e+00> : vector<30x8xf32>
    %8 = tpu.matmul %1, %7, %cst_7 {dimension_numbers = #tpu.dot_dimension_numbers<[1], [0], [0], [1], [0, 0, 1, 1], [], []>} : vector<30x100xbf16>, vector<100x8xbf16>, vector<30x8xf32> -> vector<30x8xf32>
    %9 = vector.extract_strided_slice %8 {offsets = [1, 0], sizes = [28, 8], strides = [1, 1]} : vector<30x8xf32> to vector<28x8xf32>
    %10 = arith.addf %5, %9 : vector<28x8xf32>
    %c2 = arith.constant 2 : index
    %c0_8 = arith.constant 0 : index
    %c0_9 = arith.constant 0 : index
    %11 = vector.load %arg2[%c2, %c0_8, %c0_9] : memref<3x100x8xbf16, #tpu.memory_space<vmem>>, vector<1x100x8xbf16>
    %12 = vector.shape_cast %11 : vector<1x100x8xbf16> to vector<100x8xbf16>
    %cst_10 = arith.constant dense<0.000000e+00> : vector<30x8xf32>
    %13 = tpu.matmul %1, %12, %cst_10 {dimension_numbers = #tpu.dot_dimension_numbers<[1], [0], [0], [1], [0, 0, 1, 1], [], []>} : vector<30x100xbf16>, vector<100x8xbf16>, vector<30x8xf32> -> vector<30x8xf32>
    %14 = vector.extract_strided_slice %13 {offsets = [2, 0], sizes = [28, 8], strides = [1, 1]} : vector<30x8xf32> to vector<28x8xf32>
    %15 = arith.addf %10, %14 : vector<28x8xf32>
    %c0_11 = arith.constant 0 : index
    %c0_12 = arith.constant 0 : index
    %16 = vector.load %arg3[%c0_11, %c0_12] : memref<1x8xf32, #tpu.memory_space<vmem>>, vector<1x8xf32>
    %17 = vector.broadcast %16 : vector<1x8xf32> to vector<28x8xf32>
    %18 = arith.addf %15, %17 : vector<28x8xf32>
    %cst_13 = arith.constant 0.000000e+00 : f32
    %19 = vector.broadcast %cst_13 : f32 to vector<28x8xf32>
    %20 = arith.maximumf %18, %19 : vector<28x8xf32>
    %21 = tpu.iota {dimensions = array<i32: 0>} : vector<14x28xi32>
    %22 = tpu.iota {dimensions = array<i32: 1>} : vector<14x28xi32>
    %c2_i32 = arith.constant 2 : i32
    %23 = vector.broadcast %c2_i32 : i32 to vector<14x28xi32>
    %24 = arith.muli %23, %21 : vector<14x28xi32>
    %c0_i32 = arith.constant 0 : i32
    %25 = vector.broadcast %c0_i32 : i32 to vector<14x28xi32>
    %26 = arith.addi %24, %25 : vector<14x28xi32>
    %27 = arith.cmpi eq, %22, %26 : vector<14x28xi32>
    %28 = arith.extui %27 : vector<14x28xi1> to vector<14x28xi32>
    %29 = arith.sitofp %28 : vector<14x28xi32> to vector<14x28xf32>
    %cst_14 = arith.constant dense<0.000000e+00> : vector<14x8xf32>
    %30 = tpu.matmul %29, %20, %cst_14 {dimension_numbers = #tpu.dot_dimension_numbers<[1], [0], [0], [1], [0, 0, 1, 1], [], []>} : vector<14x28xf32>, vector<28x8xf32>, vector<14x8xf32> -> vector<14x8xf32>
    %31 = tpu.iota {dimensions = array<i32: 0>} : vector<14x28xi32>
    %32 = tpu.iota {dimensions = array<i32: 1>} : vector<14x28xi32>
    %c2_i32_15 = arith.constant 2 : i32
    %33 = vector.broadcast %c2_i32_15 : i32 to vector<14x28xi32>
    %34 = arith.muli %33, %31 : vector<14x28xi32>
    %c1_i32 = arith.constant 1 : i32
    %35 = vector.broadcast %c1_i32 : i32 to vector<14x28xi32>
    %36 = arith.addi %34, %35 : vector<14x28xi32>
    %37 = arith.cmpi eq, %32, %36 : vector<14x28xi32>
    %38 = arith.extui %37 : vector<14x28xi1> to vector<14x28xi32>
    %39 = arith.sitofp %38 : vector<14x28xi32> to vector<14x28xf32>
    %cst_16 = arith.constant dense<0.000000e+00> : vector<14x8xf32>
    %40 = tpu.matmul %39, %20, %cst_16 {dimension_numbers = #tpu.dot_dimension_numbers<[1], [0], [0], [1], [0, 0, 1, 1], [], []>} : vector<14x28xf32>, vector<28x8xf32>, vector<14x8xf32> -> vector<14x8xf32>
    %41 = arith.maximumf %30, %40 : vector<14x8xf32>
    %42 = tpu.iota {dimensions = array<i32: 0>} : vector<7x14xi32>
    %43 = tpu.iota {dimensions = array<i32: 1>} : vector<7x14xi32>
    %c2_i32_17 = arith.constant 2 : i32
    %44 = vector.broadcast %c2_i32_17 : i32 to vector<7x14xi32>
    %45 = arith.muli %44, %42 : vector<7x14xi32>
    %c-2_i32 = arith.constant -2 : i32
    %46 = vector.broadcast %c-2_i32 : i32 to vector<7x14xi32>
    %47 = arith.addi %45, %46 : vector<7x14xi32>
    %48 = arith.cmpi eq, %43, %47 : vector<7x14xi32>
    %49 = arith.extui %48 : vector<7x14xi1> to vector<7x14xi32>
    %50 = arith.sitofp %49 : vector<7x14xi32> to vector<7x14xf32>
    %cst_18 = arith.constant dense<0.000000e+00> : vector<7x8xf32>
    %51 = tpu.matmul %50, %41, %cst_18 {dimension_numbers = #tpu.dot_dimension_numbers<[1], [0], [0], [1], [0, 0, 1, 1], [], []>} : vector<7x14xf32>, vector<14x8xf32>, vector<7x8xf32> -> vector<7x8xf32>
    %c0_19 = arith.constant 0 : index
    %c0_20 = arith.constant 0 : index
    %c0_21 = arith.constant 0 : index
    %52 = vector.load %arg4[%c0_19, %c0_20, %c0_21] : memref<5x8x16xf32, #tpu.memory_space<vmem>>, vector<1x8x16xf32>
    %53 = vector.shape_cast %52 : vector<1x8x16xf32> to vector<8x16xf32>
    %cst_22 = arith.constant dense<0.000000e+00> : vector<7x16xf32>
    %54 = tpu.matmul %51, %53, %cst_22 {dimension_numbers = #tpu.dot_dimension_numbers<[1], [0], [0], [1], [0, 0, 1, 1], [], []>} : vector<7x8xf32>, vector<8x16xf32>, vector<7x16xf32> -> vector<7x16xf32>
    %55 = tpu.iota {dimensions = array<i32: 0>} : vector<7x14xi32>
    %56 = tpu.iota {dimensions = array<i32: 1>} : vector<7x14xi32>
    %c2_i32_23 = arith.constant 2 : i32
    %57 = vector.broadcast %c2_i32_23 : i32 to vector<7x14xi32>
    %58 = arith.muli %57, %55 : vector<7x14xi32>
    %c-1_i32 = arith.constant -1 : i32
    %59 = vector.broadcast %c-1_i32 : i32 to vector<7x14xi32>
    %60 = arith.addi %58, %59 : vector<7x14xi32>
    %61 = arith.cmpi eq, %56, %60 : vector<7x14xi32>
    %62 = arith.extui %61 : vector<7x14xi1> to vector<7x14xi32>
    %63 = arith.sitofp %62 : vector<7x14xi32> to vector<7x14xf32>
    %cst_24 = arith.constant dense<0.000000e+00> : vector<7x8xf32>
    %64 = tpu.matmul %63, %41, %cst_24 {dimension_numbers = #tpu.dot_dimension_numbers<[1], [0], [0], [1], [0, 0, 1, 1], [], []>} : vector<7x14xf32>, vector<14x8xf32>, vector<7x8xf32> -> vector<7x8xf32>
    %c1_25 = arith.constant 1 : index
    %c0_26 = arith.constant 0 : index
    %c0_27 = arith.constant 0 : index
    %65 = vector.load %arg4[%c1_25, %c0_26, %c0_27] : memref<5x8x16xf32, #tpu.memory_space<vmem>>, vector<1x8x16xf32>
    %66 = vector.shape_cast %65 : vector<1x8x16xf32> to vector<8x16xf32>
    %cst_28 = arith.constant dense<0.000000e+00> : vector<7x16xf32>
    %67 = tpu.matmul %64, %66, %cst_28 {dimension_numbers = #tpu.dot_dimension_numbers<[1], [0], [0], [1], [0, 0, 1, 1], [], []>} : vector<7x8xf32>, vector<8x16xf32>, vector<7x16xf32> -> vector<7x16xf32>
    %68 = arith.addf %54, %67 : vector<7x16xf32>
    %69 = tpu.iota {dimensions = array<i32: 0>} : vector<7x14xi32>
    %70 = tpu.iota {dimensions = array<i32: 1>} : vector<7x14xi32>
    %c2_i32_29 = arith.constant 2 : i32
    %71 = vector.broadcast %c2_i32_29 : i32 to vector<7x14xi32>
    %72 = arith.muli %71, %69 : vector<7x14xi32>
    %c0_i32_30 = arith.constant 0 : i32
    %73 = vector.broadcast %c0_i32_30 : i32 to vector<7x14xi32>
    %74 = arith.addi %72, %73 : vector<7x14xi32>
    %75 = arith.cmpi eq, %70, %74 : vector<7x14xi32>
    %76 = arith.extui %75 : vector<7x14xi1> to vector<7x14xi32>
    %77 = arith.sitofp %76 : vector<7x14xi32> to vector<7x14xf32>
    %cst_31 = arith.constant dense<0.000000e+00> : vector<7x8xf32>
    %78 = tpu.matmul %77, %41, %cst_31 {dimension_numbers = #tpu.dot_dimension_numbers<[1], [0], [0], [1], [0, 0, 1, 1], [], []>} : vector<7x14xf32>, vector<14x8xf32>, vector<7x8xf32> -> vector<7x8xf32>
    %c2_32 = arith.constant 2 : index
    %c0_33 = arith.constant 0 : index
    %c0_34 = arith.constant 0 : index
    %79 = vector.load %arg4[%c2_32, %c0_33, %c0_34] : memref<5x8x16xf32, #tpu.memory_space<vmem>>, vector<1x8x16xf32>
    %80 = vector.shape_cast %79 : vector<1x8x16xf32> to vector<8x16xf32>
    %cst_35 = arith.constant dense<0.000000e+00> : vector<7x16xf32>
    %81 = tpu.matmul %78, %80, %cst_35 {dimension_numbers = #tpu.dot_dimension_numbers<[1], [0], [0], [1], [0, 0, 1, 1], [], []>} : vector<7x8xf32>, vector<8x16xf32>, vector<7x16xf32> -> vector<7x16xf32>
    %82 = arith.addf %68, %81 : vector<7x16xf32>
    %83 = tpu.iota {dimensions = array<i32: 0>} : vector<7x14xi32>
    %84 = tpu.iota {dimensions = array<i32: 1>} : vector<7x14xi32>
    %c2_i32_36 = arith.constant 2 : i32
    %85 = vector.broadcast %c2_i32_36 : i32 to vector<7x14xi32>
    %86 = arith.muli %85, %83 : vector<7x14xi32>
    %c1_i32_37 = arith.constant 1 : i32
    %87 = vector.broadcast %c1_i32_37 : i32 to vector<7x14xi32>
    %88 = arith.addi %86, %87 : vector<7x14xi32>
    %89 = arith.cmpi eq, %84, %88 : vector<7x14xi32>
    %90 = arith.extui %89 : vector<7x14xi1> to vector<7x14xi32>
    %91 = arith.sitofp %90 : vector<7x14xi32> to vector<7x14xf32>
    %cst_38 = arith.constant dense<0.000000e+00> : vector<7x8xf32>
    %92 = tpu.matmul %91, %41, %cst_38 {dimension_numbers = #tpu.dot_dimension_numbers<[1], [0], [0], [1], [0, 0, 1, 1], [], []>} : vector<7x14xf32>, vector<14x8xf32>, vector<7x8xf32> -> vector<7x8xf32>
    %c3 = arith.constant 3 : index
    %c0_39 = arith.constant 0 : index
    %c0_40 = arith.constant 0 : index
    %93 = vector.load %arg4[%c3, %c0_39, %c0_40] : memref<5x8x16xf32, #tpu.memory_space<vmem>>, vector<1x8x16xf32>
    %94 = vector.shape_cast %93 : vector<1x8x16xf32> to vector<8x16xf32>
    %cst_41 = arith.constant dense<0.000000e+00> : vector<7x16xf32>
    %95 = tpu.matmul %92, %94, %cst_41 {dimension_numbers = #tpu.dot_dimension_numbers<[1], [0], [0], [1], [0, 0, 1, 1], [], []>} : vector<7x8xf32>, vector<8x16xf32>, vector<7x16xf32> -> vector<7x16xf32>
    %96 = arith.addf %82, %95 : vector<7x16xf32>
    %97 = tpu.iota {dimensions = array<i32: 0>} : vector<7x14xi32>
    %98 = tpu.iota {dimensions = array<i32: 1>} : vector<7x14xi32>
    %c2_i32_42 = arith.constant 2 : i32
    %99 = vector.broadcast %c2_i32_42 : i32 to vector<7x14xi32>
    %100 = arith.muli %99, %97 : vector<7x14xi32>
    %c2_i32_43 = arith.constant 2 : i32
    %101 = vector.broadcast %c2_i32_43 : i32 to vector<7x14xi32>
    %102 = arith.addi %100, %101 : vector<7x14xi32>
    %103 = arith.cmpi eq, %98, %102 : vector<7x14xi32>
    %104 = arith.extui %103 : vector<7x14xi1> to vector<7x14xi32>
    %105 = arith.sitofp %104 : vector<7x14xi32> to vector<7x14xf32>
    %cst_44 = arith.constant dense<0.000000e+00> : vector<7x8xf32>
    %106 = tpu.matmul %105, %41, %cst_44 {dimension_numbers = #tpu.dot_dimension_numbers<[1], [0], [0], [1], [0, 0, 1, 1], [], []>} : vector<7x14xf32>, vector<14x8xf32>, vector<7x8xf32> -> vector<7x8xf32>
    %c4 = arith.constant 4 : index
    %c0_45 = arith.constant 0 : index
    %c0_46 = arith.constant 0 : index
    %107 = vector.load %arg4[%c4, %c0_45, %c0_46] : memref<5x8x16xf32, #tpu.memory_space<vmem>>, vector<1x8x16xf32>
    %108 = vector.shape_cast %107 : vector<1x8x16xf32> to vector<8x16xf32>
    %cst_47 = arith.constant dense<0.000000e+00> : vector<7x16xf32>
    %109 = tpu.matmul %106, %108, %cst_47 {dimension_numbers = #tpu.dot_dimension_numbers<[1], [0], [0], [1], [0, 0, 1, 1], [], []>} : vector<7x8xf32>, vector<8x16xf32>, vector<7x16xf32> -> vector<7x16xf32>
    %110 = arith.addf %96, %109 : vector<7x16xf32>
    %c0_48 = arith.constant 0 : index
    %c0_49 = arith.constant 0 : index
    %111 = vector.load %arg5[%c0_48, %c0_49] : memref<1x16xf32, #tpu.memory_space<vmem>>, vector<1x16xf32>
    %112 = vector.broadcast %111 : vector<1x16xf32> to vector<7x16xf32>
    %113 = arith.addf %110, %112 : vector<7x16xf32>
    %cst_50 = arith.constant 0.000000e+00 : f32
    %114 = vector.broadcast %cst_50 : f32 to vector<7x16xf32>
    %115 = arith.maximumf %113, %114 : vector<7x16xf32>
    %116 = tpu.iota {dimensions = array<i32: 0>} : vector<4x7xi32>
    %117 = tpu.iota {dimensions = array<i32: 1>} : vector<4x7xi32>
    %c2_i32_51 = arith.constant 2 : i32
    %118 = vector.broadcast %c2_i32_51 : i32 to vector<4x7xi32>
    %119 = arith.muli %118, %116 : vector<4x7xi32>
    %c-2_i32_52 = arith.constant -2 : i32
    %120 = vector.broadcast %c-2_i32_52 : i32 to vector<4x7xi32>
    %121 = arith.addi %119, %120 : vector<4x7xi32>
    %122 = arith.cmpi eq, %117, %121 : vector<4x7xi32>
    %123 = arith.extui %122 : vector<4x7xi1> to vector<4x7xi32>
    %124 = arith.sitofp %123 : vector<4x7xi32> to vector<4x7xf32>
    %cst_53 = arith.constant dense<0.000000e+00> : vector<4x16xf32>
    %125 = tpu.matmul %124, %115, %cst_53 {dimension_numbers = #tpu.dot_dimension_numbers<[1], [0], [0], [1], [0, 0, 1, 1], [], []>} : vector<4x7xf32>, vector<7x16xf32>, vector<4x16xf32> -> vector<4x16xf32>
    %c0_54 = arith.constant 0 : index
    %c0_55 = arith.constant 0 : index
    %c0_56 = arith.constant 0 : index
    %126 = vector.load %arg6[%c0_54, %c0_55, %c0_56] : memref<4x16x32xf32, #tpu.memory_space<vmem>>, vector<1x16x32xf32>
    %127 = vector.shape_cast %126 : vector<1x16x32xf32> to vector<16x32xf32>
    %cst_57 = arith.constant dense<0.000000e+00> : vector<4x32xf32>
    %128 = tpu.matmul %125, %127, %cst_57 {dimension_numbers = #tpu.dot_dimension_numbers<[1], [0], [0], [1], [0, 0, 1, 1], [], []>} : vector<4x16xf32>, vector<16x32xf32>, vector<4x32xf32> -> vector<4x32xf32>
    %129 = tpu.iota {dimensions = array<i32: 0>} : vector<4x7xi32>
    %130 = tpu.iota {dimensions = array<i32: 1>} : vector<4x7xi32>
    %c2_i32_58 = arith.constant 2 : i32
    %131 = vector.broadcast %c2_i32_58 : i32 to vector<4x7xi32>
    %132 = arith.muli %131, %129 : vector<4x7xi32>
    %c-1_i32_59 = arith.constant -1 : i32
    %133 = vector.broadcast %c-1_i32_59 : i32 to vector<4x7xi32>
    %134 = arith.addi %132, %133 : vector<4x7xi32>
    %135 = arith.cmpi eq, %130, %134 : vector<4x7xi32>
    %136 = arith.extui %135 : vector<4x7xi1> to vector<4x7xi32>
    %137 = arith.sitofp %136 : vector<4x7xi32> to vector<4x7xf32>
    %cst_60 = arith.constant dense<0.000000e+00> : vector<4x16xf32>
    %138 = tpu.matmul %137, %115, %cst_60 {dimension_numbers = #tpu.dot_dimension_numbers<[1], [0], [0], [1], [0, 0, 1, 1], [], []>} : vector<4x7xf32>, vector<7x16xf32>, vector<4x16xf32> -> vector<4x16xf32>
    %c1_61 = arith.constant 1 : index
    %c0_62 = arith.constant 0 : index
    %c0_63 = arith.constant 0 : index
    %139 = vector.load %arg6[%c1_61, %c0_62, %c0_63] : memref<4x16x32xf32, #tpu.memory_space<vmem>>, vector<1x16x32xf32>
    %140 = vector.shape_cast %139 : vector<1x16x32xf32> to vector<16x32xf32>
    %cst_64 = arith.constant dense<0.000000e+00> : vector<4x32xf32>
    %141 = tpu.matmul %138, %140, %cst_64 {dimension_numbers = #tpu.dot_dimension_numbers<[1], [0], [0], [1], [0, 0, 1, 1], [], []>} : vector<4x16xf32>, vector<16x32xf32>, vector<4x32xf32> -> vector<4x32xf32>
    %142 = arith.addf %128, %141 : vector<4x32xf32>
    %143 = tpu.iota {dimensions = array<i32: 0>} : vector<4x7xi32>
    %144 = tpu.iota {dimensions = array<i32: 1>} : vector<4x7xi32>
    %c2_i32_65 = arith.constant 2 : i32
    %145 = vector.broadcast %c2_i32_65 : i32 to vector<4x7xi32>
    %146 = arith.muli %145, %143 : vector<4x7xi32>
    %c0_i32_66 = arith.constant 0 : i32
    %147 = vector.broadcast %c0_i32_66 : i32 to vector<4x7xi32>
    %148 = arith.addi %146, %147 : vector<4x7xi32>
    %149 = arith.cmpi eq, %144, %148 : vector<4x7xi32>
    %150 = arith.extui %149 : vector<4x7xi1> to vector<4x7xi32>
    %151 = arith.sitofp %150 : vector<4x7xi32> to vector<4x7xf32>
    %cst_67 = arith.constant dense<0.000000e+00> : vector<4x16xf32>
    %152 = tpu.matmul %151, %115, %cst_67 {dimension_numbers = #tpu.dot_dimension_numbers<[1], [0], [0], [1], [0, 0, 1, 1], [], []>} : vector<4x7xf32>, vector<7x16xf32>, vector<4x16xf32> -> vector<4x16xf32>
    %c2_68 = arith.constant 2 : index
    %c0_69 = arith.constant 0 : index
    %c0_70 = arith.constant 0 : index
    %153 = vector.load %arg6[%c2_68, %c0_69, %c0_70] : memref<4x16x32xf32, #tpu.memory_space<vmem>>, vector<1x16x32xf32>
    %154 = vector.shape_cast %153 : vector<1x16x32xf32> to vector<16x32xf32>
    %cst_71 = arith.constant dense<0.000000e+00> : vector<4x32xf32>
    %155 = tpu.matmul %152, %154, %cst_71 {dimension_numbers = #tpu.dot_dimension_numbers<[1], [0], [0], [1], [0, 0, 1, 1], [], []>} : vector<4x16xf32>, vector<16x32xf32>, vector<4x32xf32> -> vector<4x32xf32>
    %156 = arith.addf %142, %155 : vector<4x32xf32>
    %157 = tpu.iota {dimensions = array<i32: 0>} : vector<4x7xi32>
    %158 = tpu.iota {dimensions = array<i32: 1>} : vector<4x7xi32>
    %c2_i32_72 = arith.constant 2 : i32
    %159 = vector.broadcast %c2_i32_72 : i32 to vector<4x7xi32>
    %160 = arith.muli %159, %157 : vector<4x7xi32>
    %c1_i32_73 = arith.constant 1 : i32
    %161 = vector.broadcast %c1_i32_73 : i32 to vector<4x7xi32>
    %162 = arith.addi %160, %161 : vector<4x7xi32>
    %163 = arith.cmpi eq, %158, %162 : vector<4x7xi32>
    %164 = arith.extui %163 : vector<4x7xi1> to vector<4x7xi32>
    %165 = arith.sitofp %164 : vector<4x7xi32> to vector<4x7xf32>
    %cst_74 = arith.constant dense<0.000000e+00> : vector<4x16xf32>
    %166 = tpu.matmul %165, %115, %cst_74 {dimension_numbers = #tpu.dot_dimension_numbers<[1], [0], [0], [1], [0, 0, 1, 1], [], []>} : vector<4x7xf32>, vector<7x16xf32>, vector<4x16xf32> -> vector<4x16xf32>
    %c3_75 = arith.constant 3 : index
    %c0_76 = arith.constant 0 : index
    %c0_77 = arith.constant 0 : index
    %167 = vector.load %arg6[%c3_75, %c0_76, %c0_77] : memref<4x16x32xf32, #tpu.memory_space<vmem>>, vector<1x16x32xf32>
    %168 = vector.shape_cast %167 : vector<1x16x32xf32> to vector<16x32xf32>
    %cst_78 = arith.constant dense<0.000000e+00> : vector<4x32xf32>
    %169 = tpu.matmul %166, %168, %cst_78 {dimension_numbers = #tpu.dot_dimension_numbers<[1], [0], [0], [1], [0, 0, 1, 1], [], []>} : vector<4x16xf32>, vector<16x32xf32>, vector<4x32xf32> -> vector<4x32xf32>
    %170 = arith.addf %156, %169 : vector<4x32xf32>
    %c0_79 = arith.constant 0 : index
    %c0_80 = arith.constant 0 : index
    %171 = vector.load %arg7[%c0_79, %c0_80] : memref<1x32xf32, #tpu.memory_space<vmem>>, vector<1x32xf32>
    %172 = vector.broadcast %171 : vector<1x32xf32> to vector<4x32xf32>
    %173 = arith.addf %170, %172 : vector<4x32xf32>
    %cst_81 = arith.constant 0.000000e+00 : f32
    %174 = vector.broadcast %cst_81 : f32 to vector<4x32xf32>
    %175 = arith.maximumf %173, %174 : vector<4x32xf32>
    %176 = tpu.iota {dimensions = array<i32: 0>} : vector<4x4xi32>
    %177 = tpu.iota {dimensions = array<i32: 1>} : vector<4x4xi32>
    %c1_i32_82 = arith.constant 1 : i32
    %178 = vector.broadcast %c1_i32_82 : i32 to vector<4x4xi32>
    %179 = arith.muli %178, %176 : vector<4x4xi32>
    %c-1_i32_83 = arith.constant -1 : i32
    %180 = vector.broadcast %c-1_i32_83 : i32 to vector<4x4xi32>
    %181 = arith.addi %179, %180 : vector<4x4xi32>
    %182 = arith.cmpi eq, %177, %181 : vector<4x4xi32>
    %183 = arith.extui %182 : vector<4x4xi1> to vector<4x4xi32>
    %184 = arith.sitofp %183 : vector<4x4xi32> to vector<4x4xf32>
    %cst_84 = arith.constant dense<0.000000e+00> : vector<4x32xf32>
    %185 = tpu.matmul %184, %175, %cst_84 {dimension_numbers = #tpu.dot_dimension_numbers<[1], [0], [0], [1], [0, 0, 1, 1], [], []>} : vector<4x4xf32>, vector<4x32xf32>, vector<4x32xf32> -> vector<4x32xf32>
    %c0_85 = arith.constant 0 : index
    %c0_86 = arith.constant 0 : index
    %c0_87 = arith.constant 0 : index
    %186 = vector.load %arg8[%c0_85, %c0_86, %c0_87] : memref<3x32x32xf32, #tpu.memory_space<vmem>>, vector<1x32x32xf32>
    %187 = vector.shape_cast %186 : vector<1x32x32xf32> to vector<32x32xf32>
    %cst_88 = arith.constant dense<0.000000e+00> : vector<4x32xf32>
    %188 = tpu.matmul %185, %187, %cst_88 {dimension_numbers = #tpu.dot_dimension_numbers<[1], [0], [0], [1], [0, 0, 1, 1], [], []>} : vector<4x32xf32>, vector<32x32xf32>, vector<4x32xf32> -> vector<4x32xf32>
    %189 = tpu.iota {dimensions = array<i32: 0>} : vector<4x4xi32>
    %190 = tpu.iota {dimensions = array<i32: 1>} : vector<4x4xi32>
    %c1_i32_89 = arith.constant 1 : i32
    %191 = vector.broadcast %c1_i32_89 : i32 to vector<4x4xi32>
    %192 = arith.muli %191, %189 : vector<4x4xi32>
    %c0_i32_90 = arith.constant 0 : i32
    %193 = vector.broadcast %c0_i32_90 : i32 to vector<4x4xi32>
    %194 = arith.addi %192, %193 : vector<4x4xi32>
    %195 = arith.cmpi eq, %190, %194 : vector<4x4xi32>
    %196 = arith.extui %195 : vector<4x4xi1> to vector<4x4xi32>
    %197 = arith.sitofp %196 : vector<4x4xi32> to vector<4x4xf32>
    %cst_91 = arith.constant dense<0.000000e+00> : vector<4x32xf32>
    %198 = tpu.matmul %197, %175, %cst_91 {dimension_numbers = #tpu.dot_dimension_numbers<[1], [0], [0], [1], [0, 0, 1, 1], [], []>} : vector<4x4xf32>, vector<4x32xf32>, vector<4x32xf32> -> vector<4x32xf32>
    %c1_92 = arith.constant 1 : index
    %c0_93 = arith.constant 0 : index
    %c0_94 = arith.constant 0 : index
    %199 = vector.load %arg8[%c1_92, %c0_93, %c0_94] : memref<3x32x32xf32, #tpu.memory_space<vmem>>, vector<1x32x32xf32>
    %200 = vector.shape_cast %199 : vector<1x32x32xf32> to vector<32x32xf32>
    %cst_95 = arith.constant dense<0.000000e+00> : vector<4x32xf32>
    %201 = tpu.matmul %198, %200, %cst_95 {dimension_numbers = #tpu.dot_dimension_numbers<[1], [0], [0], [1], [0, 0, 1, 1], [], []>} : vector<4x32xf32>, vector<32x32xf32>, vector<4x32xf32> -> vector<4x32xf32>
    %202 = arith.addf %188, %201 : vector<4x32xf32>
    %203 = tpu.iota {dimensions = array<i32: 0>} : vector<4x4xi32>
    %204 = tpu.iota {dimensions = array<i32: 1>} : vector<4x4xi32>
    %c1_i32_96 = arith.constant 1 : i32
    %205 = vector.broadcast %c1_i32_96 : i32 to vector<4x4xi32>
    %206 = arith.muli %205, %203 : vector<4x4xi32>
    %c1_i32_97 = arith.constant 1 : i32
    %207 = vector.broadcast %c1_i32_97 : i32 to vector<4x4xi32>
    %208 = arith.addi %206, %207 : vector<4x4xi32>
    %209 = arith.cmpi eq, %204, %208 : vector<4x4xi32>
    %210 = arith.extui %209 : vector<4x4xi1> to vector<4x4xi32>
    %211 = arith.sitofp %210 : vector<4x4xi32> to vector<4x4xf32>
    %cst_98 = arith.constant dense<0.000000e+00> : vector<4x32xf32>
    %212 = tpu.matmul %211, %175, %cst_98 {dimension_numbers = #tpu.dot_dimension_numbers<[1], [0], [0], [1], [0, 0, 1, 1], [], []>} : vector<4x4xf32>, vector<4x32xf32>, vector<4x32xf32> -> vector<4x32xf32>
    %c2_99 = arith.constant 2 : index
    %c0_100 = arith.constant 0 : index
    %c0_101 = arith.constant 0 : index
    %213 = vector.load %arg8[%c2_99, %c0_100, %c0_101] : memref<3x32x32xf32, #tpu.memory_space<vmem>>, vector<1x32x32xf32>
    %214 = vector.shape_cast %213 : vector<1x32x32xf32> to vector<32x32xf32>
    %cst_102 = arith.constant dense<0.000000e+00> : vector<4x32xf32>
    %215 = tpu.matmul %212, %214, %cst_102 {dimension_numbers = #tpu.dot_dimension_numbers<[1], [0], [0], [1], [0, 0, 1, 1], [], []>} : vector<4x32xf32>, vector<32x32xf32>, vector<4x32xf32> -> vector<4x32xf32>
    %216 = arith.addf %202, %215 : vector<4x32xf32>
    %c0_103 = arith.constant 0 : index
    %c0_104 = arith.constant 0 : index
    %217 = vector.load %arg9[%c0_103, %c0_104] : memref<1x32xf32, #tpu.memory_space<vmem>>, vector<1x32xf32>
    %218 = vector.broadcast %217 : vector<1x32xf32> to vector<4x32xf32>
    %219 = arith.addf %216, %218 : vector<4x32xf32>
    %cst_105 = arith.constant 0.000000e+00 : f32
    %220 = vector.broadcast %cst_105 : f32 to vector<4x32xf32>
    %221 = arith.maximumf %219, %220 : vector<4x32xf32>
    %222 = tpu.iota {dimensions = array<i32: 0>} : vector<4x4xi32>
    %223 = tpu.iota {dimensions = array<i32: 1>} : vector<4x4xi32>
    %cst_106 = arith.constant 0.000000e+00 : f32
    %224 = vector.broadcast %cst_106 : f32 to vector<4x4xf32>
    %c0_i32_107 = arith.constant 0 : i32
    %225 = vector.broadcast %c0_i32_107 : i32 to vector<4x4xi32>
    %226 = arith.cmpi eq, %222, %225 : vector<4x4xi32>
    %c0_i32_108 = arith.constant 0 : i32
    %227 = vector.broadcast %c0_i32_108 : i32 to vector<4x4xi32>
    %228 = arith.cmpi sge, %223, %227 : vector<4x4xi32>
    %229 = arith.andi %226, %228 : vector<4x4xi1>
    %c1_i32_109 = arith.constant 1 : i32
    %230 = vector.broadcast %c1_i32_109 : i32 to vector<4x4xi32>
    %231 = arith.cmpi slt, %223, %230 : vector<4x4xi32>
    %232 = arith.andi %229, %231 : vector<4x4xi1>
    %cst_110 = arith.constant 1.000000e+00 : f32
    %cst_111 = arith.constant 0.000000e+00 : f32
    %233 = vector.broadcast %cst_110 : f32 to vector<4x4xf32>
    %234 = vector.broadcast %cst_111 : f32 to vector<4x4xf32>
    %235 = arith.select %232, %233, %234 : vector<4x4xi1>, vector<4x4xf32>
    %236 = arith.addf %224, %235 : vector<4x4xf32>
    %c1_i32_112 = arith.constant 1 : i32
    %237 = vector.broadcast %c1_i32_112 : i32 to vector<4x4xi32>
    %238 = arith.cmpi eq, %222, %237 : vector<4x4xi32>
    %c1_i32_113 = arith.constant 1 : i32
    %239 = vector.broadcast %c1_i32_113 : i32 to vector<4x4xi32>
    %240 = arith.cmpi sge, %223, %239 : vector<4x4xi32>
    %241 = arith.andi %238, %240 : vector<4x4xi1>
    %c2_i32_114 = arith.constant 2 : i32
    %242 = vector.broadcast %c2_i32_114 : i32 to vector<4x4xi32>
    %243 = arith.cmpi slt, %223, %242 : vector<4x4xi32>
    %244 = arith.andi %241, %243 : vector<4x4xi1>
    %cst_115 = arith.constant 1.000000e+00 : f32
    %cst_116 = arith.constant 0.000000e+00 : f32
    %245 = vector.broadcast %cst_115 : f32 to vector<4x4xf32>
    %246 = vector.broadcast %cst_116 : f32 to vector<4x4xf32>
    %247 = arith.select %244, %245, %246 : vector<4x4xi1>, vector<4x4xf32>
    %248 = arith.addf %236, %247 : vector<4x4xf32>
    %c2_i32_117 = arith.constant 2 : i32
    %249 = vector.broadcast %c2_i32_117 : i32 to vector<4x4xi32>
    %250 = arith.cmpi eq, %222, %249 : vector<4x4xi32>
    %c2_i32_118 = arith.constant 2 : i32
    %251 = vector.broadcast %c2_i32_118 : i32 to vector<4x4xi32>
    %252 = arith.cmpi sge, %223, %251 : vector<4x4xi32>
    %253 = arith.andi %250, %252 : vector<4x4xi1>
    %c3_i32 = arith.constant 3 : i32
    %254 = vector.broadcast %c3_i32 : i32 to vector<4x4xi32>
    %255 = arith.cmpi slt, %223, %254 : vector<4x4xi32>
    %256 = arith.andi %253, %255 : vector<4x4xi1>
    %cst_119 = arith.constant 1.000000e+00 : f32
    %cst_120 = arith.constant 0.000000e+00 : f32
    %257 = vector.broadcast %cst_119 : f32 to vector<4x4xf32>
    %258 = vector.broadcast %cst_120 : f32 to vector<4x4xf32>
    %259 = arith.select %256, %257, %258 : vector<4x4xi1>, vector<4x4xf32>
    %260 = arith.addf %248, %259 : vector<4x4xf32>
    %c3_i32_121 = arith.constant 3 : i32
    %261 = vector.broadcast %c3_i32_121 : i32 to vector<4x4xi32>
    %262 = arith.cmpi eq, %222, %261 : vector<4x4xi32>
    %c3_i32_122 = arith.constant 3 : i32
    %263 = vector.broadcast %c3_i32_122 : i32 to vector<4x4xi32>
    %264 = arith.cmpi sge, %223, %263 : vector<4x4xi32>
    %265 = arith.andi %262, %264 : vector<4x4xi1>
    %c4_i32 = arith.constant 4 : i32
    %266 = vector.broadcast %c4_i32 : i32 to vector<4x4xi32>
    %267 = arith.cmpi slt, %223, %266 : vector<4x4xi32>
    %268 = arith.andi %265, %267 : vector<4x4xi1>
    %cst_123 = arith.constant 1.000000e+00 : f32
    %cst_124 = arith.constant 0.000000e+00 : f32
    %269 = vector.broadcast %cst_123 : f32 to vector<4x4xf32>
    %270 = vector.broadcast %cst_124 : f32 to vector<4x4xf32>
    %271 = arith.select %268, %269, %270 : vector<4x4xi1>, vector<4x4xf32>
    %272 = arith.addf %260, %271 : vector<4x4xf32>
    %cst_125 = arith.constant dense<0.000000e+00> : vector<4x32xf32>
    %273 = tpu.matmul %272, %221, %cst_125 {dimension_numbers = #tpu.dot_dimension_numbers<[1], [0], [0], [1], [0, 0, 1, 1], [], []>} : vector<4x4xf32>, vector<4x32xf32>, vector<4x32xf32> -> vector<4x32xf32>
    %274 = vector.extract_strided_slice %273 {offsets = [0, 0], sizes = [1, 32], strides = [1, 1]} : vector<4x32xf32> to vector<1x32xf32>
    %c0_126 = arith.constant 0 : index
    %c0_127 = arith.constant 0 : index
    %c0_128 = arith.constant 0 : index
    %275 = vector.load %arg10[%c0_126, %c0_127, %c0_128] : memref<4x32x32xf32, #tpu.memory_space<vmem>>, vector<1x32x32xf32>
    %276 = vector.shape_cast %275 : vector<1x32x32xf32> to vector<32x32xf32>
    %cst_129 = arith.constant dense<0.000000e+00> : vector<1x32xf32>
    %277 = tpu.matmul %274, %276, %cst_129 {dimension_numbers = #tpu.dot_dimension_numbers<[1], [0], [0], [1], [0, 0, 1, 1], [], []>} : vector<1x32xf32>, vector<32x32xf32>, vector<1x32xf32> -> vector<1x32xf32>
    %278 = vector.extract_strided_slice %273 {offsets = [1, 0], sizes = [1, 32], strides = [1, 1]} : vector<4x32xf32> to vector<1x32xf32>
    %c1_130 = arith.constant 1 : index
    %c0_131 = arith.constant 0 : index
    %c0_132 = arith.constant 0 : index
    %279 = vector.load %arg10[%c1_130, %c0_131, %c0_132] : memref<4x32x32xf32, #tpu.memory_space<vmem>>, vector<1x32x32xf32>
    %280 = vector.shape_cast %279 : vector<1x32x32xf32> to vector<32x32xf32>
    %cst_133 = arith.constant dense<0.000000e+00> : vector<1x32xf32>
    %281 = tpu.matmul %278, %280, %cst_133 {dimension_numbers = #tpu.dot_dimension_numbers<[1], [0], [0], [1], [0, 0, 1, 1], [], []>} : vector<1x32xf32>, vector<32x32xf32>, vector<1x32xf32> -> vector<1x32xf32>
    %282 = arith.addf %277, %281 : vector<1x32xf32>
    %283 = vector.extract_strided_slice %273 {offsets = [2, 0], sizes = [1, 32], strides = [1, 1]} : vector<4x32xf32> to vector<1x32xf32>
    %c2_134 = arith.constant 2 : index
    %c0_135 = arith.constant 0 : index
    %c0_136 = arith.constant 0 : index
    %284 = vector.load %arg10[%c2_134, %c0_135, %c0_136] : memref<4x32x32xf32, #tpu.memory_space<vmem>>, vector<1x32x32xf32>
    %285 = vector.shape_cast %284 : vector<1x32x32xf32> to vector<32x32xf32>
    %cst_137 = arith.constant dense<0.000000e+00> : vector<1x32xf32>
    %286 = tpu.matmul %283, %285, %cst_137 {dimension_numbers = #tpu.dot_dimension_numbers<[1], [0], [0], [1], [0, 0, 1, 1], [], []>} : vector<1x32xf32>, vector<32x32xf32>, vector<1x32xf32> -> vector<1x32xf32>
    %287 = arith.addf %282, %286 : vector<1x32xf32>
    %288 = vector.extract_strided_slice %273 {offsets = [3, 0], sizes = [1, 32], strides = [1, 1]} : vector<4x32xf32> to vector<1x32xf32>
    %c3_138 = arith.constant 3 : index
    %c0_139 = arith.constant 0 : index
    %c0_140 = arith.constant 0 : index
    %289 = vector.load %arg10[%c3_138, %c0_139, %c0_140] : memref<4x32x32xf32, #tpu.memory_space<vmem>>, vector<1x32x32xf32>
    %290 = vector.shape_cast %289 : vector<1x32x32xf32> to vector<32x32xf32>
    %cst_141 = arith.constant dense<0.000000e+00> : vector<1x32xf32>
    %291 = tpu.matmul %288, %290, %cst_141 {dimension_numbers = #tpu.dot_dimension_numbers<[1], [0], [0], [1], [0, 0, 1, 1], [], []>} : vector<1x32xf32>, vector<32x32xf32>, vector<1x32xf32> -> vector<1x32xf32>
    %292 = arith.addf %287, %291 : vector<1x32xf32>
    %c0_142 = arith.constant 0 : index
    %c0_143 = arith.constant 0 : index
    %293 = vector.load %arg11[%c0_142, %c0_143] : memref<1x32xf32, #tpu.memory_space<vmem>>, vector<1x32xf32>
    %294 = arith.addf %292, %293 : vector<1x32xf32>
    %cst_144 = arith.constant 0.000000e+00 : f32
    %295 = vector.broadcast %cst_144 : f32 to vector<1x32xf32>
    %296 = arith.maximumf %294, %295 : vector<1x32xf32>
    %c0_145 = arith.constant 0 : index
    %c0_146 = arith.constant 0 : index
    %297 = vector.load %arg12[%c0_145, %c0_146] : memref<32x16xf32, #tpu.memory_space<vmem>>, vector<32x16xf32>
    %cst_147 = arith.constant dense<0.000000e+00> : vector<1x16xf32>
    %298 = tpu.matmul %296, %297, %cst_147 {dimension_numbers = #tpu.dot_dimension_numbers<[1], [0], [0], [1], [0, 0, 1, 1], [], []>} : vector<1x32xf32>, vector<32x16xf32>, vector<1x16xf32> -> vector<1x16xf32>
    %c0_148 = arith.constant 0 : index
    %c0_149 = arith.constant 0 : index
    %299 = vector.load %arg13[%c0_148, %c0_149] : memref<1x16xf32, #tpu.memory_space<vmem>>, vector<1x16xf32>
    %300 = arith.addf %298, %299 : vector<1x16xf32>
    %cst_150 = arith.constant 0.000000e+00 : f32
    %301 = vector.broadcast %cst_150 : f32 to vector<1x16xf32>
    %302 = arith.maximumf %300, %301 : vector<1x16xf32>
    %c0_151 = arith.constant 0 : index
    %c0_152 = arith.constant 0 : index
    %303 = vector.load %arg14[%c0_151, %c0_152] : memref<16x3xf32, #tpu.memory_space<vmem>>, vector<16x3xf32>
    %cst_153 = arith.constant dense<0.000000e+00> : vector<1x3xf32>
    %304 = tpu.matmul %302, %303, %cst_153 {dimension_numbers = #tpu.dot_dimension_numbers<[1], [0], [0], [1], [0, 0, 1, 1], [], []>} : vector<1x16xf32>, vector<16x3xf32>, vector<1x3xf32> -> vector<1x3xf32>
    %c0_154 = arith.constant 0 : index
    %c0_155 = arith.constant 0 : index
    %305 = vector.load %arg15[%c0_154, %c0_155] : memref<1x3xf32, #tpu.memory_space<vmem>>, vector<1x3xf32>
    %306 = arith.addf %304, %305 : vector<1x3xf32>
    %c0_156 = arith.constant 0 : index
    %c0_157 = arith.constant 0 : index
    %c0_158 = arith.constant 0 : index
    %307 = vector.load %arg16[%c0_156, %c0_157, %c0_158] : memref<1x1x3xf32, #tpu.memory_space<vmem>>, vector<1x1x3xf32>
    %308 = vector.shape_cast %307 : vector<1x1x3xf32> to vector<1x3xf32>
    %309 = vector.shape_cast %306 : vector<1x3xf32> to vector<1x1x3xf32>
    tpu.vector_store %arg16[%c0_156, %c0_157, %c0_158], %309 {strides = array<i32>} : memref<1x1x3xf32, #tpu.memory_space<vmem>>, vector<1x1x3xf32>,
    return
  }
  func.func @transform_0(%arg0: i32) -> (i32, i32, i32) {
    %c0_i32 = arith.constant 0 : i32
    %c0_i32_0 = arith.constant 0 : i32
    %c0_i32_1 = arith.constant 0 : i32
    return %arg0, %c0_i32, %c0_i32_0 : i32, i32, i32
  }
  func.func @transform_1(%arg0: i32) -> (i32, i32, i32) {
    %c0_i32 = arith.constant 0 : i32
    %c0_i32_0 = arith.constant 0 : i32
    %c0_i32_1 = arith.constant 0 : i32
    %c0_i32_2 = arith.constant 0 : i32
    return %c0_i32, %c0_i32_0, %c0_i32_1 : i32, i32, i32
  }
  func.func @transform_2(%arg0: i32) -> (i32, i32) {
    %c0_i32 = arith.constant 0 : i32
    %c0_i32_0 = arith.constant 0 : i32
    %c0_i32_1 = arith.constant 0 : i32
    return %c0_i32, %c0_i32_0 : i32, i32
  }
  func.func @transform_3(%arg0: i32) -> (i32, i32, i32) {
    %c0_i32 = arith.constant 0 : i32
    %c0_i32_0 = arith.constant 0 : i32
    %c0_i32_1 = arith.constant 0 : i32
    %c0_i32_2 = arith.constant 0 : i32
    return %c0_i32, %c0_i32_0, %c0_i32_1 : i32, i32, i32
  }
  func.func @transform_4(%arg0: i32) -> (i32, i32) {
    %c0_i32 = arith.constant 0 : i32
    %c0_i32_0 = arith.constant 0 : i32
    %c0_i32_1 = arith.constant 0 : i32
    return %c0_i32, %c0_i32_0 : i32, i32
  }
  func.func @transform_5(%arg0: i32) -> (i32, i32, i32) {
    %c0_i32 = arith.constant 0 : i32
    %c0_i32_0 = arith.constant 0 : i32
    %c0_i32_1 = arith.constant 0 : i32
    %c0_i32_2 = arith.constant 0 : i32
    return %c0_i32, %c0_i32_0, %c0_i32_1 : i32, i32, i32
  }
  func.func @transform_6(%arg0: i32) -> (i32, i32) {
    %c0_i32 = arith.constant 0 : i32
    %c0_i32_0 = arith.constant 0 : i32
    %c0_i32_1 = arith.constant 0 : i32
    return %c0_i32, %c0_i32_0 : i32, i32
  }
  func.func @transform_7(%arg0: i32) -> (i32, i32, i32) {
    %c0_i32 = arith.constant 0 : i32
    %c0_i32_0 = arith.constant 0 : i32
    %c0_i32_1 = arith.constant 0 : i32
    %c0_i32_2 = arith.constant 0 : i32
    return %c0_i32, %c0_i32_0, %c0_i32_1 : i32, i32, i32
  }
  func.func @transform_8(%arg0: i32) -> (i32, i32) {
    %c0_i32 = arith.constant 0 : i32
    %c0_i32_0 = arith.constant 0 : i32
    %c0_i32_1 = arith.constant 0 : i32
    return %c0_i32, %c0_i32_0 : i32, i32
  }
  func.func @transform_9(%arg0: i32) -> (i32, i32, i32) {
    %c0_i32 = arith.constant 0 : i32
    %c0_i32_0 = arith.constant 0 : i32
    %c0_i32_1 = arith.constant 0 : i32
    %c0_i32_2 = arith.constant 0 : i32
    return %c0_i32, %c0_i32_0, %c0_i32_1 : i32, i32, i32
  }
  func.func @transform_10(%arg0: i32) -> (i32, i32) {
    %c0_i32 = arith.constant 0 : i32
    %c0_i32_0 = arith.constant 0 : i32
    %c0_i32_1 = arith.constant 0 : i32
    return %c0_i32, %c0_i32_0 : i32, i32
  }
  func.func @transform_11(%arg0: i32) -> (i32, i32) {
    %c0_i32 = arith.constant 0 : i32
    %c0_i32_0 = arith.constant 0 : i32
    %c0_i32_1 = arith.constant 0 : i32
    return %c0_i32, %c0_i32_0 : i32, i32
  }
  func.func @transform_12(%arg0: i32) -> (i32, i32) {
    %c0_i32 = arith.constant 0 : i32
    %c0_i32_0 = arith.constant 0 : i32
    %c0_i32_1 = arith.constant 0 : i32
    return %c0_i32, %c0_i32_0 : i32, i32
  }
  func.func @transform_13(%arg0: i32) -> (i32, i32) {
    %c0_i32 = arith.constant 0 : i32
    %c0_i32_0 = arith.constant 0 : i32
    %c0_i32_1 = arith.constant 0 : i32
    return %c0_i32, %c0_i32_0 : i32, i32
  }
  func.func @transform_14(%arg0: i32) -> (i32, i32) {
    %c0_i32 = arith.constant 0 : i32
    %c0_i32_0 = arith.constant 0 : i32
    %c0_i32_1 = arith.constant 0 : i32
    return %c0_i32, %c0_i32_0 : i32, i32
  }
  func.func @transform_15(%arg0: i32) -> (i32, i32, i32) {
    %c0_i32 = arith.constant 0 : i32
    %c0_i32_0 = arith.constant 0 : i32
    %c0_i32_1 = arith.constant 0 : i32
    return %arg0, %c0_i32, %c0_i32_0 : i32, i32, i32
  }
}

</mosaic_0001>

<llo_original>
// kernel: cnn_16khz_seg_forward.1
$region0: #{cnn_16khz_seg_forward.1}
  #allocation0 [shape = 'u32[]', space=smem, size = 0x4, offset = 0x4, fixed_abs, tag = 'smem constant byte address 0x4 - core index']
  #allocation1 [shape = 'u32[144,128]{1,0:T(1,128)}', space=vmem, size = 0x12000, scoped, tag = 'internal scratch']
  %s0 = inlined_call_operand.vmem [shape: bf16[2,30,100], index: 0, kind: input, shape index: {}]
  %s1 = inlined_call_operand.vmem [shape: bf16[3,100,8], index: 1, kind: input, shape index: {}]
  %s2 = inlined_call_operand.vmem [shape: f32[1,8], index: 2, kind: input, shape index: {}]
  %s3 = inlined_call_operand.vmem [shape: f32[5,8,16], index: 3, kind: input, shape index: {}]
  %s4 = inlined_call_operand.vmem [shape: f32[1,16], index: 4, kind: input, shape index: {}]
  %s5 = inlined_call_operand.vmem [shape: f32[4,16,32], index: 5, kind: input, shape index: {}]
  %s6 = inlined_call_operand.vmem [shape: f32[1,32], index: 6, kind: input, shape index: {}]
  %s7 = inlined_call_operand.vmem [shape: f32[3,32,32], index: 7, kind: input, shape index: {}]
  %s8 = inlined_call_operand.vmem [shape: f32[1,32], index: 8, kind: input, shape index: {}]
  %s9 = inlined_call_operand.vmem [shape: f32[4,32,32], index: 9, kind: input, shape index: {}]
  %s10 = inlined_call_operand.vmem [shape: f32[1,32], index: 10, kind: input, shape index: {}]
  %s11 = inlined_call_operand.vmem [shape: f32[32,16], index: 11, kind: input, shape index: {}]
  %s12 = inlined_call_operand.vmem [shape: f32[1,16], index: 12, kind: input, shape index: {}]
  %s13 = inlined_call_operand.vmem [shape: f32[16,3], index: 13, kind: input, shape index: {}]
  %s14 = inlined_call_operand.vmem [shape: f32[1,3], index: 14, kind: input, shape index: {}]
  %s15 = inlined_call_operand.hbm [shape: f32[2,1,3], index: 15, kind: output, shape index: {}]
  %s16 = sld [smem:[#allocation0]]
  $region93: #{cnn_16khz_seg_forward.1} parent=0
    _
  %s18 = ssub.s32 1, %s16
  %s19 = scalar_select 0, %s18, %s16
  $region1: #{cnn_16khz_seg_forward.1} parent=0
    #allocation2 [shape = 'u8[1024]{0}', space=vmem, size = 0x400, scoped, tag = 'output window, operand 0']
    #allocation3 [shape = 's32[2]{0}', space=sflag, size = 0x8, scoped, tag = 'scoped memory for cnn_16khz_seg_forward.1']
    %20 = vsyncpa [#allocation3], 0
    %s21 = scalar_lea.sflag [#allocation3], 1
    %22 = vsyncpa %s21, 0
    loop: start=0, step=1, limit=4
    $region2: #{cnn_16khz_seg_forward.1} parent=1 // loop_pre_header
      _
    $region3: #{cnn_16khz_seg_forward.1} parent=1 // loop_header
      %s24 = sphi 0, %s28
      %p25 = scmp.ge.s32.totalorder %s24, 4
      %s34 = sphi 0, %s36
      %s37 = sphi 0, %s34
      %s38 = sphi 0, %s37
      %s54 = sphi 0, %s38
      %s58 = sphi 0, %s58
      %s60 = sphi 0, %s58
      %s61 = sphi 0, %s60
      %s75 = sphi 0, %s61
      %s79 = sphi 0, %s79
      %s81 = sphi 0, %s79
      %s82 = sphi 0, %s81
      %s96 = sphi 0, %s82
      %s100 = sphi 0, %s100
      %s102 = sphi 0, %s100
      %s103 = sphi 0, %s102
      %s117 = sphi 0, %s103
      %s121 = sphi 0, %s121
      %s123 = sphi 0, %s121
      %s124 = sphi 0, %s123
      %s138 = sphi 0, %s124
      %s142 = sphi 0, %s142
      %s144 = sphi 0, %s142
      %s145 = sphi 0, %s144
      %s159 = sphi 0, %s145
      %s163 = sphi 0, %s163
      %s165 = sphi 0, %s163
      %s166 = sphi 0, %s165
      %s180 = sphi 0, %s166
      %s184 = sphi 0, %s184
      %s186 = sphi 0, %s184
      %s187 = sphi 0, %s186
      %s201 = sphi 0, %s187
      %s205 = sphi 0, %s205
      %s207 = sphi 0, %s205
      %s208 = sphi 0, %s207
      %s222 = sphi 0, %s208
      %s226 = sphi 0, %s226
      %s228 = sphi 0, %s226
      %s229 = sphi 0, %s228
      %s243 = sphi 0, %s229
      %s247 = sphi 0, %s247
      %s249 = sphi 0, %s247
      %s250 = sphi 0, %s249
      %s264 = sphi 0, %s250
      %s268 = sphi 0, %s268
      %s270 = sphi 0, %s268
      %s271 = sphi 0, %s270
      %s285 = sphi 0, %s271
      %s289 = sphi 0, %s289
      %s291 = sphi 0, %s289
      %s292 = sphi 0, %s291
      %s306 = sphi 0, %s292
      %s310 = sphi 0, %s310
      %s312 = sphi 0, %s310
      %s313 = sphi 0, %s312
      %s327 = sphi 0, %s313
      %s331 = sphi 0, %s331
      %s333 = sphi 0, %s331
      %s334 = sphi 0, %s333
      %s348 = sphi 0, %s334
      %s354 = sphi 0, %s356
      %s357 = sphi 0, %s354
      %s358 = sphi 0, %s357
      %s374 = sphi 0, %s358
    $region4: #{cnn_16khz_seg_forward.1} parent=1 // loop_header_branch
      %27 = sbr.rel (%p25) target = $region8
    $region5: #{cnn_16khz_seg_forward.1} parent=1 // loop_body
      %s29 = ssub.s32 %s24, 1
      %s30 = ssub.s32 %s24, 2
      %s31 = sadd.s32 %s24, 1
      %s32 = ssub.s32 %s24, %s31
      %p33 = scmp.eq.s32.totalorder %s32, 0
      %s35 = sadd.s32 %s34, 1
      %s36 = scalar_select %p33, %s34, %s35
      %p39 = pneg %p33
      %p40 = scmp.eq.s32.totalorder %s24, 1
      %p41 = por %p39, %p40
      %p42 = scmp.ne.s32.totalorder %s34, %s37
      %p43 = scmp.eq.s32.totalorder %s24, 0
      %p44 = por %p42, %p43
      %p45 = scmp.ne.s32.totalorder %s34, %s37
      %p46 = scmp.eq.s32.totalorder %s29, 1
      %p47 = por %p45, %p46
      %p48 = scmp.ne.s32.totalorder %s37, %s38
      %p49 = scmp.eq.s32.totalorder %s29, 0
      %p50 = por %p48, %p49
      %p51 = scmp.ne.s32.totalorder %s37, %s38
      %p52 = scmp.eq.s32.totalorder %s30, 1
      %p53 = por %p51, %p52
      %p55 = scmp.ne.s32.totalorder %s38, %s54
      %p56 = scmp.eq.s32.totalorder %s30, 0
      %p57 = por %p55, %p56
      %s59 = sadd.s32 %s58, 1
      %p62 = scmp.eq.s32.totalorder %s24, 1
      %p63 = scmp.ne.s32.totalorder %s58, %s60
      %p64 = scmp.eq.s32.totalorder %s24, 0
      %p65 = por %p63, %p64
      %p66 = scmp.ne.s32.totalorder %s58, %s60
      %p67 = scmp.eq.s32.totalorder %s29, 1
      %p68 = por %p66, %p67
      %p69 = scmp.ne.s32.totalorder %s60, %s61
      %p70 = scmp.eq.s32.totalorder %s29, 0
      %p71 = por %p69, %p70
      %p72 = scmp.ne.s32.totalorder %s60, %s61
      %p73 = scmp.eq.s32.totalorder %s30, 1
      %p74 = por %p72, %p73
      %p76 = scmp.ne.s32.totalorder %s61, %s75
      %p77 = scmp.eq.s32.totalorder %s30, 0
      %p78 = por %p76, %p77
      %s80 = sadd.s32 %s79, 1
      %p83 = scmp.eq.s32.totalorder %s24, 1
      %p84 = scmp.ne.s32.totalorder %s79, %s81
      %p85 = scmp.eq.s32.totalorder %s24, 0
      %p86 = por %p84, %p85
      %p87 = scmp.ne.s32.totalorder %s79, %s81
      %p88 = scmp.eq.s32.totalorder %s29, 1
      %p89 = por %p87, %p88
      %p90 = scmp.ne.s32.totalorder %s81, %s82
      %p91 = scmp.eq.s32.totalorder %s29, 0
      %p92 = por %p90, %p91
      %p93 = scmp.ne.s32.totalorder %s81, %s82
      %p94 = scmp.eq.s32.totalorder %s30, 1
      %p95 = por %p93, %p94
      %p97 = scmp.ne.s32.totalorder %s82, %s96
      %p98 = scmp.eq.s32.totalorder %s30, 0
      %p99 = por %p97, %p98
      %s101 = sadd.s32 %s100, 1
      %p104 = scmp.eq.s32.totalorder %s24, 1
      %p105 = scmp.ne.s32.totalorder %s100, %s102
      %p106 = scmp.eq.s32.totalorder %s24, 0
      %p107 = por %p105, %p106
      %p108 = scmp.ne.s32.totalorder %s100, %s102
      %p109 = scmp.eq.s32.totalorder %s29, 1
      %p110 = por %p108, %p109
      %p111 = scmp.ne.s32.totalorder %s102, %s103
      %p112 = scmp.eq.s32.totalorder %s29, 0
      %p113 = por %p111, %p112
      %p114 = scmp.ne.s32.totalorder %s102, %s103
      %p115 = scmp.eq.s32.totalorder %s30, 1
      %p116 = por %p114, %p115
      %p118 = scmp.ne.s32.totalorder %s103, %s117
      %p119 = scmp.eq.s32.totalorder %s30, 0
      %p120 = por %p118, %p119
      %s122 = sadd.s32 %s121, 1
      %p125 = scmp.eq.s32.totalorder %s24, 1
      %p126 = scmp.ne.s32.totalorder %s121, %s123
      %p127 = scmp.eq.s32.totalorder %s24, 0
      %p128 = por %p126, %p127
      %p129 = scmp.ne.s32.totalorder %s121, %s123
      %p130 = scmp.eq.s32.totalorder %s29, 1
      %p131 = por %p129, %p130
      %p132 = scmp.ne.s32.totalorder %s123, %s124
      %p133 = scmp.eq.s32.totalorder %s29, 0
      %p134 = por %p132, %p133
      %p135 = scmp.ne.s32.totalorder %s123, %s124
      %p136 = scmp.eq.s32.totalorder %s30, 1
      %p137 = por %p135, %p136
      %p139 = scmp.ne.s32.totalorder %s124, %s138
      %p140 = scmp.eq.s32.totalorder %s30, 0
      %p141 = por %p139, %p140
      %s143 = sadd.s32 %s142, 1
      %p146 = scmp.eq.s32.totalorder %s24, 1
      %p147 = scmp.ne.s32.totalorder %s142, %s144
      %p148 = scmp.eq.s32.totalorder %s24, 0
      %p149 = por %p147, %p148
      %p150 = scmp.ne.s32.totalorder %s142, %s144
      %p151 = scmp.eq.s32.totalorder %s29, 1
      %p152 = por %p150, %p151
      %p153 = scmp.ne.s32.totalorder %s144, %s145
      %p154 = scmp.eq.s32.totalorder %s29, 0
      %p155 = por %p153, %p154
      %p156 = scmp.ne.s32.totalorder %s144, %s145
      %p157 = scmp.eq.s32.totalorder %s30, 1
      %p158 = por %p156, %p157
      %p160 = scmp.ne.s32.totalorder %s145, %s159
      %p161 = scmp.eq.s32.totalorder %s30, 0
      %p162 = por %p160, %p161
      %s164 = sadd.s32 %s163, 1
      %p167 = scmp.eq.s32.totalorder %s24, 1
      %p168 = scmp.ne.s32.totalorder %s163, %s165
      %p169 = scmp.eq.s32.totalorder %s24, 0
      %p170 = por %p168, %p169
      %p171 = scmp.ne.s32.totalorder %s163, %s165
      %p172 = scmp.eq.s32.totalorder %s29, 1
      %p173 = por %p171, %p172
      %p174 = scmp.ne.s32.totalorder %s165, %s166
      %p175 = scmp.eq.s32.totalorder %s29, 0
      %p176 = por %p174, %p175
      %p177 = scmp.ne.s32.totalorder %s165, %s166
      %p178 = scmp.eq.s32.totalorder %s30, 1
      %p179 = por %p177, %p178
      %p181 = scmp.ne.s32.totalorder %s166, %s180
      %p182 = scmp.eq.s32.totalorder %s30, 0
      %p183 = por %p181, %p182
      %s185 = sadd.s32 %s184, 1
      %p188 = scmp.eq.s32.totalorder %s24, 1
      %p189 = scmp.ne.s32.totalorder %s184, %s186
      %p190 = scmp.eq.s32.totalorder %s24, 0
      %p191 = por %p189, %p190
      %p192 = scmp.ne.s32.totalorder %s184, %s186
      %p193 = scmp.eq.s32.totalorder %s29, 1
      %p194 = por %p192, %p193
      %p195 = scmp.ne.s32.totalorder %s186, %s187
      %p196 = scmp.eq.s32.totalorder %s29, 0
      %p197 = por %p195, %p196
      %p198 = scmp.ne.s32.totalorder %s186, %s187
      %p199 = scmp.eq.s32.totalorder %s30, 1
      %p200 = por %p198, %p199
      %p202 = scmp.ne.s32.totalorder %s187, %s201
      %p203 = scmp.eq.s32.totalorder %s30, 0
      %p204 = por %p202, %p203
      %s206 = sadd.s32 %s205, 1
      %p209 = scmp.eq.s32.totalorder %s24, 1
      %p210 = scmp.ne.s32.totalorder %s205, %s207
      %p211 = scmp.eq.s32.totalorder %s24, 0
      %p212 = por %p210, %p211
      %p213 = scmp.ne.s32.totalorder %s205, %s207
      %p214 = scmp.eq.s32.totalorder %s29, 1
      %p215 = por %p213, %p214
      %p216 = scmp.ne.s32.totalorder %s207, %s208
      %p217 = scmp.eq.s32.totalorder %s29, 0
      %p218 = por %p216, %p217
      %p219 = scmp.ne.s32.totalorder %s207, %s208
      %p220 = scmp.eq.s32.totalorder %s30, 1
      %p221 = por %p219, %p220
      %p223 = scmp.ne.s32.totalorder %s208, %s222
      %p224 = scmp.eq.s32.totalorder %s30, 0
      %p225 = por %p223, %p224
      %s227 = sadd.s32 %s226, 1
      %p230 = scmp.eq.s32.totalorder %s24, 1
      %p231 = scmp.ne.s32.totalorder %s226, %s228
      %p232 = scmp.eq.s32.totalorder %s24, 0
      %p233 = por %p231, %p232
      %p234 = scmp.ne.s32.totalorder %s226, %s228
      %p235 = scmp.eq.s32.totalorder %s29, 1
      %p236 = por %p234, %p235
      %p237 = scmp.ne.s32.totalorder %s228, %s229
      %p238 = scmp.eq.s32.totalorder %s29, 0
      %p239 = por %p237, %p238
      %p240 = scmp.ne.s32.totalorder %s228, %s229
      %p241 = scmp.eq.s32.totalorder %s30, 1
      %p242 = por %p240, %p241
      %p244 = scmp.ne.s32.totalorder %s229, %s243
      %p245 = scmp.eq.s32.totalorder %s30, 0
      %p246 = por %p244, %p245
      %s248 = sadd.s32 %s247, 1
      %p251 = scmp.eq.s32.totalorder %s24, 1
      %p252 = scmp.ne.s32.totalorder %s247, %s249
      %p253 = scmp.eq.s32.totalorder %s24, 0
      %p254 = por %p252, %p253
      %p255 = scmp.ne.s32.totalorder %s247, %s249
      %p256 = scmp.eq.s32.totalorder %s29, 1
      %p257 = por %p255, %p256
      %p258 = scmp.ne.s32.totalorder %s249, %s250
      %p259 = scmp.eq.s32.totalorder %s29, 0
      %p260 = por %p258, %p259
      %p261 = scmp.ne.s32.totalorder %s249, %s250
      %p262 = scmp.eq.s32.totalorder %s30, 1
      %p263 = por %p261, %p262
      %p265 = scmp.ne.s32.totalorder %s250, %s264
      %p266 = scmp.eq.s32.totalorder %s30, 0
      %p267 = por %p265, %p266
      %s269 = sadd.s32 %s268, 1
      %p272 = scmp.eq.s32.totalorder %s24, 1
      %p273 = scmp.ne.s32.totalorder %s268, %s270
      %p274 = scmp.eq.s32.totalorder %s24, 0
      %p275 = por %p273, %p274
      %p276 = scmp.ne.s32.totalorder %s268, %s270
      %p277 = scmp.eq.s32.totalorder %s29, 1
      %p278 = por %p276, %p277
      %p279 = scmp.ne.s32.totalorder %s270, %s271
      %p280 = scmp.eq.s32.totalorder %s29, 0
      %p281 = por %p279, %p280
      %p282 = scmp.ne.s32.totalorder %s270, %s271
      %p283 = scmp.eq.s32.totalorder %s30, 1
      %p284 = por %p282, %p283
      %p286 = scmp.ne.s32.totalorder %s271, %s285
      %p287 = scmp.eq.s32.totalorder %s30, 0
      %p288 = por %p286, %p287
      %s290 = sadd.s32 %s289, 1
      %p293 = scmp.eq.s32.totalorder %s24, 1
      %p294 = scmp.ne.s32.totalorder %s289, %s291
      %p295 = scmp.eq.s32.totalorder %s24, 0
      %p296 = por %p294, %p295
      %p297 = scmp.ne.s32.totalorder %s289, %s291
      %p298 = scmp.eq.s32.totalorder %s29, 1
      %p299 = por %p297, %p298
      %p300 = scmp.ne.s32.totalorder %s291, %s292
      %p301 = scmp.eq.s32.totalorder %s29, 0
      %p302 = por %p300, %p301
      %p303 = scmp.ne.s32.totalorder %s291, %s292
      %p304 = scmp.eq.s32.totalorder %s30, 1
      %p305 = por %p303, %p304
      %p307 = scmp.ne.s32.totalorder %s292, %s306
      %p308 = scmp.eq.s32.totalorder %s30, 0
      %p309 = por %p307, %p308
      %s311 = sadd.s32 %s310, 1
      %p314 = scmp.eq.s32.totalorder %s24, 1
      %p315 = scmp.ne.s32.totalorder %s310, %s312
      %p316 = scmp.eq.s32.totalorder %s24, 0
      %p317 = por %p315, %p316
      %p318 = scmp.ne.s32.totalorder %s310, %s312
      %p319 = scmp.eq.s32.totalorder %s29, 1
      %p320 = por %p318, %p319
      %p321 = scmp.ne.s32.totalorder %s312, %s313
      %p322 = scmp.eq.s32.totalorder %s29, 0
      %p323 = por %p321, %p322
      %p324 = scmp.ne.s32.totalorder %s312, %s313
      %p325 = scmp.eq.s32.totalorder %s30, 1
      %p326 = por %p324, %p325
      %p328 = scmp.ne.s32.totalorder %s313, %s327
      %p329 = scmp.eq.s32.totalorder %s30, 0
      %p330 = por %p328, %p329
      %s332 = sadd.s32 %s331, 1
      %p335 = scmp.eq.s32.totalorder %s24, 1
      %p336 = scmp.ne.s32.totalorder %s331, %s333
      %p337 = scmp.eq.s32.totalorder %s24, 0
      %p338 = por %p336, %p337
      %p339 = scmp.ne.s32.totalorder %s331, %s333
      %p340 = scmp.eq.s32.totalorder %s29, 1
      %p341 = por %p339, %p340
      %p342 = scmp.ne.s32.totalorder %s333, %s334
      %p343 = scmp.eq.s32.totalorder %s29, 0
      %p344 = por %p342, %p343
      %p345 = scmp.ne.s32.totalorder %s333, %s334
      %p346 = scmp.eq.s32.totalorder %s30, 1
      %p347 = por %p345, %p346
      %p349 = scmp.ne.s32.totalorder %s334, %s348
      %p350 = scmp.eq.s32.totalorder %s30, 0
      %p351 = por %p349, %p350
      %s352 = ssub.s32 %s24, %s31
      %p353 = scmp.eq.s32.totalorder %s352, 0
      %s355 = sadd.s32 %s354, 1
      %s356 = scalar_select %p353, %s354, %s355
      %p359 = pneg %p353
      %p360 = scmp.eq.s32.totalorder %s24, 1
      %p361 = por %p359, %p360
      %p362 = scmp.ne.s32.totalorder %s354, %s357
      %p363 = scmp.eq.s32.totalorder %s24, 0
      %p364 = por %p362, %p363
      %p365 = scmp.ne.s32.totalorder %s354, %s357
      %p366 = scmp.eq.s32.totalorder %s29, 1
      %p367 = por %p365, %p366
      %p368 = scmp.ne.s32.totalorder %s357, %s358
      %p369 = scmp.eq.s32.totalorder %s29, 0
      %p370 = por %p368, %p369
      %p371 = scmp.ne.s32.totalorder %s357, %s358
      %p372 = scmp.eq.s32.totalorder %s30, 1
      %p373 = por %p371, %p372
      %p375 = scmp.ne.s32.totalorder %s358, %s374
      %p376 = scmp.eq.s32.totalorder %s30, 0
      %p377 = por %p375, %p376
      %p378 = scmp.le.s32.totalorder 1, %s24
      %p379 = scmp.lt.s32.totalorder %s24, 3
      %p380 = pnand %p378, %p379
      %p381 = pneg %p380
      // Predicated region
      $region9: #{cnn_16khz_seg_forward.1} parent=5 // pred_check
        _
      $region10: #{cnn_16khz_seg_forward.1} parent=5 // pred_check_branch
        %383 = sbr.rel (%p380) target = $region12
      $region11: #{cnn_16khz_seg_forward.1} parent=5 // pred_region
        %s384 = ssub.s32 %s24, 1
        // Predicated region
        $region13: #{cnn_16khz_seg_forward.1} parent=11 // pred_check
          %p385 = pneg %p71
        $region14: #{cnn_16khz_seg_forward.1} parent=11 // pred_check_branch
          %387 = sbr.rel (%p385) target = $region16
        $region15: #{cnn_16khz_seg_forward.1} parent=11 // pred_region
          _
        $region16: #{cnn_16khz_seg_forward.1} parent=11 // pred_fallthru
          _
        // Predicated region
        $region17: #{cnn_16khz_seg_forward.1} parent=11 // pred_check
          %p388 = pneg %p92
        $region18: #{cnn_16khz_seg_forward.1} parent=11 // pred_check_branch
          %390 = sbr.rel (%p388) target = $region20
        $region19: #{cnn_16khz_seg_forward.1} parent=11 // pred_region
          _
        $region20: #{cnn_16khz_seg_forward.1} parent=11 // pred_fallthru
          _
        // Predicated region
        $region21: #{cnn_16khz_seg_forward.1} parent=11 // pred_check
          %p391 = pneg %p113
        $region22: #{cnn_16khz_seg_forward.1} parent=11 // pred_check_branch
          %393 = sbr.rel (%p391) target = $region24
        $region23: #{cnn_16khz_seg_forward.1} parent=11 // pred_region
          _
        $region24: #{cnn_16khz_seg_forward.1} parent=11 // pred_fallthru
          _
        // Predicated region
        $region25: #{cnn_16khz_seg_forward.1} parent=11 // pred_check
          %p394 = pneg %p134
        $region26: #{cnn_16khz_seg_forward.1} parent=11 // pred_check_branch
          %396 = sbr.rel (%p394) target = $region28
        $region27: #{cnn_16khz_seg_forward.1} parent=11 // pred_region
          _
        $region28: #{cnn_16khz_seg_forward.1} parent=11 // pred_fallthru
          _
        // Predicated region
        $region29: #{cnn_16khz_seg_forward.1} parent=11 // pred_check
          %p397 = pneg %p155
        $region30: #{cnn_16khz_seg_forward.1} parent=11 // pred_check_branch
          %399 = sbr.rel (%p397) target = $region32
        $region31: #{cnn_16khz_seg_forward.1} parent=11 // pred_region
          _
        $region32: #{cnn_16khz_seg_forward.1} parent=11 // pred_fallthru
          _
        // Predicated region
        $region33: #{cnn_16khz_seg_forward.1} parent=11 // pred_check
          %p400 = pneg %p176
        $region34: #{cnn_16khz_seg_forward.1} parent=11 // pred_check_branch
          %402 = sbr.rel (%p400) target = $region36
        $region35: #{cnn_16khz_seg_forward.1} parent=11 // pred_region
          _
        $region36: #{cnn_16khz_seg_forward.1} parent=11 // pred_fallthru
          _
        // Predicated region
        $region37: #{cnn_16khz_seg_forward.1} parent=11 // pred_check
          %p403 = pneg %p197
        $region38: #{cnn_16khz_seg_forward.1} parent=11 // pred_check_branch
          %405 = sbr.rel (%p403) target = $region40
        $region39: #{cnn_16khz_seg_forward.1} parent=11 // pred_region
          _
        $region40: #{cnn_16khz_seg_forward.1} parent=11 // pred_fallthru
          _
        // Predicated region
        $region41: #{cnn_16khz_seg_forward.1} parent=11 // pred_check
          %p406 = pneg %p218
        $region42: #{cnn_16khz_seg_forward.1} parent=11 // pred_check_branch
          %408 = sbr.rel (%p406) target = $region44
        $region43: #{cnn_16khz_seg_forward.1} parent=11 // pred_region
          _
        $region44: #{cnn_16khz_seg_forward.1} parent=11 // pred_fallthru
          _
        // Predicated region
        $region45: #{cnn_16khz_seg_forward.1} parent=11 // pred_check
          %p409 = pneg %p239
        $region46: #{cnn_16khz_seg_forward.1} parent=11 // pred_check_branch
          %411 = sbr.rel (%p409) target = $region48
        $region47: #{cnn_16khz_seg_forward.1} parent=11 // pred_region
          _
        $region48: #{cnn_16khz_seg_forward.1} parent=11 // pred_fallthru
          _
        // Predicated region
        $region49: #{cnn_16khz_seg_forward.1} parent=11 // pred_check
          %p412 = pneg %p260
        $region50: #{cnn_16khz_seg_forward.1} parent=11 // pred_check_branch
          %414 = sbr.rel (%p412) target = $region52
        $region51: #{cnn_16khz_seg_forward.1} parent=11 // pred_region
          _
        $region52: #{cnn_16khz_seg_forward.1} parent=11 // pred_fallthru
          _
        // Predicated region
        $region53: #{cnn_16khz_seg_forward.1} parent=11 // pred_check
          %p415 = pneg %p281
        $region54: #{cnn_16khz_seg_forward.1} parent=11 // pred_check_branch
          %417 = sbr.rel (%p415) target = $region56
        $region55: #{cnn_16khz_seg_forward.1} parent=11 // pred_region
          _
        $region56: #{cnn_16khz_seg_forward.1} parent=11 // pred_fallthru
          _
        // Predicated region
        $region57: #{cnn_16khz_seg_forward.1} parent=11 // pred_check
          %p418 = pneg %p302
        $region58: #{cnn_16khz_seg_forward.1} parent=11 // pred_check_branch
          %420 = sbr.rel (%p418) target = $region60
        $region59: #{cnn_16khz_seg_forward.1} parent=11 // pred_region
          _
        $region60: #{cnn_16khz_seg_forward.1} parent=11 // pred_fallthru
          _
        // Predicated region
        $region61: #{cnn_16khz_seg_forward.1} parent=11 // pred_check
          %p421 = pneg %p323
        $region62: #{cnn_16khz_seg_forward.1} parent=11 // pred_check_branch
          %423 = sbr.rel (%p421) target = $region64
        $region63: #{cnn_16khz_seg_forward.1} parent=11 // pred_region
          _
        $region64: #{cnn_16khz_seg_forward.1} parent=11 // pred_fallthru
          _
        // Predicated region
        $region65: #{cnn_16khz_seg_forward.1} parent=11 // pred_check
          %p424 = pneg %p344
        $region66: #{cnn_16khz_seg_forward.1} parent=11 // pred_check_branch
          %426 = sbr.rel (%p424) target = $region68
        $region67: #{cnn_16khz_seg_forward.1} parent=11 // pred_region
          _
        $region68: #{cnn_16khz_seg_forward.1} parent=11 // pred_fallthru
          _
      $region12: #{cnn_16khz_seg_forward.1} parent=5 // pred_fallthru
        _
      %p427 = scmp.lt.s32.totalorder %s24, 2
      // Predicated region
      $region69: #{cnn_16khz_seg_forward.1} parent=5 // pred_check
        %p428 = pneg %p427
      $region70: #{cnn_16khz_seg_forward.1} parent=5 // pred_check_branch
        %430 = sbr.rel (%p428) target = $region72
      $region71: #{cnn_16khz_seg_forward.1} parent=5 // pred_region
        // Predicated region
        $region73: #{cnn_16khz_seg_forward.1} parent=71 // pred_check
          %p431 = pneg %p44
        $region74: #{cnn_16khz_seg_forward.1} parent=71 // pred_check_branch
          %433 = sbr.rel (%p431) target = $region76
        $region75: #{cnn_16khz_seg_forward.1} parent=71 // pred_region
          %p434 = scmp.lt.s32.totalorder %s24, 1
          %s435 = scalar_select %p434, %s24, 1
          %s436 = smul.addr %s435, 4
          %s437 = smul.addr %s436, 4
          %s438 = scalar_lea.vmem %s0, %s437
        $region76: #{cnn_16khz_seg_forward.1} parent=71 // pred_fallthru
          _
      $region72: #{cnn_16khz_seg_forward.1} parent=5 // pred_fallthru
        _
      %p439 = scmp.le.s32.totalorder 1, %s24
      %p440 = scmp.lt.s32.totalorder %s24, 3
      %p441 = pnand %p439, %p440
      %p442 = pneg %p441
      // Predicated region
      $region77: #{cnn_16khz_seg_forward.1} parent=5 // pred_check
        _
      $region78: #{cnn_16khz_seg_forward.1} parent=5 // pred_check_branch
        %444 = sbr.rel (%p441) target = $region80
      $region79: #{cnn_16khz_seg_forward.1} parent=5 // pred_region
        %s445 = ssub.s32 %s24, 1
        %p446 = scmp.lt.s32.totalorder %s29, 1
        %s447 = scalar_select %p446, %s29, 1
        %s448 = smul.addr %s447, 4
        %s449 = smul.addr %s448, 4
        %s450 = scalar_lea.vmem %s0, %s449
        %p451 = pneg %p50
        %p452 = pneg %p47
        %p453 = pneg %p71
        %p454 = pneg %p68
        %p455 = pneg %p92
        %p456 = pneg %p89
        %p457 = pneg %p113
        %p458 = pneg %p110
        %p459 = pneg %p134
        %p460 = pneg %p131
        %p461 = pneg %p155
        %p462 = pneg %p152
        %p463 = pneg %p176
        %p464 = pneg %p173
        %p465 = pneg %p197
        %p466 = pneg %p194
        %p467 = pneg %p218
        %p468 = pneg %p215
        %p469 = pneg %p239
        %p470 = pneg %p236
        %p471 = pneg %p260
        %p472 = pneg %p257
        %p473 = pneg %p281
        %p474 = pneg %p278
        %p475 = pneg %p302
        %p476 = pneg %p299
        %p477 = pneg %p323
        %p478 = pneg %p320
        %p479 = pneg %p344
        %p480 = pneg %p341
        %p481 = pneg %p370
        %p482 = pneg %p367
        %s483 = sand.u32 %s357, 1
        %s484 = scalar_lea.sflag [#allocation3], %s483
        %s485 = sand.u32 %s357, 1
        %s486 = scalar_lea.vmem [#allocation2], %s485
        %p487 = scmp.lt.s32.totalorder %s29, 1
        %s488 = scalar_select %p487, %s29, 1
        %s489 = smul.addr %s488, 4
        %s490 = smul.addr %s489, 4
        %s491 = scalar_lea.vmem %s0, %s490
        %v493 = vld [vmem:[%s491] sm:$0xf]
        %v494 = vld [vmem:[%s491 + $0x4] sm:$0xf]
        %v495 = vld [vmem:[%s491 + $0x8] sm:$0xf]
        %v496 = vld [vmem:[%s491 + $0xc] sm:$0x7]
        %v497 = vld [vmem:[%s1] sm:$0xf]
        %v498 = vld [vmem:[%s1 + $0x4] sm:$0xf]
        %v499 = vld [vmem:[%s1 + $0x8] sm:$0xf]
        %v500 = vld [vmem:[%s1 + $0xc] sm:$0xf]
        %v501 = vld [vmem:[%s1 + $0x10] sm:$0xf]
        %v502 = vld [vmem:[%s1 + $0x14] sm:$0xf]
        %v503 = vld [vmem:[%s1 + $0x18] sm:$0xf]
        %v504 = vld [vmem:[%s1 + $0x1c] sm:$0xf]
        %v505 = vld [vmem:[%s1 + $0x20] sm:$0xf]
        %v506 = vld [vmem:[%s1 + $0x24] sm:$0xf]
        %v507 = vld [vmem:[%s1 + $0x28] sm:$0xf]
        %v508 = vld [vmem:[%s1 + $0x2c] sm:$0xf]
        %v509 = vld [vmem:[%s1 + $0x30] sm:$0x3]
        %v514 = vunpack.c.l.b16 %v493
        %v515 = vunpack.c.l.b16 %v494
        %v516 = vunpack.c.l.b16 %v495
        %v517 = vunpack.c.l.b16 %v496
        %v518 = vpack.c.b16 %v515, %v514
        %v519 = vpack.c.b16 %v517, %v516
        %v533 = vunpack.c.l.b16 %v497
        %v534 = vunpack.c.l.b16 %v498
        %v535 = vunpack.c.l.b16 %v499
        %v536 = vunpack.c.l.b16 %v500
        %v537 = vunpack.c.l.b16 %v501
        %v538 = vunpack.c.l.b16 %v502
        %v539 = vunpack.c.l.b16 %v503
        %v540 = vunpack.c.l.b16 %v504
        %v541 = vunpack.c.l.b16 %v505
        %v542 = vunpack.c.l.b16 %v506
        %v543 = vunpack.c.l.b16 %v507
        %v544 = vunpack.c.l.b16 %v508
        %v545 = vunpack.c.l.b16 %v509
        %v546 = vpack.c.b16 %v534, %v533
        %v547 = vpack.c.b16 %v536, %v535
        %v548 = vpack.c.b16 %v538, %v537
        %v549 = vpack.c.b16 %v540, %v539
        %v550 = vpack.c.b16 %v542, %v541
        %v551 = vpack.c.b16 %v544, %v543
        %v552 = vpack.c.b16 %v545, %v545
        %vm559 = vcmask 818176
        %v561 = vsel %vm559, %v518, 0
        %v564 = vsel %vm559, %v519, 0
        %vm566 = vcmask 1041408
        %v568 = vsel %vm566, %v552, 0
        %570 = vmatprep.subr.bf16.mxu0 0
        %571 = vmatpush1.bf16.msra.mxu0 %v546
        %572 = vmatprep.subr.bf16.mxu0 0
        %573 = vmatpush1.bf16.msra.mxu0 %v547
        %574 = vmatprep.subr.bf16.mxu0 0
        %575 = vmatpush1.bf16.msra.mxu0 %v548
        %576 = vmatprep.subr.bf16.mxu0 0
        %577 = vmatpush1.bf16.msra.mxu0 %v549
        %578 = vmatprep.subr.bf16.mxu0 0
        %579 = vmatpush1.bf16.msra.mxu0 %v550
        %580 = vmatprep.subr.bf16.mxu0 0
        %581 = vmatpush1.bf16.msra.mxu0 %v551
        %582 = vmatprep.subr.bf16.mxu0 0
        %583 = vmatpush1.bf16.msra.mxu0 %v568
        %584 = vmatprep.subr.bf16.mxu0 0
        %585 = vmatpush1.bf16.msra.mxu0 0
        %586 = vmatprep.subr.bf16.mxu0 0
        %587 = vmatpush1.bf16.msra.mxu0 0
        %588 = vmatprep.subr.bf16.mxu0 0
        %589 = vmatpush1.bf16.msra.mxu0 0
        %590 = vmatprep.subr.bf16.mxu0 0
        %591 = vmatpush1.bf16.msra.mxu0 0
        %592 = vmatprep.subr.bf16.mxu0 0
        %593 = vmatpush1.bf16.msra.mxu0 0
        %594 = vmatprep.subr.bf16.mxu0 0
        %595 = vmatpush1.bf16.msra.mxu0 0
        %596 = vmatprep.subr.bf16.mxu0 0
        %597 = vmatpush1.bf16.msra.mxu0 0
        %598 = vmatprep.subr.bf16.mxu0 0
        %599 = vmatpush1.bf16.msra.mxu0 0
        %600 = vmatprep.subr.bf16.mxu0 0
        %601 = vmatpush1.bf16.msra.mxu0 0
        %602 = vmatprep.mubr.bf16.mxu0 0
        %603 = vmatmul.mubr.bf16.gmra.mrb[0].mxu0 %v561
        %v604 = vpop.f32.mrb[0].mxu0
        %v605 = vadd.f32 0.0, %v604
        %v606 = vpop.f32.mrb[0].mxu0
        %v607 = vpop.f32.mrb[0].mxu0
        %v608 = vadd.f32 0.0, %v607
        %v609 = vpop.f32.mrb[0].mxu0
        %610 = vmatprep.mubr.bf16.mxu0 0
        %611 = vmatmul.mubr.bf16.gmra.mrb[0].mxu0 %v564
        %v612 = vpop.f32.mrb[0].mxu0
        %v613 = vadd.f32 0.0, %v612
        %v614 = vpop.f32.mrb[0].mxu0
        %v615 = vpop.f32.mrb[0].mxu0
        %v616 = vadd.f32 0.0, %v615
        %v617 = vpop.f32.mrb[0].mxu0
        %618 = vdwg.mxu0
        %s619 = scalar_lea.vmem %s1, 52
        %v620 = vld [vmem:[%s619] sm:$0xf]
        %v621 = vld [vmem:[%s619 + $0x4] sm:$0xf]
        %v622 = vld [vmem:[%s619 + $0x8] sm:$0xf]
        %v623 = vld [vmem:[%s619 + $0xc] sm:$0xf]
        %v624 = vld [vmem:[%s619 + $0x10] sm:$0xf]
        %v625 = vld [vmem:[%s619 + $0x14] sm:$0xf]
        %v626 = vld [vmem:[%s619 + $0x18] sm:$0xf]
        %v627 = vld [vmem:[%s619 + $0x1c] sm:$0xf]
        %v628 = vld [vmem:[%s619 + $0x20] sm:$0xf]
        %v629 = vld [vmem:[%s619 + $0x24] sm:$0xf]
        %v630 = vld [vmem:[%s619 + $0x28] sm:$0xf]
        %v631 = vld [vmem:[%s619 + $0x2c] sm:$0xf]
        %v632 = vld [vmem:[%s619 + $0x30] sm:$0x3]
        %v646 = vunpack.c.l.b16 %v620
        %v647 = vunpack.c.l.b16 %v621
        %v648 = vunpack.c.l.b16 %v622
        %v649 = vunpack.c.l.b16 %v623
        %v650 = vunpack.c.l.b16 %v624
        %v651 = vunpack.c.l.b16 %v625
        %v652 = vunpack.c.l.b16 %v626
        %v653 = vunpack.c.l.b16 %v627
        %v654 = vunpack.c.l.b16 %v628
        %v655 = vunpack.c.l.b16 %v629
        %v656 = vunpack.c.l.b16 %v630
        %v657 = vunpack.c.l.b16 %v631
        %v658 = vunpack.c.l.b16 %v632
        %v659 = vpack.c.b16 %v647, %v646
        %v660 = vpack.c.b16 %v649, %v648
        %v661 = vpack.c.b16 %v651, %v650
        %v662 = vpack.c.b16 %v653, %v652
        %v663 = vpack.c.b16 %v655, %v654
        %v664 = vpack.c.b16 %v657, %v656
        %v665 = vpack.c.b16 %v658, %v658
        %v673 = vsel %vm566, %v665, 0
        %675 = vmatprep.subr.bf16.mxu0 0
        %676 = vmatpush1.bf16.msra.mxu0 %v659
        %677 = vmatprep.subr.bf16.mxu0 0
        %678 = vmatpush1.bf16.msra.mxu0 %v660
        %679 = vmatprep.subr.bf16.mxu0 0
        %680 = vmatpush1.bf16.msra.mxu0 %v661
        %681 = vmatprep.subr.bf16.mxu0 0
        %682 = vmatpush1.bf16.msra.mxu0 %v662
        %683 = vmatprep.subr.bf16.mxu0 0
        %684 = vmatpush1.bf16.msra.mxu0 %v663
        %685 = vmatprep.subr.bf16.mxu0 0
        %686 = vmatpush1.bf16.msra.mxu0 %v664
        %687 = vmatprep.subr.bf16.mxu0 0
        %688 = vmatpush1.bf16.msra.mxu0 %v673
        %689 = vmatprep.subr.bf16.mxu0 0
        %690 = vmatpush1.bf16.msra.mxu0 0
        %691 = vmatprep.subr.bf16.mxu0 0
        %692 = vmatpush1.bf16.msra.mxu0 0
        %693 = vmatprep.subr.bf16.mxu0 0
        %694 = vmatpush1.bf16.msra.mxu0 0
        %695 = vmatprep.subr.bf16.mxu0 0
        %696 = vmatpush1.bf16.msra.mxu0 0
        %697 = vmatprep.subr.bf16.mxu0 0
        %698 = vmatpush1.bf16.msra.mxu0 0
        %699 = vmatprep.subr.bf16.mxu0 0
        %700 = vmatpush1.bf16.msra.mxu0 0
        %701 = vmatprep.subr.bf16.mxu0 0
        %702 = vmatpush1.bf16.msra.mxu0 0
        %703 = vmatprep.subr.bf16.mxu0 0
        %704 = vmatpush1.bf16.msra.mxu0 0
        %705 = vmatprep.subr.bf16.mxu0 0
        %706 = vmatpush1.bf16.msra.mxu0 0
        %707 = vmatprep.mubr.bf16.mxu0 0
        %708 = vmatmul.mubr.bf16.gmra.mrb[0].mxu0 %v561
        %v709 = vpop.f32.mrb[0].mxu0
        %v710 = vadd.f32 0.0, %v709
        %v711 = vpop.f32.mrb[0].mxu0
        %v712 = vpop.f32.mrb[0].mxu0
        %v713 = vadd.f32 0.0, %v712
        %v714 = vpop.f32.mrb[0].mxu0
        %715 = vmatprep.mubr.bf16.mxu0 0
        %716 = vmatmul.mubr.bf16.gmra.mrb[0].mxu0 %v564
        %v717 = vpop.f32.mrb[0].mxu0
        %v718 = vadd.f32 0.0, %v717
        %v719 = vpop.f32.mrb[0].mxu0
        %v720 = vpop.f32.mrb[0].mxu0
        %v721 = vadd.f32 0.0, %v720
        %v722 = vpop.f32.mrb[0].mxu0
        %723 = vdwg.mxu0
        %vm728 = vcmask 1046528
        %v729 = vrot.slane %v710, 1
        %v730 = vrot.slane %v713, 1
        %v731 = vsel %vm728, %v729, %v730
        %v732 = vrot.slane %v718, 1
        %v733 = vsel %vm728, %v730, %v732
        %v734 = vrot.slane %v721, 1
        %v735 = vsel %vm728, %v732, %v734
        %v740 = vadd.f32 %v605, %v731
        %v741 = vadd.f32 %v608, %v733
        %v742 = vadd.f32 %v613, %v735
        %v743 = vadd.f32 %v616, %v734
        %s744 = scalar_lea.vmem %s1, 104
        %v745 = vld [vmem:[%s744] sm:$0xf]
        %v746 = vld [vmem:[%s744 + $0x4] sm:$0xf]
        %v747 = vld [vmem:[%s744 + $0x8] sm:$0xf]
        %v748 = vld [vmem:[%s744 + $0xc] sm:$0xf]
        %v749 = vld [vmem:[%s744 + $0x10] sm:$0xf]
        %v750 = vld [vmem:[%s744 + $0x14] sm:$0xf]
        %v751 = vld [vmem:[%s744 + $0x18] sm:$0xf]
        %v752 = vld [vmem:[%s744 + $0x1c] sm:$0xf]
        %v753 = vld [vmem:[%s744 + $0x20] sm:$0xf]
        %v754 = vld [vmem:[%s744 + $0x24] sm:$0xf]
        %v755 = vld [vmem:[%s744 + $0x28] sm:$0xf]
        %v756 = vld [vmem:[%s744 + $0x2c] sm:$0xf]
        %v757 = vld [vmem:[%s744 + $0x30] sm:$0x3]
        %v771 = vunpack.c.l.b16 %v745
        %v772 = vunpack.c.l.b16 %v746
        %v773 = vunpack.c.l.b16 %v747
        %v774 = vunpack.c.l.b16 %v748
        %v775 = vunpack.c.l.b16 %v749
        %v776 = vunpack.c.l.b16 %v750
        %v777 = vunpack.c.l.b16 %v751
        %v778 = vunpack.c.l.b16 %v752
        %v779 = vunpack.c.l.b16 %v753
        %v780 = vunpack.c.l.b16 %v754
        %v781 = vunpack.c.l.b16 %v755
        %v782 = vunpack.c.l.b16 %v756
        %v783 = vunpack.c.l.b16 %v757
        %v784 = vpack.c.b16 %v772, %v771
        %v785 = vpack.c.b16 %v774, %v773
        %v786 = vpack.c.b16 %v776, %v775
        %v787 = vpack.c.b16 %v778, %v777
        %v788 = vpack.c.b16 %v780, %v779
        %v789 = vpack.c.b16 %v782, %v781
        %v790 = vpack.c.b16 %v783, %v783
        %v798 = vsel %vm566, %v790, 0
        %800 = vmatprep.subr.bf16.mxu0 0
        %801 = vmatpush1.bf16.msra.mxu0 %v784
        %802 = vmatprep.subr.bf16.mxu0 0
        %803 = vmatpush1.bf16.msra.mxu0 %v785
        %804 = vmatprep.subr.bf16.mxu0 0
        %805 = vmatpush1.bf16.msra.mxu0 %v786
        %806 = vmatprep.subr.bf16.mxu0 0
        %807 = vmatpush1.bf16.msra.mxu0 %v787
        %808 = vmatprep.subr.bf16.mxu0 0
        %809 = vmatpush1.bf16.msra.mxu0 %v788
        %810 = vmatprep.subr.bf16.mxu0 0
        %811 = vmatpush1.bf16.msra.mxu0 %v789
        %812 = vmatprep.subr.bf16.mxu0 0
        %813 = vmatpush1.bf16.msra.mxu0 %v798
        %814 = vmatprep.subr.bf16.mxu0 0
        %815 = vmatpush1.bf16.msra.mxu0 0
        %816 = vmatprep.subr.bf16.mxu0 0
        %817 = vmatpush1.bf16.msra.mxu0 0
        %818 = vmatprep.subr.bf16.mxu0 0
        %819 = vmatpush1.bf16.msra.mxu0 0
        %820 = vmatprep.subr.bf16.mxu0 0
        %821 = vmatpush1.bf16.msra.mxu0 0
        %822 = vmatprep.subr.bf16.mxu0 0
        %823 = vmatpush1.bf16.msra.mxu0 0
        %824 = vmatprep.subr.bf16.mxu0 0
        %825 = vmatpush1.bf16.msra.mxu0 0
        %826 = vmatprep.subr.bf16.mxu0 0
        %827 = vmatpush1.bf16.msra.mxu0 0
        %828 = vmatprep.subr.bf16.mxu0 0
        %829 = vmatpush1.bf16.msra.mxu0 0
        %830 = vmatprep.subr.bf16.mxu0 0
        %831 = vmatpush1.bf16.msra.mxu0 0
        %832 = vmatprep.mubr.bf16.mxu0 0
        %833 = vmatmul.mubr.bf16.gmra.mrb[0].mxu0 %v561
        %v834 = vpop.f32.mrb[0].mxu0
        %v835 = vadd.f32 0.0, %v834
        %v836 = vpop.f32.mrb[0].mxu0
        %v837 = vpop.f32.mrb[0].mxu0
        %v838 = vadd.f32 0.0, %v837
        %v839 = vpop.f32.mrb[0].mxu0
        %840 = vmatprep.mubr.bf16.mxu0 0
        %841 = vmatmul.mubr.bf16.gmra.mrb[0].mxu0 %v564
        %v842 = vpop.f32.mrb[0].mxu0
        %v843 = vadd.f32 0.0, %v842
        %v844 = vpop.f32.mrb[0].mxu0
        %v845 = vpop.f32.mrb[0].mxu0
        %v846 = vadd.f32 0.0, %v845
        %v847 = vpop.f32.mrb[0].mxu0
        %848 = vdwg.mxu0
        %vm853 = vcmask 1045504
        %v854 = vrot.slane %v835, 2
        %v855 = vrot.slane %v838, 2
        %v856 = vsel %vm853, %v854, %v855
        %v857 = vrot.slane %v843, 2
        %v858 = vsel %vm853, %v855, %v857
        %v859 = vrot.slane %v846, 2
        %v860 = vsel %vm853, %v857, %v859
        %v865 = vadd.f32 %v740, %v856
        %v866 = vadd.f32 %v741, %v858
        %v867 = vadd.f32 %v742, %v860
        %v868 = vadd.f32 %v743, %v859
        %v869 = vld [vmem:[%s2] sm:$0x1]
        %v871 = vlaneseq
        %v872 = vshrl.u32 %v871, 7
        %v873 = vsub.s32 0, %v872
        %v874 = vrot.slane %v869, %v873
        %v876 = vadd.f32 %v865, %v874
        %v877 = vadd.f32 %v866, %v874
        %v878 = vadd.f32 %v867, %v874
        %v879 = vadd.f32 %v868, %v874
        %v880 = vmax.f32 %v876, 0.0
        %v881 = vmax.f32 %v877, 0.0
        %v882 = vmax.f32 %v878, 0.0
        %v883 = vmax.f32 %v879, 0.0
        %v884 = vlaneseq
        %v885 = vshrl.u32 %v884, 7
        %v886 = vadd.s32 %v885, 8
        %v887 = vlaneseq
        %v888 = vand.u32 %v887, 127
        %v889 = vmul.u32 %v885, 2
        %v890 = vmul.u32 %v886, 2
        %vm891 = vcmp.eq.s32.totalorder %v888, %v889
        %vm892 = vcmp.eq.s32.totalorder %v888, %v890
        %v893 = vsel %vm891, 1, 0
        %v894 = vsel %vm892, 1, 0
        %v895 = vcvt.s32.f32 %v893
        %v896 = vcvt.s32.f32 %v894
        %vm897 = vcmask 228352
        %v899 = vsel %vm897, %v895, 0
        %v902 = vsel %vm897, %v896, 0
        %vm904 = vcmask 1043456
        %v906 = vsel %vm904, %v883, 0
        %908 = vmatprep.subr.mxu0 0.0
        %909 = vmatpush1.msra.mxu0 %v880
        %910 = vmatprep.subr.mxu0 0.0
        %911 = vmatpush1.msra.mxu0 %v881
        %912 = vmatprep.subr.mxu0 0.0
        %913 = vmatpush1.msra.mxu0 %v882
        %914 = vmatprep.subr.mxu0 0.0
        %915 = vmatpush1.msra.mxu0 %v906
        %916 = vmatprep.subr.mxu0 0.0
        %917 = vmatpush1.msra.mxu0 0.0
        %918 = vmatprep.subr.mxu0 0.0
        %919 = vmatpush1.msra.mxu0 0.0
        %920 = vmatprep.subr.mxu0 0.0
        %921 = vmatpush1.msra.mxu0 0.0
        %922 = vmatprep.subr.mxu0 0.0
        %923 = vmatpush1.msra.mxu0 0.0
        %924 = vmatprep.subr.mxu0 0.0
        %925 = vmatpush1.msra.mxu0 0.0
        %926 = vmatprep.subr.mxu0 0.0
        %927 = vmatpush1.msra.mxu0 0.0
        %928 = vmatprep.subr.mxu0 0.0
        %929 = vmatpush1.msra.mxu0 0.0
        %930 = vmatprep.subr.mxu0 0.0
        %931 = vmatpush1.msra.mxu0 0.0
        %932 = vmatprep.subr.mxu0 0.0
        %933 = vmatpush1.msra.mxu0 0.0
        %934 = vmatprep.subr.mxu0 0.0
        %935 = vmatpush1.msra.mxu0 0.0
        %936 = vmatprep.subr.mxu0 0.0
        %937 = vmatpush1.msra.mxu0 0.0
        %938 = vmatprep.subr.mxu0 0.0
        %939 = vmatpush1.msra.mxu0 0.0
        %940 = vmatprep.subr.mxu0 0.0
        %941 = vmatpush1.msra.mxu0 0.0
        %942 = vmatprep.subr.mxu0 0.0
        %943 = vmatpush1.msra.mxu0 0.0
        %944 = vmatprep.subr.mxu0 0.0
        %945 = vmatpush1.msra.mxu0 0.0
        %946 = vmatprep.subr.mxu0 0.0
        %947 = vmatpush1.msra.mxu0 0.0
        %948 = vmatprep.subr.mxu0 0.0
        %949 = vmatpush1.msra.mxu0 0.0
        %950 = vmatprep.subr.mxu0 0.0
        %951 = vmatpush1.msra.mxu0 0.0
        %952 = vmatprep.subr.mxu0 0.0
        %953 = vmatpush1.msra.mxu0 0.0
        %954 = vmatprep.subr.mxu0 0.0
        %955 = vmatpush1.msra.mxu0 0.0
        %956 = vmatprep.subr.mxu0 0.0
        %957 = vmatpush1.msra.mxu0 0.0
        %958 = vmatprep.subr.mxu0 0.0
        %959 = vmatpush1.msra.mxu0 0.0
        %960 = vmatprep.subr.mxu0 0.0
        %961 = vmatpush1.msra.mxu0 0.0
        %962 = vmatprep.subr.mxu0 0.0
        %963 = vmatpush1.msra.mxu0 0.0
        %964 = vmatprep.subr.mxu0 0.0
        %965 = vmatpush1.msra.mxu0 0.0
        %966 = vmatprep.subr.mxu0 0.0
        %967 = vmatpush1.msra.mxu0 0.0
        %968 = vmatprep.subr.mxu0 0.0
        %969 = vmatpush1.msra.mxu0 0.0
        %970 = vmatprep.subr.mxu0 0.0
        %971 = vmatpush1.msra.mxu0 0.0
        %972 = vmatprep.mubr.f32.mxu0 0.0
        %973 = vmatmul.mubr.f32.gmra.mrb[0].mxu0 %v899
        %v974 = vpop.f32.mrb[0].mxu0
        %v975 = vadd.f32 0.0, %v974
        %v976 = vpop.f32.mrb[0].mxu0
        %977 = vmatprep.mubr.f32.mxu0 0.0
        %978 = vmatmul.mubr.f32.gmra.mrb[0].mxu0 %v902
        %v979 = vpop.f32.mrb[0].mxu0
        %v980 = vadd.f32 0.0, %v979
        %v981 = vpop.f32.mrb[0].mxu0
        %982 = vdwg.mxu0
        %v983 = vadd.s32 %v889, 1
        %v984 = vadd.s32 %v890, 1
        %vm985 = vcmp.eq.s32.totalorder %v888, %v983
        %vm986 = vcmp.eq.s32.totalorder %v888, %v984
        %v987 = vsel %vm985, 1, 0
        %v988 = vsel %vm986, 1, 0
        %v989 = vcvt.s32.f32 %v987
        %v990 = vcvt.s32.f32 %v988
        %v992 = vsel %vm897, %v989, 0
        %v995 = vsel %vm897, %v990, 0
        %997 = vmatprep.subr.mxu0 0.0
        %998 = vmatpush1.msra.mxu0 %v880
        %999 = vmatprep.subr.mxu0 0.0
        %1000 = vmatpush1.msra.mxu0 %v881
        %1001 = vmatprep.subr.mxu0 0.0
        %1002 = vmatpush1.msra.mxu0 %v882
        %1003 = vmatprep.subr.mxu0 0.0
        %1004 = vmatpush1.msra.mxu0 %v906
        %1005 = vmatprep.subr.mxu0 0.0
        %1006 = vmatpush1.msra.mxu0 0.0
        %1007 = vmatprep.subr.mxu0 0.0
        %1008 = vmatpush1.msra.mxu0 0.0
        %1009 = vmatprep.subr.mxu0 0.0
        %1010 = vmatpush1.msra.mxu0 0.0
        %1011 = vmatprep.subr.mxu0 0.0
        %1012 = vmatpush1.msra.mxu0 0.0
        %1013 = vmatprep.subr.mxu0 0.0
        %1014 = vmatpush1.msra.mxu0 0.0
        %1015 = vmatprep.subr.mxu0 0.0
        %1016 = vmatpush1.msra.mxu0 0.0
        %1017 = vmatprep.subr.mxu0 0.0
        %1018 = vmatpush1.msra.mxu0 0.0
        %1019 = vmatprep.subr.mxu0 0.0
        %1020 = vmatpush1.msra.mxu0 0.0
        %1021 = vmatprep.subr.mxu0 0.0
        %1022 = vmatpush1.msra.mxu0 0.0
        %1023 = vmatprep.subr.mxu0 0.0
        %1024 = vmatpush1.msra.mxu0 0.0
        %1025 = vmatprep.subr.mxu0 0.0
        %1026 = vmatpush1.msra.mxu0 0.0
        %1027 = vmatprep.subr.mxu0 0.0
        %1028 = vmatpush1.msra.mxu0 0.0
        %1029 = vmatprep.subr.mxu0 0.0
        %1030 = vmatpush1.msra.mxu0 0.0
        %1031 = vmatprep.subr.mxu0 0.0
        %1032 = vmatpush1.msra.mxu0 0.0
        %1033 = vmatprep.subr.mxu0 0.0
        %1034 = vmatpush1.msra.mxu0 0.0
        %1035 = vmatprep.subr.mxu0 0.0
        %1036 = vmatpush1.msra.mxu0 0.0
        %1037 = vmatprep.subr.mxu0 0.0
        %1038 = vmatpush1.msra.mxu0 0.0
        %1039 = vmatprep.subr.mxu0 0.0
        %1040 = vmatpush1.msra.mxu0 0.0
        %1041 = vmatprep.subr.mxu0 0.0
        %1042 = vmatpush1.msra.mxu0 0.0
        %1043 = vmatprep.subr.mxu0 0.0
        %1044 = vmatpush1.msra.mxu0 0.0
        %1045 = vmatprep.subr.mxu0 0.0
        %1046 = vmatpush1.msra.mxu0 0.0
        %1047 = vmatprep.subr.mxu0 0.0
        %1048 = vmatpush1.msra.mxu0 0.0
        %1049 = vmatprep.subr.mxu0 0.0
        %1050 = vmatpush1.msra.mxu0 0.0
        %1051 = vmatprep.subr.mxu0 0.0
        %1052 = vmatpush1.msra.mxu0 0.0
        %1053 = vmatprep.subr.mxu0 0.0
        %1054 = vmatpush1.msra.mxu0 0.0
        %1055 = vmatprep.subr.mxu0 0.0
        %1056 = vmatpush1.msra.mxu0 0.0
        %1057 = vmatprep.subr.mxu0 0.0
        %1058 = vmatpush1.msra.mxu0 0.0
        %1059 = vmatprep.subr.mxu0 0.0
        %1060 = vmatpush1.msra.mxu0 0.0
        %1061 = vmatprep.mubr.f32.mxu0 0.0
        %1062 = vmatmul.mubr.f32.gmra.mrb[0].mxu0 %v992
        %v1063 = vpop.f32.mrb[0].mxu0
        %v1064 = vadd.f32 0.0, %v1063
        %v1065 = vpop.f32.mrb[0].mxu0
        %1066 = vmatprep.mubr.f32.mxu0 0.0
        %1067 = vmatmul.mubr.f32.gmra.mrb[0].mxu0 %v995
        %v1068 = vpop.f32.mrb[0].mxu0
        %v1069 = vadd.f32 0.0, %v1068
        %v1070 = vpop.f32.mrb[0].mxu0
        %1071 = vdwg.mxu0
        %v1072 = vmax.f32 %v975, %v1064
        %v1073 = vmax.f32 %v980, %v1069
        %v1074 = vadd.s32 %v889, 4294967294
        %vm1075 = vcmp.eq.s32.totalorder %v888, %v1074
        %v1076 = vsel %vm1075, 1, 0
        %v1077 = vcvt.s32.f32 %v1076
        %vm1078 = vcmask 113664
        %v1080 = vsel %vm1078, %v1077, 0
        %v1083 = vsel %vm853, %v1073, 0
        %1085 = vmatprep.subr.mxu0 0.0
        %1086 = vmatpush1.msra.mxu0 %v1072
        %1087 = vmatprep.subr.mxu0 0.0
        %1088 = vmatpush1.msra.mxu0 %v1083
        %1089 = vmatprep.subr.mxu0 0.0
        %1090 = vmatpush1.msra.mxu0 0.0
        %1091 = vmatprep.subr.mxu0 0.0
        %1092 = vmatpush1.msra.mxu0 0.0
        %1093 = vmatprep.subr.mxu0 0.0
        %1094 = vmatpush1.msra.mxu0 0.0
        %1095 = vmatprep.subr.mxu0 0.0
        %1096 = vmatpush1.msra.mxu0 0.0
        %1097 = vmatprep.subr.mxu0 0.0
        %1098 = vmatpush1.msra.mxu0 0.0
        %1099 = vmatprep.subr.mxu0 0.0
        %1100 = vmatpush1.msra.mxu0 0.0
        %1101 = vmatprep.subr.mxu0 0.0
        %1102 = vmatpush1.msra.mxu0 0.0
        %1103 = vmatprep.subr.mxu0 0.0
        %1104 = vmatpush1.msra.mxu0 0.0
        %1105 = vmatprep.subr.mxu0 0.0
        %1106 = vmatpush1.msra.mxu0 0.0
        %1107 = vmatprep.subr.mxu0 0.0
        %1108 = vmatpush1.msra.mxu0 0.0
        %1109 = vmatprep.subr.mxu0 0.0
        %1110 = vmatpush1.msra.mxu0 0.0
        %1111 = vmatprep.subr.mxu0 0.0
        %1112 = vmatpush1.msra.mxu0 0.0
        %1113 = vmatprep.subr.mxu0 0.0
        %1114 = vmatpush1.msra.mxu0 0.0
        %1115 = vmatprep.subr.mxu0 0.0
        %1116 = vmatpush1.msra.mxu0 0.0
        %1117 = vmatprep.subr.mxu0 0.0
        %1118 = vmatpush1.msra.mxu0 0.0
        %1119 = vmatprep.subr.mxu0 0.0
        %1120 = vmatpush1.msra.mxu0 0.0
        %1121 = vmatprep.subr.mxu0 0.0
        %1122 = vmatpush1.msra.mxu0 0.0
        %1123 = vmatprep.subr.mxu0 0.0
        %1124 = vmatpush1.msra.mxu0 0.0
        %1125 = vmatprep.subr.mxu0 0.0
        %1126 = vmatpush1.msra.mxu0 0.0
        %1127 = vmatprep.subr.mxu0 0.0
        %1128 = vmatpush1.msra.mxu0 0.0
        %1129 = vmatprep.subr.mxu0 0.0
        %1130 = vmatpush1.msra.mxu0 0.0
        %1131 = vmatprep.subr.mxu0 0.0
        %1132 = vmatpush1.msra.mxu0 0.0
        %1133 = vmatprep.subr.mxu0 0.0
        %1134 = vmatpush1.msra.mxu0 0.0
        %1135 = vmatprep.subr.mxu0 0.0
        %1136 = vmatpush1.msra.mxu0 0.0
        %1137 = vmatprep.subr.mxu0 0.0
        %1138 = vmatpush1.msra.mxu0 0.0
        %1139 = vmatprep.subr.mxu0 0.0
        %1140 = vmatpush1.msra.mxu0 0.0
        %1141 = vmatprep.subr.mxu0 0.0
        %1142 = vmatpush1.msra.mxu0 0.0
        %1143 = vmatprep.subr.mxu0 0.0
        %1144 = vmatpush1.msra.mxu0 0.0
        %1145 = vmatprep.subr.mxu0 0.0
        %1146 = vmatpush1.msra.mxu0 0.0
        %1147 = vmatprep.subr.mxu0 0.0
        %1148 = vmatpush1.msra.mxu0 0.0
        %1149 = vmatprep.mubr.f32.mxu0 0.0
        %1150 = vmatmul.mubr.f32.gmra.mrb[0].mxu0 %v1080
        %v1151 = vpop.f32.mrb[0].mxu0
        %v1152 = vadd.f32 0.0, %v1151
        %v1153 = vpop.f32.mrb[0].mxu0
        %1154 = vdwg.mxu0
        %v1155 = vld [vmem:[%s3] sm:$0xff]
        %v1156 = vadd.s32 %v889, 4294967295
        %vm1157 = vcmp.eq.s32.totalorder %v888, %v1156
        %v1158 = vsel %vm1157, 1, 0
        %v1159 = vcvt.s32.f32 %v1158
        %v1161 = vsel %vm1078, %v1159, 0
        %1163 = vmatprep.subr.mxu0 0.0
        %1164 = vmatpush1.msra.mxu0 %v1072
        %1165 = vmatprep.subr.mxu0 0.0
        %1166 = vmatpush1.msra.mxu0 %v1083
        %1167 = vmatprep.subr.mxu0 0.0
        %1168 = vmatpush1.msra.mxu0 0.0
        %1169 = vmatprep.subr.mxu0 0.0
        %1170 = vmatpush1.msra.mxu0 0.0
        %1171 = vmatprep.subr.mxu0 0.0
        %1172 = vmatpush1.msra.mxu0 0.0
        %1173 = vmatprep.subr.mxu0 0.0
        %1174 = vmatpush1.msra.mxu0 0.0
        %1175 = vmatprep.subr.mxu0 0.0
        %1176 = vmatpush1.msra.mxu0 0.0
        %1177 = vmatprep.subr.mxu0 0.0
        %1178 = vmatpush1.msra.mxu0 0.0
        %1179 = vmatprep.subr.mxu0 0.0
        %1180 = vmatpush1.msra.mxu0 0.0
        %1181 = vmatprep.subr.mxu0 0.0
        %1182 = vmatpush1.msra.mxu0 0.0
        %1183 = vmatprep.subr.mxu0 0.0
        %1184 = vmatpush1.msra.mxu0 0.0
        %1185 = vmatprep.subr.mxu0 0.0
        %1186 = vmatpush1.msra.mxu0 0.0
        %1187 = vmatprep.subr.mxu0 0.0
        %1188 = vmatpush1.msra.mxu0 0.0
        %1189 = vmatprep.subr.mxu0 0.0
        %1190 = vmatpush1.msra.mxu0 0.0
        %1191 = vmatprep.subr.mxu0 0.0
        %1192 = vmatpush1.msra.mxu0 0.0
        %1193 = vmatprep.subr.mxu0 0.0
        %1194 = vmatpush1.msra.mxu0 0.0
        %1195 = vmatprep.subr.mxu0 0.0
        %1196 = vmatpush1.msra.mxu0 0.0
        %1197 = vmatprep.subr.mxu0 0.0
        %1198 = vmatpush1.msra.mxu0 0.0
        %1199 = vmatprep.subr.mxu0 0.0
        %1200 = vmatpush1.msra.mxu0 0.0
        %1201 = vmatprep.subr.mxu0 0.0
        %1202 = vmatpush1.msra.mxu0 0.0
        %1203 = vmatprep.subr.mxu0 0.0
        %1204 = vmatpush1.msra.mxu0 0.0
        %1205 = vmatprep.subr.mxu0 0.0
        %1206 = vmatpush1.msra.mxu0 0.0
        %1207 = vmatprep.subr.mxu0 0.0
        %1208 = vmatpush1.msra.mxu0 0.0
        %1209 = vmatprep.subr.mxu0 0.0
        %1210 = vmatpush1.msra.mxu0 0.0
        %1211 = vmatprep.subr.mxu0 0.0
        %1212 = vmatpush1.msra.mxu0 0.0
        %1213 = vmatprep.subr.mxu0 0.0
        %1214 = vmatpush1.msra.mxu0 0.0
        %1215 = vmatprep.subr.mxu0 0.0
        %1216 = vmatpush1.msra.mxu0 0.0
        %1217 = vmatprep.subr.mxu0 0.0
        %1218 = vmatpush1.msra.mxu0 0.0
        %1219 = vmatprep.subr.mxu0 0.0
        %1220 = vmatpush1.msra.mxu0 0.0
        %1221 = vmatprep.subr.mxu0 0.0
        %1222 = vmatpush1.msra.mxu0 0.0
        %1223 = vmatprep.subr.mxu0 0.0
        %1224 = vmatpush1.msra.mxu0 0.0
        %1225 = vmatprep.subr.mxu0 0.0
        %1226 = vmatpush1.msra.mxu0 0.0
        %1227 = vmatprep.mubr.f32.mxu0 0.0
        %1228 = vmatmul.mubr.f32.gmra.mrb[0].mxu0 %v1161
        %v1229 = vpop.f32.mrb[0].mxu0
        %v1230 = vadd.f32 0.0, %v1229
        %v1231 = vpop.f32.mrb[0].mxu0
        %1232 = vdwg.mxu0
        %s1233 = scalar_lea.vmem %s3, 8
        %v1234 = vld [vmem:[%s1233] sm:$0xff]
        %vm1235 = vcmask 64512
        %v1237 = vsel %vm1235, %v1230, 0
        %1239 = vmatprep.subr.mxu0 0.0
        %1240 = vmatpush1.msra.mxu0 %v1234
        %1241 = vmatprep.subr.mxu0 0.0
        %1242 = vmatpush1.msra.mxu0 0.0
        %1243 = vmatprep.subr.mxu0 0.0
        %1244 = vmatpush1.msra.mxu0 0.0
        %1245 = vmatprep.subr.mxu0 0.0
        %1246 = vmatpush1.msra.mxu0 0.0
        %1247 = vmatprep.subr.mxu0 0.0
        %1248 = vmatpush1.msra.mxu0 0.0
        %1249 = vmatprep.subr.mxu0 0.0
        %1250 = vmatpush1.msra.mxu0 0.0
        %1251 = vmatprep.subr.mxu0 0.0
        %1252 = vmatpush1.msra.mxu0 0.0
        %1253 = vmatprep.subr.mxu0 0.0
        %1254 = vmatpush1.msra.mxu0 0.0
        %1255 = vmatprep.subr.mxu0 0.0
        %1256 = vmatpush1.msra.mxu0 0.0
        %1257 = vmatprep.subr.mxu0 0.0
        %1258 = vmatpush1.msra.mxu0 0.0
        %1259 = vmatprep.subr.mxu0 0.0
        %1260 = vmatpush1.msra.mxu0 0.0
        %1261 = vmatprep.subr.mxu0 0.0
        %1262 = vmatpush1.msra.mxu0 0.0
        %1263 = vmatprep.subr.mxu0 0.0
        %1264 = vmatpush1.msra.mxu0 0.0
        %1265 = vmatprep.subr.mxu0 0.0
        %1266 = vmatpush1.msra.mxu0 0.0
        %1267 = vmatprep.subr.mxu0 0.0
        %1268 = vmatpush1.msra.mxu0 0.0
        %1269 = vmatprep.subr.mxu0 0.0
        %1270 = vmatpush1.msra.mxu0 0.0
        %1271 = vmatprep.subr.mxu0 0.0
        %1272 = vmatpush1.msra.mxu0 0.0
        %1273 = vmatprep.subr.mxu0 0.0
        %1274 = vmatpush1.msra.mxu0 0.0
        %1275 = vmatprep.subr.mxu0 0.0
        %1276 = vmatpush1.msra.mxu0 0.0
        %1277 = vmatprep.subr.mxu0 0.0
        %1278 = vmatpush1.msra.mxu0 0.0
        %1279 = vmatprep.subr.mxu0 0.0
        %1280 = vmatpush1.msra.mxu0 0.0
        %1281 = vmatprep.subr.mxu0 0.0
        %1282 = vmatpush1.msra.mxu0 0.0
        %1283 = vmatprep.subr.mxu0 0.0
        %1284 = vmatpush1.msra.mxu0 0.0
        %1285 = vmatprep.subr.mxu0 0.0
        %1286 = vmatpush1.msra.mxu0 0.0
        %1287 = vmatprep.subr.mxu0 0.0
        %1288 = vmatpush1.msra.mxu0 0.0
        %1289 = vmatprep.subr.mxu0 0.0
        %1290 = vmatpush1.msra.mxu0 0.0
        %1291 = vmatprep.subr.mxu0 0.0
        %1292 = vmatpush1.msra.mxu0 0.0
        %1293 = vmatprep.subr.mxu0 0.0
        %1294 = vmatpush1.msra.mxu0 0.0
        %1295 = vmatprep.subr.mxu0 0.0
        %1296 = vmatpush1.msra.mxu0 0.0
        %1297 = vmatprep.subr.mxu0 0.0
        %1298 = vmatpush1.msra.mxu0 0.0
        %1299 = vmatprep.subr.mxu0 0.0
        %1300 = vmatpush1.msra.mxu0 0.0
        %1301 = vmatprep.subr.mxu0 0.0
        %1302 = vmatpush1.msra.mxu0 0.0
        %1303 = vmatprep.mubr.f32.mxu0 0.0
        %1304 = vmatmul.mubr.f32.gmra.mrb[0].mxu0 %v1237
        %v1305 = vpop.f32.mrb[0].mxu0
        %v1306 = vadd.f32 0.0, %v1305
        %v1307 = vpop.f32.mrb[0].mxu0
        %1308 = vdwg.mxu0
        %v1310 = vsel %vm1235, %v1152, 0
        %1312 = vmatprep.subr.mxu0 0.0
        %1313 = vmatpush1.msra.mxu0 %v1155
        %1314 = vmatprep.subr.mxu0 0.0
        %1315 = vmatpush1.msra.mxu0 0.0
        %1316 = vmatprep.subr.mxu0 0.0
        %1317 = vmatpush1.msra.mxu0 0.0
        %1318 = vmatprep.subr.mxu0 0.0
        %1319 = vmatpush1.msra.mxu0 0.0
        %1320 = vmatprep.subr.mxu0 0.0
        %1321 = vmatpush1.msra.mxu0 0.0
        %1322 = vmatprep.subr.mxu0 0.0
        %1323 = vmatpush1.msra.mxu0 0.0
        %1324 = vmatprep.subr.mxu0 0.0
        %1325 = vmatpush1.msra.mxu0 0.0
        %1326 = vmatprep.subr.mxu0 0.0
        %1327 = vmatpush1.msra.mxu0 0.0
        %1328 = vmatprep.subr.mxu0 0.0
        %1329 = vmatpush1.msra.mxu0 0.0
        %1330 = vmatprep.subr.mxu0 0.0
        %1331 = vmatpush1.msra.mxu0 0.0
        %1332 = vmatprep.subr.mxu0 0.0
        %1333 = vmatpush1.msra.mxu0 0.0
        %1334 = vmatprep.subr.mxu0 0.0
        %1335 = vmatpush1.msra.mxu0 0.0
        %1336 = vmatprep.subr.mxu0 0.0
        %1337 = vmatpush1.msra.mxu0 0.0
        %1338 = vmatprep.subr.mxu0 0.0
        %1339 = vmatpush1.msra.mxu0 0.0
        %1340 = vmatprep.subr.mxu0 0.0
        %1341 = vmatpush1.msra.mxu0 0.0
        %1342 = vmatprep.subr.mxu0 0.0
        %1343 = vmatpush1.msra.mxu0 0.0
        %1344 = vmatprep.subr.mxu0 0.0
        %1345 = vmatpush1.msra.mxu0 0.0
        %1346 = vmatprep.subr.mxu0 0.0
        %1347 = vmatpush1.msra.mxu0 0.0
        %1348 = vmatprep.subr.mxu0 0.0
        %1349 = vmatpush1.msra.mxu0 0.0
        %1350 = vmatprep.subr.mxu0 0.0
        %1351 = vmatpush1.msra.mxu0 0.0
        %1352 = vmatprep.subr.mxu0 0.0
        %1353 = vmatpush1.msra.mxu0 0.0
        %1354 = vmatprep.subr.mxu0 0.0
        %1355 = vmatpush1.msra.mxu0 0.0
        %1356 = vmatprep.subr.mxu0 0.0
        %1357 = vmatpush1.msra.mxu0 0.0
        %1358 = vmatprep.subr.mxu0 0.0
        %1359 = vmatpush1.msra.mxu0 0.0
        %1360 = vmatprep.subr.mxu0 0.0
        %1361 = vmatpush1.msra.mxu0 0.0
        %1362 = vmatprep.subr.mxu0 0.0
        %1363 = vmatpush1.msra.mxu0 0.0
        %1364 = vmatprep.subr.mxu0 0.0
        %1365 = vmatpush1.msra.mxu0 0.0
        %1366 = vmatprep.subr.mxu0 0.0
        %1367 = vmatpush1.msra.mxu0 0.0
        %1368 = vmatprep.subr.mxu0 0.0
        %1369 = vmatpush1.msra.mxu0 0.0
        %1370 = vmatprep.subr.mxu0 0.0
        %1371 = vmatpush1.msra.mxu0 0.0
        %1372 = vmatprep.subr.mxu0 0.0
        %1373 = vmatpush1.msra.mxu0 0.0
        %1374 = vmatprep.subr.mxu0 0.0
        %1375 = vmatpush1.msra.mxu0 0.0
        %1376 = vmatprep.mubr.f32.mxu0 0.0
        %1377 = vmatmul.mubr.f32.gmra.mrb[0].mxu0 %v1310
        %v1378 = vpop.f32.mrb[0].mxu0
        %v1379 = vadd.f32 %v1306, %v1378
        %v1380 = vpop.f32.mrb[0].mxu0
        %1381 = vdwg.mxu0
        %v1382 = vsel %vm1078, %v895, 0
        %1384 = vmatprep.subr.mxu0 0.0
        %1385 = vmatpush1.msra.mxu0 %v1072
        %1386 = vmatprep.subr.mxu0 0.0
        %1387 = vmatpush1.msra.mxu0 %v1083
        %1388 = vmatprep.subr.mxu0 0.0
        %1389 = vmatpush1.msra.mxu0 0.0
        %1390 = vmatprep.subr.mxu0 0.0
        %1391 = vmatpush1.msra.mxu0 0.0
        %1392 = vmatprep.subr.mxu0 0.0
        %1393 = vmatpush1.msra.mxu0 0.0
        %1394 = vmatprep.subr.mxu0 0.0
        %1395 = vmatpush1.msra.mxu0 0.0
        %1396 = vmatprep.subr.mxu0 0.0
        %1397 = vmatpush1.msra.mxu0 0.0
        %1398 = vmatprep.subr.mxu0 0.0
        %1399 = vmatpush1.msra.mxu0 0.0
        %1400 = vmatprep.subr.mxu0 0.0
        %1401 = vmatpush1.msra.mxu0 0.0
        %1402 = vmatprep.subr.mxu0 0.0
        %1403 = vmatpush1.msra.mxu0 0.0
        %1404 = vmatprep.subr.mxu0 0.0
        %1405 = vmatpush1.msra.mxu0 0.0
        %1406 = vmatprep.subr.mxu0 0.0
        %1407 = vmatpush1.msra.mxu0 0.0
        %1408 = vmatprep.subr.mxu0 0.0
        %1409 = vmatpush1.msra.mxu0 0.0
        %1410 = vmatprep.subr.mxu0 0.0
        %1411 = vmatpush1.msra.mxu0 0.0
        %1412 = vmatprep.subr.mxu0 0.0
        %1413 = vmatpush1.msra.mxu0 0.0
        %1414 = vmatprep.subr.mxu0 0.0
        %1415 = vmatpush1.msra.mxu0 0.0
        %1416 = vmatprep.subr.mxu0 0.0
        %1417 = vmatpush1.msra.mxu0 0.0
        %1418 = vmatprep.subr.mxu0 0.0
        %1419 = vmatpush1.msra.mxu0 0.0
        %1420 = vmatprep.subr.mxu0 0.0
        %1421 = vmatpush1.msra.mxu0 0.0
        %1422 = vmatprep.subr.mxu0 0.0
        %1423 = vmatpush1.msra.mxu0 0.0
        %1424 = vmatprep.subr.mxu0 0.0
        %1425 = vmatpush1.msra.mxu0 0.0
        %1426 = vmatprep.subr.mxu0 0.0
        %1427 = vmatpush1.msra.mxu0 0.0
        %1428 = vmatprep.subr.mxu0 0.0
        %1429 = vmatpush1.msra.mxu0 0.0
        %1430 = vmatprep.subr.mxu0 0.0
        %1431 = vmatpush1.msra.mxu0 0.0
        %1432 = vmatprep.subr.mxu0 0.0
        %1433 = vmatpush1.msra.mxu0 0.0
        %1434 = vmatprep.subr.mxu0 0.0
        %1435 = vmatpush1.msra.mxu0 0.0
        %1436 = vmatprep.subr.mxu0 0.0
        %1437 = vmatpush1.msra.mxu0 0.0
        %1438 = vmatprep.subr.mxu0 0.0
        %1439 = vmatpush1.msra.mxu0 0.0
        %1440 = vmatprep.subr.mxu0 0.0
        %1441 = vmatpush1.msra.mxu0 0.0
        %1442 = vmatprep.subr.mxu0 0.0
        %1443 = vmatpush1.msra.mxu0 0.0
        %1444 = vmatprep.subr.mxu0 0.0
        %1445 = vmatpush1.msra.mxu0 0.0
        %1446 = vmatprep.subr.mxu0 0.0
        %1447 = vmatpush1.msra.mxu0 0.0
        %1448 = vmatprep.mubr.f32.mxu0 0.0
        %1449 = vmatmul.mubr.f32.gmra.mrb[0].mxu0 %v1382
        %v1450 = vpop.f32.mrb[0].mxu0
        %v1451 = vadd.f32 0.0, %v1450
        %v1452 = vpop.f32.mrb[0].mxu0
        %1453 = vdwg.mxu0
        %s1454 = scalar_lea.vmem %s3, 16
        %v1455 = vld [vmem:[%s1454] sm:$0xff]
        %v1457 = vsel %vm1235, %v1451, 0
        %1459 = vmatprep.subr.mxu0 0.0
        %1460 = vmatpush1.msra.mxu0 %v1455
        %1461 = vmatprep.subr.mxu0 0.0
        %1462 = vmatpush1.msra.mxu0 0.0
        %1463 = vmatprep.subr.mxu0 0.0
        %1464 = vmatpush1.msra.mxu0 0.0
        %1465 = vmatprep.subr.mxu0 0.0
        %1466 = vmatpush1.msra.mxu0 0.0
        %1467 = vmatprep.subr.mxu0 0.0
        %1468 = vmatpush1.msra.mxu0 0.0
        %1469 = vmatprep.subr.mxu0 0.0
        %1470 = vmatpush1.msra.mxu0 0.0
        %1471 = vmatprep.subr.mxu0 0.0
        %1472 = vmatpush1.msra.mxu0 0.0
        %1473 = vmatprep.subr.mxu0 0.0
        %1474 = vmatpush1.msra.mxu0 0.0
        %1475 = vmatprep.subr.mxu0 0.0
        %1476 = vmatpush1.msra.mxu0 0.0
        %1477 = vmatprep.subr.mxu0 0.0
        %1478 = vmatpush1.msra.mxu0 0.0
        %1479 = vmatprep.subr.mxu0 0.0
        %1480 = vmatpush1.msra.mxu0 0.0
        %1481 = vmatprep.subr.mxu0 0.0
        %1482 = vmatpush1.msra.mxu0 0.0
        %1483 = vmatprep.subr.mxu0 0.0
        %1484 = vmatpush1.msra.mxu0 0.0
        %1485 = vmatprep.subr.mxu0 0.0
        %1486 = vmatpush1.msra.mxu0 0.0
        %1487 = vmatprep.subr.mxu0 0.0
        %1488 = vmatpush1.msra.mxu0 0.0
        %1489 = vmatprep.subr.mxu0 0.0
        %1490 = vmatpush1.msra.mxu0 0.0
        %1491 = vmatprep.subr.mxu0 0.0
        %1492 = vmatpush1.msra.mxu0 0.0
        %1493 = vmatprep.subr.mxu0 0.0
        %1494 = vmatpush1.msra.mxu0 0.0
        %1495 = vmatprep.subr.mxu0 0.0
        %1496 = vmatpush1.msra.mxu0 0.0
        %1497 = vmatprep.subr.mxu0 0.0
        %1498 = vmatpush1.msra.mxu0 0.0
        %1499 = vmatprep.subr.mxu0 0.0
        %1500 = vmatpush1.msra.mxu0 0.0
        %1501 = vmatprep.subr.mxu0 0.0
        %1502 = vmatpush1.msra.mxu0 0.0
        %1503 = vmatprep.subr.mxu0 0.0
        %1504 = vmatpush1.msra.mxu0 0.0
        %1505 = vmatprep.subr.mxu0 0.0
        %1506 = vmatpush1.msra.mxu0 0.0
        %1507 = vmatprep.subr.mxu0 0.0
        %1508 = vmatpush1.msra.mxu0 0.0
        %1509 = vmatprep.subr.mxu0 0.0
        %1510 = vmatpush1.msra.mxu0 0.0
        %1511 = vmatprep.subr.mxu0 0.0
        %1512 = vmatpush1.msra.mxu0 0.0
        %1513 = vmatprep.subr.mxu0 0.0
        %1514 = vmatpush1.msra.mxu0 0.0
        %1515 = vmatprep.subr.mxu0 0.0
        %1516 = vmatpush1.msra.mxu0 0.0
        %1517 = vmatprep.subr.mxu0 0.0
        %1518 = vmatpush1.msra.mxu0 0.0
        %1519 = vmatprep.subr.mxu0 0.0
        %1520 = vmatpush1.msra.mxu0 0.0
        %1521 = vmatprep.subr.mxu0 0.0
        %1522 = vmatpush1.msra.mxu0 0.0
        %1523 = vmatprep.mubr.f32.mxu0 0.0
        %1524 = vmatmul.mubr.f32.gmra.mrb[0].mxu0 %v1457
        %v1525 = vpop.f32.mrb[0].mxu0
        %v1526 = vadd.f32 0.0, %v1525
        %v1527 = vpop.f32.mrb[0].mxu0
        %1528 = vdwg.mxu0
        %v1529 = vadd.f32 %v1379, %v1526
        %v1530 = vsel %vm1078, %v989, 0
        %1532 = vmatprep.subr.mxu0 0.0
        %1533 = vmatpush1.msra.mxu0 %v1072
        %1534 = vmatprep.subr.mxu0 0.0
        %1535 = vmatpush1.msra.mxu0 %v1083
        %1536 = vmatprep.subr.mxu0 0.0
        %1537 = vmatpush1.msra.mxu0 0.0
        %1538 = vmatprep.subr.mxu0 0.0
        %1539 = vmatpush1.msra.mxu0 0.0
        %1540 = vmatprep.subr.mxu0 0.0
        %1541 = vmatpush1.msra.mxu0 0.0
        %1542 = vmatprep.subr.mxu0 0.0
        %1543 = vmatpush1.msra.mxu0 0.0
        %1544 = vmatprep.subr.mxu0 0.0
        %1545 = vmatpush1.msra.mxu0 0.0
        %1546 = vmatprep.subr.mxu0 0.0
        %1547 = vmatpush1.msra.mxu0 0.0
        %1548 = vmatprep.subr.mxu0 0.0
        %1549 = vmatpush1.msra.mxu0 0.0
        %1550 = vmatprep.subr.mxu0 0.0
        %1551 = vmatpush1.msra.mxu0 0.0
        %1552 = vmatprep.subr.mxu0 0.0
        %1553 = vmatpush1.msra.mxu0 0.0
        %1554 = vmatprep.subr.mxu0 0.0
        %1555 = vmatpush1.msra.mxu0 0.0
        %1556 = vmatprep.subr.mxu0 0.0
        %1557 = vmatpush1.msra.mxu0 0.0
        %1558 = vmatprep.subr.mxu0 0.0
        %1559 = vmatpush1.msra.mxu0 0.0
        %1560 = vmatprep.subr.mxu0 0.0
        %1561 = vmatpush1.msra.mxu0 0.0
        %1562 = vmatprep.subr.mxu0 0.0
        %1563 = vmatpush1.msra.mxu0 0.0
        %1564 = vmatprep.subr.mxu0 0.0
        %1565 = vmatpush1.msra.mxu0 0.0
        %1566 = vmatprep.subr.mxu0 0.0
        %1567 = vmatpush1.msra.mxu0 0.0
        %1568 = vmatprep.subr.mxu0 0.0
        %1569 = vmatpush1.msra.mxu0 0.0
        %1570 = vmatprep.subr.mxu0 0.0
        %1571 = vmatpush1.msra.mxu0 0.0
        %1572 = vmatprep.subr.mxu0 0.0
        %1573 = vmatpush1.msra.mxu0 0.0
        %1574 = vmatprep.subr.mxu0 0.0
        %1575 = vmatpush1.msra.mxu0 0.0
        %1576 = vmatprep.subr.mxu0 0.0
        %1577 = vmatpush1.msra.mxu0 0.0
        %1578 = vmatprep.subr.mxu0 0.0
        %1579 = vmatpush1.msra.mxu0 0.0
        %1580 = vmatprep.subr.mxu0 0.0
        %1581 = vmatpush1.msra.mxu0 0.0
        %1582 = vmatprep.subr.mxu0 0.0
        %1583 = vmatpush1.msra.mxu0 0.0
        %1584 = vmatprep.subr.mxu0 0.0
        %1585 = vmatpush1.msra.mxu0 0.0
        %1586 = vmatprep.subr.mxu0 0.0
        %1587 = vmatpush1.msra.mxu0 0.0
        %1588 = vmatprep.subr.mxu0 0.0
        %1589 = vmatpush1.msra.mxu0 0.0
        %1590 = vmatprep.subr.mxu0 0.0
        %1591 = vmatpush1.msra.mxu0 0.0
        %1592 = vmatprep.subr.mxu0 0.0
        %1593 = vmatpush1.msra.mxu0 0.0
        %1594 = vmatprep.subr.mxu0 0.0
        %1595 = vmatpush1.msra.mxu0 0.0
        %1596 = vmatprep.mubr.f32.mxu0 0.0
        %1597 = vmatmul.mubr.f32.gmra.mrb[0].mxu0 %v1530
        %v1598 = vpop.f32.mrb[0].mxu0
        %v1599 = vadd.f32 0.0, %v1598
        %v1600 = vpop.f32.mrb[0].mxu0
        %1601 = vdwg.mxu0
        %s1602 = scalar_lea.vmem %s3, 24
        %v1603 = vld [vmem:[%s1602] sm:$0xff]
        %v1605 = vsel %vm1235, %v1599, 0
        %1607 = vmatprep.subr.mxu0 0.0
        %1608 = vmatpush1.msra.mxu0 %v1603
        %1609 = vmatprep.subr.mxu0 0.0
        %1610 = vmatpush1.msra.mxu0 0.0
        %1611 = vmatprep.subr.mxu0 0.0
        %1612 = vmatpush1.msra.mxu0 0.0
        %1613 = vmatprep.subr.mxu0 0.0
        %1614 = vmatpush1.msra.mxu0 0.0
        %1615 = vmatprep.subr.mxu0 0.0
        %1616 = vmatpush1.msra.mxu0 0.0
        %1617 = vmatprep.subr.mxu0 0.0
        %1618 = vmatpush1.msra.mxu0 0.0
        %1619 = vmatprep.subr.mxu0 0.0
        %1620 = vmatpush1.msra.mxu0 0.0
        %1621 = vmatprep.subr.mxu0 0.0
        %1622 = vmatpush1.msra.mxu0 0.0
        %1623 = vmatprep.subr.mxu0 0.0
        %1624 = vmatpush1.msra.mxu0 0.0
        %1625 = vmatprep.subr.mxu0 0.0
        %1626 = vmatpush1.msra.mxu0 0.0
        %1627 = vmatprep.subr.mxu0 0.0
        %1628 = vmatpush1.msra.mxu0 0.0
        %1629 = vmatprep.subr.mxu0 0.0
        %1630 = vmatpush1.msra.mxu0 0.0
        %1631 = vmatprep.subr.mxu0 0.0
        %1632 = vmatpush1.msra.mxu0 0.0
        %1633 = vmatprep.subr.mxu0 0.0
        %1634 = vmatpush1.msra.mxu0 0.0
        %1635 = vmatprep.subr.mxu0 0.0
        %1636 = vmatpush1.msra.mxu0 0.0
        %1637 = vmatprep.subr.mxu0 0.0
        %1638 = vmatpush1.msra.mxu0 0.0
        %1639 = vmatprep.subr.mxu0 0.0
        %1640 = vmatpush1.msra.mxu0 0.0
        %1641 = vmatprep.subr.mxu0 0.0
        %1642 = vmatpush1.msra.mxu0 0.0
        %1643 = vmatprep.subr.mxu0 0.0
        %1644 = vmatpush1.msra.mxu0 0.0
        %1645 = vmatprep.subr.mxu0 0.0
        %1646 = vmatpush1.msra.mxu0 0.0
        %1647 = vmatprep.subr.mxu0 0.0
        %1648 = vmatpush1.msra.mxu0 0.0
        %1649 = vmatprep.subr.mxu0 0.0
        %1650 = vmatpush1.msra.mxu0 0.0
        %1651 = vmatprep.subr.mxu0 0.0
        %1652 = vmatpush1.msra.mxu0 0.0
        %1653 = vmatprep.subr.mxu0 0.0
        %1654 = vmatpush1.msra.mxu0 0.0
        %1655 = vmatprep.subr.mxu0 0.0
        %1656 = vmatpush1.msra.mxu0 0.0
        %1657 = vmatprep.subr.mxu0 0.0
        %1658 = vmatpush1.msra.mxu0 0.0
        %1659 = vmatprep.subr.mxu0 0.0
        %1660 = vmatpush1.msra.mxu0 0.0
        %1661 = vmatprep.subr.mxu0 0.0
        %1662 = vmatpush1.msra.mxu0 0.0
        %1663 = vmatprep.subr.mxu0 0.0
        %1664 = vmatpush1.msra.mxu0 0.0
        %1665 = vmatprep.subr.mxu0 0.0
        %1666 = vmatpush1.msra.mxu0 0.0
        %1667 = vmatprep.subr.mxu0 0.0
        %1668 = vmatpush1.msra.mxu0 0.0
        %1669 = vmatprep.subr.mxu0 0.0
        %1670 = vmatpush1.msra.mxu0 0.0
        %1671 = vmatprep.mubr.f32.mxu0 0.0
        %1672 = vmatmul.mubr.f32.gmra.mrb[0].mxu0 %v1605
        %v1673 = vpop.f32.mrb[0].mxu0
        %v1674 = vadd.f32 0.0, %v1673
        %v1675 = vpop.f32.mrb[0].mxu0
        %1676 = vdwg.mxu0
        %v1677 = vadd.f32 %v1529, %v1674
        %v1678 = vadd.s32 %v889, 2
        %vm1679 = vcmp.eq.s32.totalorder %v888, %v1678
        %v1680 = vsel %vm1679, 1, 0
        %v1681 = vcvt.s32.f32 %v1680
        %v1683 = vsel %vm1078, %v1681, 0
        %1685 = vmatprep.subr.mxu0 0.0
        %1686 = vmatpush1.msra.mxu0 %v1072
        %1687 = vmatprep.subr.mxu0 0.0
        %1688 = vmatpush1.msra.mxu0 %v1083
        %1689 = vmatprep.subr.mxu0 0.0
        %1690 = vmatpush1.msra.mxu0 0.0
        %1691 = vmatprep.subr.mxu0 0.0
        %1692 = vmatpush1.msra.mxu0 0.0
        %1693 = vmatprep.subr.mxu0 0.0
        %1694 = vmatpush1.msra.mxu0 0.0
        %1695 = vmatprep.subr.mxu0 0.0
        %1696 = vmatpush1.msra.mxu0 0.0
        %1697 = vmatprep.subr.mxu0 0.0
        %1698 = vmatpush1.msra.mxu0 0.0
        %1699 = vmatprep.subr.mxu0 0.0
        %1700 = vmatpush1.msra.mxu0 0.0
        %1701 = vmatprep.subr.mxu0 0.0
        %1702 = vmatpush1.msra.mxu0 0.0
        %1703 = vmatprep.subr.mxu0 0.0
        %1704 = vmatpush1.msra.mxu0 0.0
        %1705 = vmatprep.subr.mxu0 0.0
        %1706 = vmatpush1.msra.mxu0 0.0
        %1707 = vmatprep.subr.mxu0 0.0
        %1708 = vmatpush1.msra.mxu0 0.0
        %1709 = vmatprep.subr.mxu0 0.0
        %1710 = vmatpush1.msra.mxu0 0.0
        %1711 = vmatprep.subr.mxu0 0.0
        %1712 = vmatpush1.msra.mxu0 0.0
        %1713 = vmatprep.subr.mxu0 0.0
        %1714 = vmatpush1.msra.mxu0 0.0
        %1715 = vmatprep.subr.mxu0 0.0
        %1716 = vmatpush1.msra.mxu0 0.0
        %1717 = vmatprep.subr.mxu0 0.0
        %1718 = vmatpush1.msra.mxu0 0.0
        %1719 = vmatprep.subr.mxu0 0.0
        %1720 = vmatpush1.msra.mxu0 0.0
        %1721 = vmatprep.subr.mxu0 0.0
        %1722 = vmatpush1.msra.mxu0 0.0
        %1723 = vmatprep.subr.mxu0 0.0
        %1724 = vmatpush1.msra.mxu0 0.0
        %1725 = vmatprep.subr.mxu0 0.0
        %1726 = vmatpush1.msra.mxu0 0.0
        %1727 = vmatprep.subr.mxu0 0.0
        %1728 = vmatpush1.msra.mxu0 0.0
        %1729 = vmatprep.subr.mxu0 0.0
        %1730 = vmatpush1.msra.mxu0 0.0
        %1731 = vmatprep.subr.mxu0 0.0
        %1732 = vmatpush1.msra.mxu0 0.0
        %1733 = vmatprep.subr.mxu0 0.0
        %1734 = vmatpush1.msra.mxu0 0.0
        %1735 = vmatprep.subr.mxu0 0.0
        %1736 = vmatpush1.msra.mxu0 0.0
        %1737 = vmatprep.subr.mxu0 0.0
        %1738 = vmatpush1.msra.mxu0 0.0
        %1739 = vmatprep.subr.mxu0 0.0
        %1740 = vmatpush1.msra.mxu0 0.0
        %1741 = vmatprep.subr.mxu0 0.0
        %1742 = vmatpush1.msra.mxu0 0.0
        %1743 = vmatprep.subr.mxu0 0.0
        %1744 = vmatpush1.msra.mxu0 0.0
        %1745 = vmatprep.subr.mxu0 0.0
        %1746 = vmatpush1.msra.mxu0 0.0
        %1747 = vmatprep.subr.mxu0 0.0
        %1748 = vmatpush1.msra.mxu0 0.0
        %1749 = vmatprep.mubr.f32.mxu0 0.0
        %1750 = vmatmul.mubr.f32.gmra.mrb[0].mxu0 %v1683
        %v1751 = vpop.f32.mrb[0].mxu0
        %v1752 = vadd.f32 0.0, %v1751
        %v1753 = vpop.f32.mrb[0].mxu0
        %1754 = vdwg.mxu0
        %s1755 = scalar_lea.vmem %s3, 32
        %v1756 = vld [vmem:[%s1755] sm:$0xff]
        %v1758 = vsel %vm1235, %v1752, 0
        %1760 = vmatprep.subr.mxu0 0.0
        %1761 = vmatpush1.msra.mxu0 %v1756
        %1762 = vmatprep.subr.mxu0 0.0
        %1763 = vmatpush1.msra.mxu0 0.0
        %1764 = vmatprep.subr.mxu0 0.0
        %1765 = vmatpush1.msra.mxu0 0.0
        %1766 = vmatprep.subr.mxu0 0.0
        %1767 = vmatpush1.msra.mxu0 0.0
        %1768 = vmatprep.subr.mxu0 0.0
        %1769 = vmatpush1.msra.mxu0 0.0
        %1770 = vmatprep.subr.mxu0 0.0
        %1771 = vmatpush1.msra.mxu0 0.0
        %1772 = vmatprep.subr.mxu0 0.0
        %1773 = vmatpush1.msra.mxu0 0.0
        %1774 = vmatprep.subr.mxu0 0.0
        %1775 = vmatpush1.msra.mxu0 0.0
        %1776 = vmatprep.subr.mxu0 0.0
        %1777 = vmatpush1.msra.mxu0 0.0
        %1778 = vmatprep.subr.mxu0 0.0
        %1779 = vmatpush1.msra.mxu0 0.0
        %1780 = vmatprep.subr.mxu0 0.0
        %1781 = vmatpush1.msra.mxu0 0.0
        %1782 = vmatprep.subr.mxu0 0.0
        %1783 = vmatpush1.msra.mxu0 0.0
        %1784 = vmatprep.subr.mxu0 0.0
        %1785 = vmatpush1.msra.mxu0 0.0
        %1786 = vmatprep.subr.mxu0 0.0
        %1787 = vmatpush1.msra.mxu0 0.0
        %1788 = vmatprep.subr.mxu0 0.0
        %1789 = vmatpush1.msra.mxu0 0.0
        %1790 = vmatprep.subr.mxu0 0.0
        %1791 = vmatpush1.msra.mxu0 0.0
        %1792 = vmatprep.subr.mxu0 0.0
        %1793 = vmatpush1.msra.mxu0 0.0
        %1794 = vmatprep.subr.mxu0 0.0
        %1795 = vmatpush1.msra.mxu0 0.0
        %1796 = vmatprep.subr.mxu0 0.0
        %1797 = vmatpush1.msra.mxu0 0.0
        %1798 = vmatprep.subr.mxu0 0.0
        %1799 = vmatpush1.msra.mxu0 0.0
        %1800 = vmatprep.subr.mxu0 0.0
        %1801 = vmatpush1.msra.mxu0 0.0
        %1802 = vmatprep.subr.mxu0 0.0
        %1803 = vmatpush1.msra.mxu0 0.0
        %1804 = vmatprep.subr.mxu0 0.0
        %1805 = vmatpush1.msra.mxu0 0.0
        %1806 = vmatprep.subr.mxu0 0.0
        %1807 = vmatpush1.msra.mxu0 0.0
        %1808 = vmatprep.subr.mxu0 0.0
        %1809 = vmatpush1.msra.mxu0 0.0
        %1810 = vmatprep.subr.mxu0 0.0
        %1811 = vmatpush1.msra.mxu0 0.0
        %1812 = vmatprep.subr.mxu0 0.0
        %1813 = vmatpush1.msra.mxu0 0.0
        %1814 = vmatprep.subr.mxu0 0.0
        %1815 = vmatpush1.msra.mxu0 0.0
        %1816 = vmatprep.subr.mxu0 0.0
        %1817 = vmatpush1.msra.mxu0 0.0
        %1818 = vmatprep.subr.mxu0 0.0
        %1819 = vmatpush1.msra.mxu0 0.0
        %1820 = vmatprep.subr.mxu0 0.0
        %1821 = vmatpush1.msra.mxu0 0.0
        %1822 = vmatprep.subr.mxu0 0.0
        %1823 = vmatpush1.msra.mxu0 0.0
        %1824 = vmatprep.mubr.f32.mxu0 0.0
        %1825 = vmatmul.mubr.f32.gmra.mrb[0].mxu0 %v1758
        %v1826 = vpop.f32.mrb[0].mxu0
        %v1827 = vadd.f32 0.0, %v1826
        %v1828 = vpop.f32.mrb[0].mxu0
        %1829 = vdwg.mxu0
        %v1830 = vadd.f32 %v1677, %v1827
        %v1831 = vld [vmem:[%s4] sm:$0x1]
        %v1833 = vlaneseq
        %v1834 = vshrl.u32 %v1833, 7
        %v1835 = vsub.s32 0, %v1834
        %v1836 = vrot.slane %v1831, %v1835
        %v1838 = vadd.f32 %v1830, %v1836
        %v1839 = vmax.f32 %v1838, 0.0
        %vm1840 = vcmask 56320
        %v1841 = vsel %vm1840, %v1077, 0
        %v1844 = vsel %vm728, %v1839, 0
        %1846 = vmatprep.subr.mxu0 0.0
        %1847 = vmatpush1.msra.mxu0 %v1844
        %1848 = vmatprep.subr.mxu0 0.0
        %1849 = vmatpush1.msra.mxu0 0.0
        %1850 = vmatprep.subr.mxu0 0.0
        %1851 = vmatpush1.msra.mxu0 0.0
        %1852 = vmatprep.subr.mxu0 0.0
        %1853 = vmatpush1.msra.mxu0 0.0
        %1854 = vmatprep.subr.mxu0 0.0
        %1855 = vmatpush1.msra.mxu0 0.0
        %1856 = vmatprep.subr.mxu0 0.0
        %1857 = vmatpush1.msra.mxu0 0.0
        %1858 = vmatprep.subr.mxu0 0.0
        %1859 = vmatpush1.msra.mxu0 0.0
        %1860 = vmatprep.subr.mxu0 0.0
        %1861 = vmatpush1.msra.mxu0 0.0
        %1862 = vmatprep.subr.mxu0 0.0
        %1863 = vmatpush1.msra.mxu0 0.0
        %1864 = vmatprep.subr.mxu0 0.0
        %1865 = vmatpush1.msra.mxu0 0.0
        %1866 = vmatprep.subr.mxu0 0.0
        %1867 = vmatpush1.msra.mxu0 0.0
        %1868 = vmatprep.subr.mxu0 0.0
        %1869 = vmatpush1.msra.mxu0 0.0
        %1870 = vmatprep.subr.mxu0 0.0
        %1871 = vmatpush1.msra.mxu0 0.0
        %1872 = vmatprep.subr.mxu0 0.0
        %1873 = vmatpush1.msra.mxu0 0.0
        %1874 = vmatprep.subr.mxu0 0.0
        %1875 = vmatpush1.msra.mxu0 0.0
        %1876 = vmatprep.subr.mxu0 0.0
        %1877 = vmatpush1.msra.mxu0 0.0
        %1878 = vmatprep.subr.mxu0 0.0
        %1879 = vmatpush1.msra.mxu0 0.0
        %1880 = vmatprep.subr.mxu0 0.0
        %1881 = vmatpush1.msra.mxu0 0.0
        %1882 = vmatprep.subr.mxu0 0.0
        %1883 = vmatpush1.msra.mxu0 0.0
        %1884 = vmatprep.subr.mxu0 0.0
        %1885 = vmatpush1.msra.mxu0 0.0
        %1886 = vmatprep.subr.mxu0 0.0
        %1887 = vmatpush1.msra.mxu0 0.0
        %1888 = vmatprep.subr.mxu0 0.0
        %1889 = vmatpush1.msra.mxu0 0.0
        %1890 = vmatprep.subr.mxu0 0.0
        %1891 = vmatpush1.msra.mxu0 0.0
        %1892 = vmatprep.subr.mxu0 0.0
        %1893 = vmatpush1.msra.mxu0 0.0
        %1894 = vmatprep.subr.mxu0 0.0
        %1895 = vmatpush1.msra.mxu0 0.0
        %1896 = vmatprep.subr.mxu0 0.0
        %1897 = vmatpush1.msra.mxu0 0.0
        %1898 = vmatprep.subr.mxu0 0.0
        %1899 = vmatpush1.msra.mxu0 0.0
        %1900 = vmatprep.subr.mxu0 0.0
        %1901 = vmatpush1.msra.mxu0 0.0
        %1902 = vmatprep.subr.mxu0 0.0
        %1903 = vmatpush1.msra.mxu0 0.0
        %1904 = vmatprep.subr.mxu0 0.0
        %1905 = vmatpush1.msra.mxu0 0.0
        %1906 = vmatprep.subr.mxu0 0.0
        %1907 = vmatpush1.msra.mxu0 0.0
        %1908 = vmatprep.subr.mxu0 0.0
        %1909 = vmatpush1.msra.mxu0 0.0
        %1910 = vmatprep.mubr.f32.mxu0 0.0
        %1911 = vmatmul.mubr.f32.gmra.mrb[0].mxu0 %v1841
        %v1912 = vpop.f32.mrb[0].mxu0
        %v1913 = vadd.f32 0.0, %v1912
        %v1914 = vpop.f32.mrb[0].mxu0
        %1915 = vdwg.mxu0
        %v1916 = vld [vmem:[%s5] sm:$0xff]
        %v1917 = vld [vmem:[%s5 + $0x8] sm:$0xff]
        %v1918 = vsel %vm1840, %v1159, 0
        %1920 = vmatprep.subr.mxu0 0.0
        %1921 = vmatpush1.msra.mxu0 %v1844
        %1922 = vmatprep.subr.mxu0 0.0
        %1923 = vmatpush1.msra.mxu0 0.0
        %1924 = vmatprep.subr.mxu0 0.0
        %1925 = vmatpush1.msra.mxu0 0.0
        %1926 = vmatprep.subr.mxu0 0.0
        %1927 = vmatpush1.msra.mxu0 0.0
        %1928 = vmatprep.subr.mxu0 0.0
        %1929 = vmatpush1.msra.mxu0 0.0
        %1930 = vmatprep.subr.mxu0 0.0
        %1931 = vmatpush1.msra.mxu0 0.0
        %1932 = vmatprep.subr.mxu0 0.0
        %1933 = vmatpush1.msra.mxu0 0.0
        %1934 = vmatprep.subr.mxu0 0.0
        %1935 = vmatpush1.msra.mxu0 0.0
        %1936 = vmatprep.subr.mxu0 0.0
        %1937 = vmatpush1.msra.mxu0 0.0
        %1938 = vmatprep.subr.mxu0 0.0
        %1939 = vmatpush1.msra.mxu0 0.0
        %1940 = vmatprep.subr.mxu0 0.0
        %1941 = vmatpush1.msra.mxu0 0.0
        %1942 = vmatprep.subr.mxu0 0.0
        %1943 = vmatpush1.msra.mxu0 0.0
        %1944 = vmatprep.subr.mxu0 0.0
        %1945 = vmatpush1.msra.mxu0 0.0
        %1946 = vmatprep.subr.mxu0 0.0
        %1947 = vmatpush1.msra.mxu0 0.0
        %1948 = vmatprep.subr.mxu0 0.0
        %1949 = vmatpush1.msra.mxu0 0.0
        %1950 = vmatprep.subr.mxu0 0.0
        %1951 = vmatpush1.msra.mxu0 0.0
        %1952 = vmatprep.subr.mxu0 0.0
        %1953 = vmatpush1.msra.mxu0 0.0
        %1954 = vmatprep.subr.mxu0 0.0
        %1955 = vmatpush1.msra.mxu0 0.0
        %1956 = vmatprep.subr.mxu0 0.0
        %1957 = vmatpush1.msra.mxu0 0.0
        %1958 = vmatprep.subr.mxu0 0.0
        %1959 = vmatpush1.msra.mxu0 0.0
        %1960 = vmatprep.subr.mxu0 0.0
        %1961 = vmatpush1.msra.mxu0 0.0
        %1962 = vmatprep.subr.mxu0 0.0
        %1963 = vmatpush1.msra.mxu0 0.0
        %1964 = vmatprep.subr.mxu0 0.0
        %1965 = vmatpush1.msra.mxu0 0.0
        %1966 = vmatprep.subr.mxu0 0.0
        %1967 = vmatpush1.msra.mxu0 0.0
        %1968 = vmatprep.subr.mxu0 0.0
        %1969 = vmatpush1.msra.mxu0 0.0
        %1970 = vmatprep.subr.mxu0 0.0
        %1971 = vmatpush1.msra.mxu0 0.0
        %1972 = vmatprep.subr.mxu0 0.0
        %1973 = vmatpush1.msra.mxu0 0.0
        %1974 = vmatprep.subr.mxu0 0.0
        %1975 = vmatpush1.msra.mxu0 0.0
        %1976 = vmatprep.subr.mxu0 0.0
        %1977 = vmatpush1.msra.mxu0 0.0
        %1978 = vmatprep.subr.mxu0 0.0
        %1979 = vmatpush1.msra.mxu0 0.0
        %1980 = vmatprep.subr.mxu0 0.0
        %1981 = vmatpush1.msra.mxu0 0.0
        %1982 = vmatprep.subr.mxu0 0.0
        %1983 = vmatpush1.msra.mxu0 0.0
        %1984 = vmatprep.mubr.f32.mxu0 0.0
        %1985 = vmatmul.mubr.f32.gmra.mrb[0].mxu0 %v1918
        %v1986 = vpop.f32.mrb[0].mxu0
        %v1987 = vadd.f32 0.0, %v1986
        %v1988 = vpop.f32.mrb[0].mxu0
        %1989 = vdwg.mxu0
        %s1990 = scalar_lea.vmem %s5, 16
        %v1991 = vld [vmem:[%s1990] sm:$0xff]
        %v1992 = vld [vmem:[%s1990 + $0x8] sm:$0xff]
        %vm1993 = vcmask 130048
        %v1995 = vsel %vm1993, %v1987, 0
        %1997 = vmatprep.subr.mxu0 0.0
        %1998 = vmatpush1.msra.mxu0 %v1991
        %1999 = vmatprep.subr.mxu0 0.0
        %2000 = vmatpush1.msra.mxu0 %v1992
        %2001 = vmatprep.subr.mxu0 0.0
        %2002 = vmatpush1.msra.mxu0 0.0
        %2003 = vmatprep.subr.mxu0 0.0
        %2004 = vmatpush1.msra.mxu0 0.0
        %2005 = vmatprep.subr.mxu0 0.0
        %2006 = vmatpush1.msra.mxu0 0.0
        %2007 = vmatprep.subr.mxu0 0.0
        %2008 = vmatpush1.msra.mxu0 0.0
        %2009 = vmatprep.subr.mxu0 0.0
        %2010 = vmatpush1.msra.mxu0 0.0
        %2011 = vmatprep.subr.mxu0 0.0
        %2012 = vmatpush1.msra.mxu0 0.0
        %2013 = vmatprep.subr.mxu0 0.0
        %2014 = vmatpush1.msra.mxu0 0.0
        %2015 = vmatprep.subr.mxu0 0.0
        %2016 = vmatpush1.msra.mxu0 0.0
        %2017 = vmatprep.subr.mxu0 0.0
        %2018 = vmatpush1.msra.mxu0 0.0
        %2019 = vmatprep.subr.mxu0 0.0
        %2020 = vmatpush1.msra.mxu0 0.0
        %2021 = vmatprep.subr.mxu0 0.0
        %2022 = vmatpush1.msra.mxu0 0.0
        %2023 = vmatprep.subr.mxu0 0.0
        %2024 = vmatpush1.msra.mxu0 0.0
        %2025 = vmatprep.subr.mxu0 0.0
        %2026 = vmatpush1.msra.mxu0 0.0
        %2027 = vmatprep.subr.mxu0 0.0
        %2028 = vmatpush1.msra.mxu0 0.0
        %2029 = vmatprep.subr.mxu0 0.0
        %2030 = vmatpush1.msra.mxu0 0.0
        %2031 = vmatprep.subr.mxu0 0.0
        %2032 = vmatpush1.msra.mxu0 0.0
        %2033 = vmatprep.subr.mxu0 0.0
        %2034 = vmatpush1.msra.mxu0 0.0
        %2035 = vmatprep.subr.mxu0 0.0
        %2036 = vmatpush1.msra.mxu0 0.0
        %2037 = vmatprep.subr.mxu0 0.0
        %2038 = vmatpush1.msra.mxu0 0.0
        %2039 = vmatprep.subr.mxu0 0.0
        %2040 = vmatpush1.msra.mxu0 0.0
        %2041 = vmatprep.subr.mxu0 0.0
        %2042 = vmatpush1.msra.mxu0 0.0
        %2043 = vmatprep.subr.mxu0 0.0
        %2044 = vmatpush1.msra.mxu0 0.0
        %2045 = vmatprep.subr.mxu0 0.0
        %2046 = vmatpush1.msra.mxu0 0.0
        %2047 = vmatprep.subr.mxu0 0.0
        %2048 = vmatpush1.msra.mxu0 0.0
        %2049 = vmatprep.subr.mxu0 0.0
        %2050 = vmatpush1.msra.mxu0 0.0
        %2051 = vmatprep.subr.mxu0 0.0
        %2052 = vmatpush1.msra.mxu0 0.0
        %2053 = vmatprep.subr.mxu0 0.0
        %2054 = vmatpush1.msra.mxu0 0.0
        %2055 = vmatprep.subr.mxu0 0.0
        %2056 = vmatpush1.msra.mxu0 0.0
        %2057 = vmatprep.subr.mxu0 0.0
        %2058 = vmatpush1.msra.mxu0 0.0
        %2059 = vmatprep.subr.mxu0 0.0
        %2060 = vmatpush1.msra.mxu0 0.0
        %2061 = vmatprep.mubr.f32.mxu0 0.0
        %2062 = vmatmul.mubr.f32.gmra.mrb[0].mxu0 %v1995
        %v2063 = vpop.f32.mrb[0].mxu0
        %v2064 = vadd.f32 0.0, %v2063
        %v2065 = vpop.f32.mrb[0].mxu0
        %2066 = vdwg.mxu0
        %v2068 = vsel %vm1993, %v1913, 0
        %2070 = vmatprep.subr.mxu0 0.0
        %2071 = vmatpush1.msra.mxu0 %v1916
        %2072 = vmatprep.subr.mxu0 0.0
        %2073 = vmatpush1.msra.mxu0 %v1917
        %2074 = vmatprep.subr.mxu0 0.0
        %2075 = vmatpush1.msra.mxu0 0.0
        %2076 = vmatprep.subr.mxu0 0.0
        %2077 = vmatpush1.msra.mxu0 0.0
        %2078 = vmatprep.subr.mxu0 0.0
        %2079 = vmatpush1.msra.mxu0 0.0
        %2080 = vmatprep.subr.mxu0 0.0
        %2081 = vmatpush1.msra.mxu0 0.0
        %2082 = vmatprep.subr.mxu0 0.0
        %2083 = vmatpush1.msra.mxu0 0.0
        %2084 = vmatprep.subr.mxu0 0.0
        %2085 = vmatpush1.msra.mxu0 0.0
        %2086 = vmatprep.subr.mxu0 0.0
        %2087 = vmatpush1.msra.mxu0 0.0
        %2088 = vmatprep.subr.mxu0 0.0
        %2089 = vmatpush1.msra.mxu0 0.0
        %2090 = vmatprep.subr.mxu0 0.0
        %2091 = vmatpush1.msra.mxu0 0.0
        %2092 = vmatprep.subr.mxu0 0.0
        %2093 = vmatpush1.msra.mxu0 0.0
        %2094 = vmatprep.subr.mxu0 0.0
        %2095 = vmatpush1.msra.mxu0 0.0
        %2096 = vmatprep.subr.mxu0 0.0
        %2097 = vmatpush1.msra.mxu0 0.0
        %2098 = vmatprep.subr.mxu0 0.0
        %2099 = vmatpush1.msra.mxu0 0.0
        %2100 = vmatprep.subr.mxu0 0.0
        %2101 = vmatpush1.msra.mxu0 0.0
        %2102 = vmatprep.subr.mxu0 0.0
        %2103 = vmatpush1.msra.mxu0 0.0
        %2104 = vmatprep.subr.mxu0 0.0
        %2105 = vmatpush1.msra.mxu0 0.0
        %2106 = vmatprep.subr.mxu0 0.0
        %2107 = vmatpush1.msra.mxu0 0.0
        %2108 = vmatprep.subr.mxu0 0.0
        %2109 = vmatpush1.msra.mxu0 0.0
        %2110 = vmatprep.subr.mxu0 0.0
        %2111 = vmatpush1.msra.mxu0 0.0
        %2112 = vmatprep.subr.mxu0 0.0
        %2113 = vmatpush1.msra.mxu0 0.0
        %2114 = vmatprep.subr.mxu0 0.0
        %2115 = vmatpush1.msra.mxu0 0.0
        %2116 = vmatprep.subr.mxu0 0.0
        %2117 = vmatpush1.msra.mxu0 0.0
        %2118 = vmatprep.subr.mxu0 0.0
        %2119 = vmatpush1.msra.mxu0 0.0
        %2120 = vmatprep.subr.mxu0 0.0
        %2121 = vmatpush1.msra.mxu0 0.0
        %2122 = vmatprep.subr.mxu0 0.0
        %2123 = vmatpush1.msra.mxu0 0.0
        %2124 = vmatprep.subr.mxu0 0.0
        %2125 = vmatpush1.msra.mxu0 0.0
        %2126 = vmatprep.subr.mxu0 0.0
        %2127 = vmatpush1.msra.mxu0 0.0
        %2128 = vmatprep.subr.mxu0 0.0
        %2129 = vmatpush1.msra.mxu0 0.0
        %2130 = vmatprep.subr.mxu0 0.0
        %2131 = vmatpush1.msra.mxu0 0.0
        %2132 = vmatprep.subr.mxu0 0.0
        %2133 = vmatpush1.msra.mxu0 0.0
        %2134 = vmatprep.mubr.f32.mxu0 0.0
        %2135 = vmatmul.mubr.f32.gmra.mrb[0].mxu0 %v2068
        %v2136 = vpop.f32.mrb[0].mxu0
        %v2137 = vadd.f32 %v2064, %v2136
        %v2138 = vpop.f32.mrb[0].mxu0
        %2139 = vdwg.mxu0
        %v2140 = vsel %vm1840, %v895, 0
        %2142 = vmatprep.subr.mxu0 0.0
        %2143 = vmatpush1.msra.mxu0 %v1844
        %2144 = vmatprep.subr.mxu0 0.0
        %2145 = vmatpush1.msra.mxu0 0.0
        %2146 = vmatprep.subr.mxu0 0.0
        %2147 = vmatpush1.msra.mxu0 0.0
        %2148 = vmatprep.subr.mxu0 0.0
        %2149 = vmatpush1.msra.mxu0 0.0
        %2150 = vmatprep.subr.mxu0 0.0
        %2151 = vmatpush1.msra.mxu0 0.0
        %2152 = vmatprep.subr.mxu0 0.0
        %2153 = vmatpush1.msra.mxu0 0.0
        %2154 = vmatprep.subr.mxu0 0.0
        %2155 = vmatpush1.msra.mxu0 0.0
        %2156 = vmatprep.subr.mxu0 0.0
        %2157 = vmatpush1.msra.mxu0 0.0
        %2158 = vmatprep.subr.mxu0 0.0
        %2159 = vmatpush1.msra.mxu0 0.0
        %2160 = vmatprep.subr.mxu0 0.0
        %2161 = vmatpush1.msra.mxu0 0.0
        %2162 = vmatprep.subr.mxu0 0.0
        %2163 = vmatpush1.msra.mxu0 0.0
        %2164 = vmatprep.subr.mxu0 0.0
        %2165 = vmatpush1.msra.mxu0 0.0
        %2166 = vmatprep.subr.mxu0 0.0
        %2167 = vmatpush1.msra.mxu0 0.0
        %2168 = vmatprep.subr.mxu0 0.0
        %2169 = vmatpush1.msra.mxu0 0.0
        %2170 = vmatprep.subr.mxu0 0.0
        %2171 = vmatpush1.msra.mxu0 0.0
        %2172 = vmatprep.subr.mxu0 0.0
        %2173 = vmatpush1.msra.mxu0 0.0
        %2174 = vmatprep.subr.mxu0 0.0
        %2175 = vmatpush1.msra.mxu0 0.0
        %2176 = vmatprep.subr.mxu0 0.0
        %2177 = vmatpush1.msra.mxu0 0.0
        %2178 = vmatprep.subr.mxu0 0.0
        %2179 = vmatpush1.msra.mxu0 0.0
        %2180 = vmatprep.subr.mxu0 0.0
        %2181 = vmatpush1.msra.mxu0 0.0
        %2182 = vmatprep.subr.mxu0 0.0
        %2183 = vmatpush1.msra.mxu0 0.0
        %2184 = vmatprep.subr.mxu0 0.0
        %2185 = vmatpush1.msra.mxu0 0.0
        %2186 = vmatprep.subr.mxu0 0.0
        %2187 = vmatpush1.msra.mxu0 0.0
        %2188 = vmatprep.subr.mxu0 0.0
        %2189 = vmatpush1.msra.mxu0 0.0
        %2190 = vmatprep.subr.mxu0 0.0
        %2191 = vmatpush1.msra.mxu0 0.0
        %2192 = vmatprep.subr.mxu0 0.0
        %2193 = vmatpush1.msra.mxu0 0.0
        %2194 = vmatprep.subr.mxu0 0.0
        %2195 = vmatpush1.msra.mxu0 0.0
        %2196 = vmatprep.subr.mxu0 0.0
        %2197 = vmatpush1.msra.mxu0 0.0
        %2198 = vmatprep.subr.mxu0 0.0
        %2199 = vmatpush1.msra.mxu0 0.0
        %2200 = vmatprep.subr.mxu0 0.0
        %2201 = vmatpush1.msra.mxu0 0.0
        %2202 = vmatprep.subr.mxu0 0.0
        %2203 = vmatpush1.msra.mxu0 0.0
        %2204 = vmatprep.subr.mxu0 0.0
        %2205 = vmatpush1.msra.mxu0 0.0
        %2206 = vmatprep.mubr.f32.mxu0 0.0
        %2207 = vmatmul.mubr.f32.gmra.mrb[0].mxu0 %v2140
        %v2208 = vpop.f32.mrb[0].mxu0
        %v2209 = vadd.f32 0.0, %v2208
        %v2210 = vpop.f32.mrb[0].mxu0
        %2211 = vdwg.mxu0
        %s2212 = scalar_lea.vmem %s5, 32
        %v2213 = vld [vmem:[%s2212] sm:$0xff]
        %v2214 = vld [vmem:[%s2212 + $0x8] sm:$0xff]
        %v2216 = vsel %vm1993, %v2209, 0
        %2218 = vmatprep.subr.mxu0 0.0
        %2219 = vmatpush1.msra.mxu0 %v2213
        %2220 = vmatprep.subr.mxu0 0.0
        %2221 = vmatpush1.msra.mxu0 %v2214
        %2222 = vmatprep.subr.mxu0 0.0
        %2223 = vmatpush1.msra.mxu0 0.0
        %2224 = vmatprep.subr.mxu0 0.0
        %2225 = vmatpush1.msra.mxu0 0.0
        %2226 = vmatprep.subr.mxu0 0.0
        %2227 = vmatpush1.msra.mxu0 0.0
        %2228 = vmatprep.subr.mxu0 0.0
        %2229 = vmatpush1.msra.mxu0 0.0
        %2230 = vmatprep.subr.mxu0 0.0
        %2231 = vmatpush1.msra.mxu0 0.0
        %2232 = vmatprep.subr.mxu0 0.0
        %2233 = vmatpush1.msra.mxu0 0.0
        %2234 = vmatprep.subr.mxu0 0.0
        %2235 = vmatpush1.msra.mxu0 0.0
        %2236 = vmatprep.subr.mxu0 0.0
        %2237 = vmatpush1.msra.mxu0 0.0
        %2238 = vmatprep.subr.mxu0 0.0
        %2239 = vmatpush1.msra.mxu0 0.0
        %2240 = vmatprep.subr.mxu0 0.0
        %2241 = vmatpush1.msra.mxu0 0.0
        %2242 = vmatprep.subr.mxu0 0.0
        %2243 = vmatpush1.msra.mxu0 0.0
        %2244 = vmatprep.subr.mxu0 0.0
        %2245 = vmatpush1.msra.mxu0 0.0
        %2246 = vmatprep.subr.mxu0 0.0
        %2247 = vmatpush1.msra.mxu0 0.0
        %2248 = vmatprep.subr.mxu0 0.0
        %2249 = vmatpush1.msra.mxu0 0.0
        %2250 = vmatprep.subr.mxu0 0.0
        %2251 = vmatpush1.msra.mxu0 0.0
        %2252 = vmatprep.subr.mxu0 0.0
        %2253 = vmatpush1.msra.mxu0 0.0
        %2254 = vmatprep.subr.mxu0 0.0
        %2255 = vmatpush1.msra.mxu0 0.0
        %2256 = vmatprep.subr.mxu0 0.0
        %2257 = vmatpush1.msra.mxu0 0.0
        %2258 = vmatprep.subr.mxu0 0.0
        %2259 = vmatpush1.msra.mxu0 0.0
        %2260 = vmatprep.subr.mxu0 0.0
        %2261 = vmatpush1.msra.mxu0 0.0
        %2262 = vmatprep.subr.mxu0 0.0
        %2263 = vmatpush1.msra.mxu0 0.0
        %2264 = vmatprep.subr.mxu0 0.0
        %2265 = vmatpush1.msra.mxu0 0.0
        %2266 = vmatprep.subr.mxu0 0.0
        %2267 = vmatpush1.msra.mxu0 0.0
        %2268 = vmatprep.subr.mxu0 0.0
        %2269 = vmatpush1.msra.mxu0 0.0
        %2270 = vmatprep.subr.mxu0 0.0
        %2271 = vmatpush1.msra.mxu0 0.0
        %2272 = vmatprep.subr.mxu0 0.0
        %2273 = vmatpush1.msra.mxu0 0.0
        %2274 = vmatprep.subr.mxu0 0.0
        %2275 = vmatpush1.msra.mxu0 0.0
        %2276 = vmatprep.subr.mxu0 0.0
        %2277 = vmatpush1.msra.mxu0 0.0
        %2278 = vmatprep.subr.mxu0 0.0
        %2279 = vmatpush1.msra.mxu0 0.0
        %2280 = vmatprep.subr.mxu0 0.0
        %2281 = vmatpush1.msra.mxu0 0.0
        %2282 = vmatprep.mubr.f32.mxu0 0.0
        %2283 = vmatmul.mubr.f32.gmra.mrb[0].mxu0 %v2216
        %v2284 = vpop.f32.mrb[0].mxu0
        %v2285 = vadd.f32 0.0, %v2284
        %v2286 = vpop.f32.mrb[0].mxu0
        %2287 = vdwg.mxu0
        %v2288 = vadd.f32 %v2137, %v2285
        %v2289 = vsel %vm1840, %v989, 0
        %2291 = vmatprep.subr.mxu0 0.0
        %2292 = vmatpush1.msra.mxu0 %v1844
        %2293 = vmatprep.subr.mxu0 0.0
        %2294 = vmatpush1.msra.mxu0 0.0
        %2295 = vmatprep.subr.mxu0 0.0
        %2296 = vmatpush1.msra.mxu0 0.0
        %2297 = vmatprep.subr.mxu0 0.0
        %2298 = vmatpush1.msra.mxu0 0.0
        %2299 = vmatprep.subr.mxu0 0.0
        %2300 = vmatpush1.msra.mxu0 0.0
        %2301 = vmatprep.subr.mxu0 0.0
        %2302 = vmatpush1.msra.mxu0 0.0
        %2303 = vmatprep.subr.mxu0 0.0
        %2304 = vmatpush1.msra.mxu0 0.0
        %2305 = vmatprep.subr.mxu0 0.0
        %2306 = vmatpush1.msra.mxu0 0.0
        %2307 = vmatprep.subr.mxu0 0.0
        %2308 = vmatpush1.msra.mxu0 0.0
        %2309 = vmatprep.subr.mxu0 0.0
        %2310 = vmatpush1.msra.mxu0 0.0
        %2311 = vmatprep.subr.mxu0 0.0
        %2312 = vmatpush1.msra.mxu0 0.0
        %2313 = vmatprep.subr.mxu0 0.0
        %2314 = vmatpush1.msra.mxu0 0.0
        %2315 = vmatprep.subr.mxu0 0.0
        %2316 = vmatpush1.msra.mxu0 0.0
        %2317 = vmatprep.subr.mxu0 0.0
        %2318 = vmatpush1.msra.mxu0 0.0
        %2319 = vmatprep.subr.mxu0 0.0
        %2320 = vmatpush1.msra.mxu0 0.0
        %2321 = vmatprep.subr.mxu0 0.0
        %2322 = vmatpush1.msra.mxu0 0.0
        %2323 = vmatprep.subr.mxu0 0.0
        %2324 = vmatpush1.msra.mxu0 0.0
        %2325 = vmatprep.subr.mxu0 0.0
        %2326 = vmatpush1.msra.mxu0 0.0
        %2327 = vmatprep.subr.mxu0 0.0
        %2328 = vmatpush1.msra.mxu0 0.0
        %2329 = vmatprep.subr.mxu0 0.0
        %2330 = vmatpush1.msra.mxu0 0.0
        %2331 = vmatprep.subr.mxu0 0.0
        %2332 = vmatpush1.msra.mxu0 0.0
        %2333 = vmatprep.subr.mxu0 0.0
        %2334 = vmatpush1.msra.mxu0 0.0
        %2335 = vmatprep.subr.mxu0 0.0
        %2336 = vmatpush1.msra.mxu0 0.0
        %2337 = vmatprep.subr.mxu0 0.0
        %2338 = vmatpush1.msra.mxu0 0.0
        %2339 = vmatprep.subr.mxu0 0.0
        %2340 = vmatpush1.msra.mxu0 0.0
        %2341 = vmatprep.subr.mxu0 0.0
        %2342 = vmatpush1.msra.mxu0 0.0
        %2343 = vmatprep.subr.mxu0 0.0
        %2344 = vmatpush1.msra.mxu0 0.0
        %2345 = vmatprep.subr.mxu0 0.0
        %2346 = vmatpush1.msra.mxu0 0.0
        %2347 = vmatprep.subr.mxu0 0.0
        %2348 = vmatpush1.msra.mxu0 0.0
        %2349 = vmatprep.subr.mxu0 0.0
        %2350 = vmatpush1.msra.mxu0 0.0
        %2351 = vmatprep.subr.mxu0 0.0
        %2352 = vmatpush1.msra.mxu0 0.0
        %2353 = vmatprep.subr.mxu0 0.0
        %2354 = vmatpush1.msra.mxu0 0.0
        %2355 = vmatprep.mubr.f32.mxu0 0.0
        %2356 = vmatmul.mubr.f32.gmra.mrb[0].mxu0 %v2289
        %v2357 = vpop.f32.mrb[0].mxu0
        %v2358 = vadd.f32 0.0, %v2357
        %v2359 = vpop.f32.mrb[0].mxu0
        %2360 = vdwg.mxu0
        %s2361 = scalar_lea.vmem %s5, 48
        %v2362 = vld [vmem:[%s2361] sm:$0xff]
        %v2363 = vld [vmem:[%s2361 + $0x8] sm:$0xff]
        %v2365 = vsel %vm1993, %v2358, 0
        %2367 = vmatprep.subr.mxu0 0.0
        %2368 = vmatpush1.msra.mxu0 %v2362
        %2369 = vmatprep.subr.mxu0 0.0
        %2370 = vmatpush1.msra.mxu0 %v2363
        %2371 = vmatprep.subr.mxu0 0.0
        %2372 = vmatpush1.msra.mxu0 0.0
        %2373 = vmatprep.subr.mxu0 0.0
        %2374 = vmatpush1.msra.mxu0 0.0
        %2375 = vmatprep.subr.mxu0 0.0
        %2376 = vmatpush1.msra.mxu0 0.0
        %2377 = vmatprep.subr.mxu0 0.0
        %2378 = vmatpush1.msra.mxu0 0.0
        %2379 = vmatprep.subr.mxu0 0.0
        %2380 = vmatpush1.msra.mxu0 0.0
        %2381 = vmatprep.subr.mxu0 0.0
        %2382 = vmatpush1.msra.mxu0 0.0
        %2383 = vmatprep.subr.mxu0 0.0
        %2384 = vmatpush1.msra.mxu0 0.0
        %2385 = vmatprep.subr.mxu0 0.0
        %2386 = vmatpush1.msra.mxu0 0.0
        %2387 = vmatprep.subr.mxu0 0.0
        %2388 = vmatpush1.msra.mxu0 0.0
        %2389 = vmatprep.subr.mxu0 0.0
        %2390 = vmatpush1.msra.mxu0 0.0
        %2391 = vmatprep.subr.mxu0 0.0
        %2392 = vmatpush1.msra.mxu0 0.0
        %2393 = vmatprep.subr.mxu0 0.0
        %2394 = vmatpush1.msra.mxu0 0.0
        %2395 = vmatprep.subr.mxu0 0.0
        %2396 = vmatpush1.msra.mxu0 0.0
        %2397 = vmatprep.subr.mxu0 0.0
        %2398 = vmatpush1.msra.mxu0 0.0
        %2399 = vmatprep.subr.mxu0 0.0
        %2400 = vmatpush1.msra.mxu0 0.0
        %2401 = vmatprep.subr.mxu0 0.0
        %2402 = vmatpush1.msra.mxu0 0.0
        %2403 = vmatprep.subr.mxu0 0.0
        %2404 = vmatpush1.msra.mxu0 0.0
        %2405 = vmatprep.subr.mxu0 0.0
        %2406 = vmatpush1.msra.mxu0 0.0
        %2407 = vmatprep.subr.mxu0 0.0
        %2408 = vmatpush1.msra.mxu0 0.0
        %2409 = vmatprep.subr.mxu0 0.0
        %2410 = vmatpush1.msra.mxu0 0.0
        %2411 = vmatprep.subr.mxu0 0.0
        %2412 = vmatpush1.msra.mxu0 0.0
        %2413 = vmatprep.subr.mxu0 0.0
        %2414 = vmatpush1.msra.mxu0 0.0
        %2415 = vmatprep.subr.mxu0 0.0
        %2416 = vmatpush1.msra.mxu0 0.0
        %2417 = vmatprep.subr.mxu0 0.0
        %2418 = vmatpush1.msra.mxu0 0.0
        %2419 = vmatprep.subr.mxu0 0.0
        %2420 = vmatpush1.msra.mxu0 0.0
        %2421 = vmatprep.subr.mxu0 0.0
        %2422 = vmatpush1.msra.mxu0 0.0
        %2423 = vmatprep.subr.mxu0 0.0
        %2424 = vmatpush1.msra.mxu0 0.0
        %2425 = vmatprep.subr.mxu0 0.0
        %2426 = vmatpush1.msra.mxu0 0.0
        %2427 = vmatprep.subr.mxu0 0.0
        %2428 = vmatpush1.msra.mxu0 0.0
        %2429 = vmatprep.subr.mxu0 0.0
        %2430 = vmatpush1.msra.mxu0 0.0
        %2431 = vmatprep.mubr.f32.mxu0 0.0
        %2432 = vmatmul.mubr.f32.gmra.mrb[0].mxu0 %v2365
        %v2433 = vpop.f32.mrb[0].mxu0
        %v2434 = vadd.f32 0.0, %v2433
        %v2435 = vpop.f32.mrb[0].mxu0
        %2436 = vdwg.mxu0
        %v2437 = vadd.f32 %v2288, %v2434
        %v2438 = vld [vmem:[%s6] sm:$0x1]
        %v2440 = vlaneseq
        %v2441 = vshrl.u32 %v2440, 7
        %v2442 = vsub.s32 0, %v2441
        %v2443 = vrot.slane %v2438, %v2442
        %v2445 = vadd.f32 %v2437, %v2443
        %v2446 = vmax.f32 %v2445, 0.0
        %v2447 = vadd.s32 %v885, 4294967295
        %vm2448 = vcmp.eq.s32.totalorder %v888, %v2447
        %v2449 = vsel %vm2448, 1, 0
        %v2450 = vcvt.s32.f32 %v2449
        %vm2451 = vcmask 31744
        %v2453 = vsel %vm2451, %v2450, 0
        %v2456 = vsel %vm904, %v2446, 0
        %2458 = vmatprep.subr.mxu0 0.0
        %2459 = vmatpush1.msra.mxu0 %v2456
        %2460 = vmatprep.subr.mxu0 0.0
        %2461 = vmatpush1.msra.mxu0 0.0
        %2462 = vmatprep.subr.mxu0 0.0
        %2463 = vmatpush1.msra.mxu0 0.0
        %2464 = vmatprep.subr.mxu0 0.0
        %2465 = vmatpush1.msra.mxu0 0.0
        %2466 = vmatprep.subr.mxu0 0.0
        %2467 = vmatpush1.msra.mxu0 0.0
        %2468 = vmatprep.subr.mxu0 0.0
        %2469 = vmatpush1.msra.mxu0 0.0
        %2470 = vmatprep.subr.mxu0 0.0
        %2471 = vmatpush1.msra.mxu0 0.0
        %2472 = vmatprep.subr.mxu0 0.0
        %2473 = vmatpush1.msra.mxu0 0.0
        %2474 = vmatprep.subr.mxu0 0.0
        %2475 = vmatpush1.msra.mxu0 0.0
        %2476 = vmatprep.subr.mxu0 0.0
        %2477 = vmatpush1.msra.mxu0 0.0
        %2478 = vmatprep.subr.mxu0 0.0
        %2479 = vmatpush1.msra.mxu0 0.0
        %2480 = vmatprep.subr.mxu0 0.0
        %2481 = vmatpush1.msra.mxu0 0.0
        %2482 = vmatprep.subr.mxu0 0.0
        %2483 = vmatpush1.msra.mxu0 0.0
        %2484 = vmatprep.subr.mxu0 0.0
        %2485 = vmatpush1.msra.mxu0 0.0
        %2486 = vmatprep.subr.mxu0 0.0
        %2487 = vmatpush1.msra.mxu0 0.0
        %2488 = vmatprep.subr.mxu0 0.0
        %2489 = vmatpush1.msra.mxu0 0.0
        %2490 = vmatprep.subr.mxu0 0.0
        %2491 = vmatpush1.msra.mxu0 0.0
        %2492 = vmatprep.subr.mxu0 0.0
        %2493 = vmatpush1.msra.mxu0 0.0
        %2494 = vmatprep.subr.mxu0 0.0
        %2495 = vmatpush1.msra.mxu0 0.0
        %2496 = vmatprep.subr.mxu0 0.0
        %2497 = vmatpush1.msra.mxu0 0.0
        %2498 = vmatprep.subr.mxu0 0.0
        %2499 = vmatpush1.msra.mxu0 0.0
        %2500 = vmatprep.subr.mxu0 0.0
        %2501 = vmatpush1.msra.mxu0 0.0
        %2502 = vmatprep.subr.mxu0 0.0
        %2503 = vmatpush1.msra.mxu0 0.0
        %2504 = vmatprep.subr.mxu0 0.0
        %2505 = vmatpush1.msra.mxu0 0.0
        %2506 = vmatprep.subr.mxu0 0.0
        %2507 = vmatpush1.msra.mxu0 0.0
        %2508 = vmatprep.subr.mxu0 0.0
        %2509 = vmatpush1.msra.mxu0 0.0
        %2510 = vmatprep.subr.mxu0 0.0
        %2511 = vmatpush1.msra.mxu0 0.0
        %2512 = vmatprep.subr.mxu0 0.0
        %2513 = vmatpush1.msra.mxu0 0.0
        %2514 = vmatprep.subr.mxu0 0.0
        %2515 = vmatpush1.msra.mxu0 0.0
        %2516 = vmatprep.subr.mxu0 0.0
        %2517 = vmatpush1.msra.mxu0 0.0
        %2518 = vmatprep.subr.mxu0 0.0
        %2519 = vmatpush1.msra.mxu0 0.0
        %2520 = vmatprep.subr.mxu0 0.0
        %2521 = vmatpush1.msra.mxu0 0.0
        %2522 = vmatprep.mubr.f32.mxu0 0.0
        %2523 = vmatmul.mubr.f32.gmra.mrb[0].mxu0 %v2453
        %v2524 = vpop.f32.mrb[0].mxu0
        %v2525 = vadd.f32 0.0, %v2524
        %v2526 = vpop.f32.mrb[0].mxu0
        %2527 = vdwg.mxu0
        %v2528 = vld [vmem:[%s7] sm:$0xff]
        %v2529 = vld [vmem:[%s7 + $0x8] sm:$0xff]
        %v2530 = vld [vmem:[%s7 + $0x10] sm:$0xff]
        %v2531 = vld [vmem:[%s7 + $0x18] sm:$0xff]
        %vm2532 = vcmp.eq.s32.totalorder %v888, %v885
        %v2533 = vsel %vm2532, 1, 0
        %v2534 = vcvt.s32.f32 %v2533
        %v2536 = vsel %vm2451, %v2534, 0
        %2538 = vmatprep.subr.mxu0 0.0
        %2539 = vmatpush1.msra.mxu0 %v2456
        %2540 = vmatprep.subr.mxu0 0.0
        %2541 = vmatpush1.msra.mxu0 0.0
        %2542 = vmatprep.subr.mxu0 0.0
        %2543 = vmatpush1.msra.mxu0 0.0
        %2544 = vmatprep.subr.mxu0 0.0
        %2545 = vmatpush1.msra.mxu0 0.0
        %2546 = vmatprep.subr.mxu0 0.0
        %2547 = vmatpush1.msra.mxu0 0.0
        %2548 = vmatprep.subr.mxu0 0.0
        %2549 = vmatpush1.msra.mxu0 0.0
        %2550 = vmatprep.subr.mxu0 0.0
        %2551 = vmatpush1.msra.mxu0 0.0
        %2552 = vmatprep.subr.mxu0 0.0
        %2553 = vmatpush1.msra.mxu0 0.0
        %2554 = vmatprep.subr.mxu0 0.0
        %2555 = vmatpush1.msra.mxu0 0.0
        %2556 = vmatprep.subr.mxu0 0.0
        %2557 = vmatpush1.msra.mxu0 0.0
        %2558 = vmatprep.subr.mxu0 0.0
        %2559 = vmatpush1.msra.mxu0 0.0
        %2560 = vmatprep.subr.mxu0 0.0
        %2561 = vmatpush1.msra.mxu0 0.0
        %2562 = vmatprep.subr.mxu0 0.0
        %2563 = vmatpush1.msra.mxu0 0.0
        %2564 = vmatprep.subr.mxu0 0.0
        %2565 = vmatpush1.msra.mxu0 0.0
        %2566 = vmatprep.subr.mxu0 0.0
        %2567 = vmatpush1.msra.mxu0 0.0
        %2568 = vmatprep.subr.mxu0 0.0
        %2569 = vmatpush1.msra.mxu0 0.0
        %2570 = vmatprep.subr.mxu0 0.0
        %2571 = vmatpush1.msra.mxu0 0.0
        %2572 = vmatprep.subr.mxu0 0.0
        %2573 = vmatpush1.msra.mxu0 0.0
        %2574 = vmatprep.subr.mxu0 0.0
        %2575 = vmatpush1.msra.mxu0 0.0
        %2576 = vmatprep.subr.mxu0 0.0
        %2577 = vmatpush1.msra.mxu0 0.0
        %2578 = vmatprep.subr.mxu0 0.0
        %2579 = vmatpush1.msra.mxu0 0.0
        %2580 = vmatprep.subr.mxu0 0.0
        %2581 = vmatpush1.msra.mxu0 0.0
        %2582 = vmatprep.subr.mxu0 0.0
        %2583 = vmatpush1.msra.mxu0 0.0
        %2584 = vmatprep.subr.mxu0 0.0
        %2585 = vmatpush1.msra.mxu0 0.0
        %2586 = vmatprep.subr.mxu0 0.0
        %2587 = vmatpush1.msra.mxu0 0.0
        %2588 = vmatprep.subr.mxu0 0.0
        %2589 = vmatpush1.msra.mxu0 0.0
        %2590 = vmatprep.subr.mxu0 0.0
        %2591 = vmatpush1.msra.mxu0 0.0
        %2592 = vmatprep.subr.mxu0 0.0
        %2593 = vmatpush1.msra.mxu0 0.0
        %2594 = vmatprep.subr.mxu0 0.0
        %2595 = vmatpush1.msra.mxu0 0.0
        %2596 = vmatprep.subr.mxu0 0.0
        %2597 = vmatpush1.msra.mxu0 0.0
        %2598 = vmatprep.subr.mxu0 0.0
        %2599 = vmatpush1.msra.mxu0 0.0
        %2600 = vmatprep.subr.mxu0 0.0
        %2601 = vmatpush1.msra.mxu0 0.0
        %2602 = vmatprep.mubr.f32.mxu0 0.0
        %2603 = vmatmul.mubr.f32.gmra.mrb[0].mxu0 %v2536
        %v2604 = vpop.f32.mrb[0].mxu0
        %v2605 = vadd.f32 0.0, %v2604
        %v2606 = vpop.f32.mrb[0].mxu0
        %2607 = vdwg.mxu0
        %s2608 = scalar_lea.vmem %s7, 32
        %v2609 = vld [vmem:[%s2608] sm:$0xff]
        %v2610 = vld [vmem:[%s2608 + $0x8] sm:$0xff]
        %v2611 = vld [vmem:[%s2608 + $0x10] sm:$0xff]
        %v2612 = vld [vmem:[%s2608 + $0x18] sm:$0xff]
        %vm2613 = vcmask 261120
        %v2615 = vsel %vm2613, %v2605, 0
        %2617 = vmatprep.subr.mxu0 0.0
        %2618 = vmatpush1.msra.mxu0 %v2609
        %2619 = vmatprep.subr.mxu0 0.0
        %2620 = vmatpush1.msra.mxu0 %v2610
        %2621 = vmatprep.subr.mxu0 0.0
        %2622 = vmatpush1.msra.mxu0 %v2611
        %2623 = vmatprep.subr.mxu0 0.0
        %2624 = vmatpush1.msra.mxu0 %v2612
        %2625 = vmatprep.subr.mxu0 0.0
        %2626 = vmatpush1.msra.mxu0 0.0
        %2627 = vmatprep.subr.mxu0 0.0
        %2628 = vmatpush1.msra.mxu0 0.0
        %2629 = vmatprep.subr.mxu0 0.0
        %2630 = vmatpush1.msra.mxu0 0.0
        %2631 = vmatprep.subr.mxu0 0.0
        %2632 = vmatpush1.msra.mxu0 0.0
        %2633 = vmatprep.subr.mxu0 0.0
        %2634 = vmatpush1.msra.mxu0 0.0
        %2635 = vmatprep.subr.mxu0 0.0
        %2636 = vmatpush1.msra.mxu0 0.0
        %2637 = vmatprep.subr.mxu0 0.0
        %2638 = vmatpush1.msra.mxu0 0.0
        %2639 = vmatprep.subr.mxu0 0.0
        %2640 = vmatpush1.msra.mxu0 0.0
        %2641 = vmatprep.subr.mxu0 0.0
        %2642 = vmatpush1.msra.mxu0 0.0
        %2643 = vmatprep.subr.mxu0 0.0
        %2644 = vmatpush1.msra.mxu0 0.0
        %2645 = vmatprep.subr.mxu0 0.0
        %2646 = vmatpush1.msra.mxu0 0.0
        %2647 = vmatprep.subr.mxu0 0.0
        %2648 = vmatpush1.msra.mxu0 0.0
        %2649 = vmatprep.subr.mxu0 0.0
        %2650 = vmatpush1.msra.mxu0 0.0
        %2651 = vmatprep.subr.mxu0 0.0
        %2652 = vmatpush1.msra.mxu0 0.0
        %2653 = vmatprep.subr.mxu0 0.0
        %2654 = vmatpush1.msra.mxu0 0.0
        %2655 = vmatprep.subr.mxu0 0.0
        %2656 = vmatpush1.msra.mxu0 0.0
        %2657 = vmatprep.subr.mxu0 0.0
        %2658 = vmatpush1.msra.mxu0 0.0
        %2659 = vmatprep.subr.mxu0 0.0
        %2660 = vmatpush1.msra.mxu0 0.0
        %2661 = vmatprep.subr.mxu0 0.0
        %2662 = vmatpush1.msra.mxu0 0.0
        %2663 = vmatprep.subr.mxu0 0.0
        %2664 = vmatpush1.msra.mxu0 0.0
        %2665 = vmatprep.subr.mxu0 0.0
        %2666 = vmatpush1.msra.mxu0 0.0
        %2667 = vmatprep.subr.mxu0 0.0
        %2668 = vmatpush1.msra.mxu0 0.0
        %2669 = vmatprep.subr.mxu0 0.0
        %2670 = vmatpush1.msra.mxu0 0.0
        %2671 = vmatprep.subr.mxu0 0.0
        %2672 = vmatpush1.msra.mxu0 0.0
        %2673 = vmatprep.subr.mxu0 0.0
        %2674 = vmatpush1.msra.mxu0 0.0
        %2675 = vmatprep.subr.mxu0 0.0
        %2676 = vmatpush1.msra.mxu0 0.0
        %2677 = vmatprep.subr.mxu0 0.0
        %2678 = vmatpush1.msra.mxu0 0.0
        %2679 = vmatprep.subr.mxu0 0.0
        %2680 = vmatpush1.msra.mxu0 0.0
        %2681 = vmatprep.mubr.f32.mxu0 0.0
        %2682 = vmatmul.mubr.f32.gmra.mrb[0].mxu0 %v2615
        %v2683 = vpop.f32.mrb[0].mxu0
        %v2684 = vadd.f32 0.0, %v2683
        %v2685 = vpop.f32.mrb[0].mxu0
        %2686 = vdwg.mxu0
        %v2688 = vsel %vm2613, %v2525, 0
        %2690 = vmatprep.subr.mxu0 0.0
        %2691 = vmatpush1.msra.mxu0 %v2528
        %2692 = vmatprep.subr.mxu0 0.0
        %2693 = vmatpush1.msra.mxu0 %v2529
        %2694 = vmatprep.subr.mxu0 0.0
        %2695 = vmatpush1.msra.mxu0 %v2530
        %2696 = vmatprep.subr.mxu0 0.0
        %2697 = vmatpush1.msra.mxu0 %v2531
        %2698 = vmatprep.subr.mxu0 0.0
        %2699 = vmatpush1.msra.mxu0 0.0
        %2700 = vmatprep.subr.mxu0 0.0
        %2701 = vmatpush1.msra.mxu0 0.0
        %2702 = vmatprep.subr.mxu0 0.0
        %2703 = vmatpush1.msra.mxu0 0.0
        %2704 = vmatprep.subr.mxu0 0.0
        %2705 = vmatpush1.msra.mxu0 0.0
        %2706 = vmatprep.subr.mxu0 0.0
        %2707 = vmatpush1.msra.mxu0 0.0
        %2708 = vmatprep.subr.mxu0 0.0
        %2709 = vmatpush1.msra.mxu0 0.0
        %2710 = vmatprep.subr.mxu0 0.0
        %2711 = vmatpush1.msra.mxu0 0.0
        %2712 = vmatprep.subr.mxu0 0.0
        %2713 = vmatpush1.msra.mxu0 0.0
        %2714 = vmatprep.subr.mxu0 0.0
        %2715 = vmatpush1.msra.mxu0 0.0
        %2716 = vmatprep.subr.mxu0 0.0
        %2717 = vmatpush1.msra.mxu0 0.0
        %2718 = vmatprep.subr.mxu0 0.0
        %2719 = vmatpush1.msra.mxu0 0.0
        %2720 = vmatprep.subr.mxu0 0.0
        %2721 = vmatpush1.msra.mxu0 0.0
        %2722 = vmatprep.subr.mxu0 0.0
        %2723 = vmatpush1.msra.mxu0 0.0
        %2724 = vmatprep.subr.mxu0 0.0
        %2725 = vmatpush1.msra.mxu0 0.0
        %2726 = vmatprep.subr.mxu0 0.0
        %2727 = vmatpush1.msra.mxu0 0.0
        %2728 = vmatprep.subr.mxu0 0.0
        %2729 = vmatpush1.msra.mxu0 0.0
        %2730 = vmatprep.subr.mxu0 0.0
        %2731 = vmatpush1.msra.mxu0 0.0
        %2732 = vmatprep.subr.mxu0 0.0
        %2733 = vmatpush1.msra.mxu0 0.0
        %2734 = vmatprep.subr.mxu0 0.0
        %2735 = vmatpush1.msra.mxu0 0.0
        %2736 = vmatprep.subr.mxu0 0.0
        %2737 = vmatpush1.msra.mxu0 0.0
        %2738 = vmatprep.subr.mxu0 0.0
        %2739 = vmatpush1.msra.mxu0 0.0
        %2740 = vmatprep.subr.mxu0 0.0
        %2741 = vmatpush1.msra.mxu0 0.0
        %2742 = vmatprep.subr.mxu0 0.0
        %2743 = vmatpush1.msra.mxu0 0.0
        %2744 = vmatprep.subr.mxu0 0.0
        %2745 = vmatpush1.msra.mxu0 0.0
        %2746 = vmatprep.subr.mxu0 0.0
        %2747 = vmatpush1.msra.mxu0 0.0
        %2748 = vmatprep.subr.mxu0 0.0
        %2749 = vmatpush1.msra.mxu0 0.0
        %2750 = vmatprep.subr.mxu0 0.0
        %2751 = vmatpush1.msra.mxu0 0.0
        %2752 = vmatprep.subr.mxu0 0.0
        %2753 = vmatpush1.msra.mxu0 0.0
        %2754 = vmatprep.mubr.f32.mxu0 0.0
        %2755 = vmatmul.mubr.f32.gmra.mrb[0].mxu0 %v2688
        %v2756 = vpop.f32.mrb[0].mxu0
        %v2757 = vadd.f32 %v2684, %v2756
        %v2758 = vpop.f32.mrb[0].mxu0
        %2759 = vdwg.mxu0
        %v2760 = vadd.s32 %v885, 1
        %vm2761 = vcmp.eq.s32.totalorder %v888, %v2760
        %v2762 = vsel %vm2761, 1, 0
        %v2763 = vcvt.s32.f32 %v2762
        %v2765 = vsel %vm2451, %v2763, 0
        %2767 = vmatprep.subr.mxu0 0.0
        %2768 = vmatpush1.msra.mxu0 %v2456
        %2769 = vmatprep.subr.mxu0 0.0
        %2770 = vmatpush1.msra.mxu0 0.0
        %2771 = vmatprep.subr.mxu0 0.0
        %2772 = vmatpush1.msra.mxu0 0.0
        %2773 = vmatprep.subr.mxu0 0.0
        %2774 = vmatpush1.msra.mxu0 0.0
        %2775 = vmatprep.subr.mxu0 0.0
        %2776 = vmatpush1.msra.mxu0 0.0
        %2777 = vmatprep.subr.mxu0 0.0
        %2778 = vmatpush1.msra.mxu0 0.0
        %2779 = vmatprep.subr.mxu0 0.0
        %2780 = vmatpush1.msra.mxu0 0.0
        %2781 = vmatprep.subr.mxu0 0.0
        %2782 = vmatpush1.msra.mxu0 0.0
        %2783 = vmatprep.subr.mxu0 0.0
        %2784 = vmatpush1.msra.mxu0 0.0
        %2785 = vmatprep.subr.mxu0 0.0
        %2786 = vmatpush1.msra.mxu0 0.0
        %2787 = vmatprep.subr.mxu0 0.0
        %2788 = vmatpush1.msra.mxu0 0.0
        %2789 = vmatprep.subr.mxu0 0.0
        %2790 = vmatpush1.msra.mxu0 0.0
        %2791 = vmatprep.subr.mxu0 0.0
        %2792 = vmatpush1.msra.mxu0 0.0
        %2793 = vmatprep.subr.mxu0 0.0
        %2794 = vmatpush1.msra.mxu0 0.0
        %2795 = vmatprep.subr.mxu0 0.0
        %2796 = vmatpush1.msra.mxu0 0.0
        %2797 = vmatprep.subr.mxu0 0.0
        %2798 = vmatpush1.msra.mxu0 0.0
        %2799 = vmatprep.subr.mxu0 0.0
        %2800 = vmatpush1.msra.mxu0 0.0
        %2801 = vmatprep.subr.mxu0 0.0
        %2802 = vmatpush1.msra.mxu0 0.0
        %2803 = vmatprep.subr.mxu0 0.0
        %2804 = vmatpush1.msra.mxu0 0.0
        %2805 = vmatprep.subr.mxu0 0.0
        %2806 = vmatpush1.msra.mxu0 0.0
        %2807 = vmatprep.subr.mxu0 0.0
        %2808 = vmatpush1.msra.mxu0 0.0
        %2809 = vmatprep.subr.mxu0 0.0
        %2810 = vmatpush1.msra.mxu0 0.0
        %2811 = vmatprep.subr.mxu0 0.0
        %2812 = vmatpush1.msra.mxu0 0.0
        %2813 = vmatprep.subr.mxu0 0.0
        %2814 = vmatpush1.msra.mxu0 0.0
        %2815 = vmatprep.subr.mxu0 0.0
        %2816 = vmatpush1.msra.mxu0 0.0
        %2817 = vmatprep.subr.mxu0 0.0
        %2818 = vmatpush1.msra.mxu0 0.0
        %2819 = vmatprep.subr.mxu0 0.0
        %2820 = vmatpush1.msra.mxu0 0.0
        %2821 = vmatprep.subr.mxu0 0.0
        %2822 = vmatpush1.msra.mxu0 0.0
        %2823 = vmatprep.subr.mxu0 0.0
        %2824 = vmatpush1.msra.mxu0 0.0
        %2825 = vmatprep.subr.mxu0 0.0
        %2826 = vmatpush1.msra.mxu0 0.0
        %2827 = vmatprep.subr.mxu0 0.0
        %2828 = vmatpush1.msra.mxu0 0.0
        %2829 = vmatprep.subr.mxu0 0.0
        %2830 = vmatpush1.msra.mxu0 0.0
        %2831 = vmatprep.mubr.f32.mxu0 0.0
        %2832 = vmatmul.mubr.f32.gmra.mrb[0].mxu0 %v2765
        %v2833 = vpop.f32.mrb[0].mxu0
        %v2834 = vadd.f32 0.0, %v2833
        %v2835 = vpop.f32.mrb[0].mxu0
        %2836 = vdwg.mxu0
        %s2837 = scalar_lea.vmem %s7, 64
        %v2838 = vld [vmem:[%s2837] sm:$0xff]
        %v2839 = vld [vmem:[%s2837 + $0x8] sm:$0xff]
        %v2840 = vld [vmem:[%s2837 + $0x10] sm:$0xff]
        %v2841 = vld [vmem:[%s2837 + $0x18] sm:$0xff]
        %v2843 = vsel %vm2613, %v2834, 0
        %2845 = vmatprep.subr.mxu0 0.0
        %2846 = vmatpush1.msra.mxu0 %v2838
        %2847 = vmatprep.subr.mxu0 0.0
        %2848 = vmatpush1.msra.mxu0 %v2839
        %2849 = vmatprep.subr.mxu0 0.0
        %2850 = vmatpush1.msra.mxu0 %v2840
        %2851 = vmatprep.subr.mxu0 0.0
        %2852 = vmatpush1.msra.mxu0 %v2841
        %2853 = vmatprep.subr.mxu0 0.0
        %2854 = vmatpush1.msra.mxu0 0.0
        %2855 = vmatprep.subr.mxu0 0.0
        %2856 = vmatpush1.msra.mxu0 0.0
        %2857 = vmatprep.subr.mxu0 0.0
        %2858 = vmatpush1.msra.mxu0 0.0
        %2859 = vmatprep.subr.mxu0 0.0
        %2860 = vmatpush1.msra.mxu0 0.0
        %2861 = vmatprep.subr.mxu0 0.0
        %2862 = vmatpush1.msra.mxu0 0.0
        %2863 = vmatprep.subr.mxu0 0.0
        %2864 = vmatpush1.msra.mxu0 0.0
        %2865 = vmatprep.subr.mxu0 0.0
        %2866 = vmatpush1.msra.mxu0 0.0
        %2867 = vmatprep.subr.mxu0 0.0
        %2868 = vmatpush1.msra.mxu0 0.0
        %2869 = vmatprep.subr.mxu0 0.0
        %2870 = vmatpush1.msra.mxu0 0.0
        %2871 = vmatprep.subr.mxu0 0.0
        %2872 = vmatpush1.msra.mxu0 0.0
        %2873 = vmatprep.subr.mxu0 0.0
        %2874 = vmatpush1.msra.mxu0 0.0
        %2875 = vmatprep.subr.mxu0 0.0
        %2876 = vmatpush1.msra.mxu0 0.0
        %2877 = vmatprep.subr.mxu0 0.0
        %2878 = vmatpush1.msra.mxu0 0.0
        %2879 = vmatprep.subr.mxu0 0.0
        %2880 = vmatpush1.msra.mxu0 0.0
        %2881 = vmatprep.subr.mxu0 0.0
        %2882 = vmatpush1.msra.mxu0 0.0
        %2883 = vmatprep.subr.mxu0 0.0
        %2884 = vmatpush1.msra.mxu0 0.0
        %2885 = vmatprep.subr.mxu0 0.0
        %2886 = vmatpush1.msra.mxu0 0.0
        %2887 = vmatprep.subr.mxu0 0.0
        %2888 = vmatpush1.msra.mxu0 0.0
        %2889 = vmatprep.subr.mxu0 0.0
        %2890 = vmatpush1.msra.mxu0 0.0
        %2891 = vmatprep.subr.mxu0 0.0
        %2892 = vmatpush1.msra.mxu0 0.0
        %2893 = vmatprep.subr.mxu0 0.0
        %2894 = vmatpush1.msra.mxu0 0.0
        %2895 = vmatprep.subr.mxu0 0.0
        %2896 = vmatpush1.msra.mxu0 0.0
        %2897 = vmatprep.subr.mxu0 0.0
        %2898 = vmatpush1.msra.mxu0 0.0
        %2899 = vmatprep.subr.mxu0 0.0
        %2900 = vmatpush1.msra.mxu0 0.0
        %2901 = vmatprep.subr.mxu0 0.0
        %2902 = vmatpush1.msra.mxu0 0.0
        %2903 = vmatprep.subr.mxu0 0.0
        %2904 = vmatpush1.msra.mxu0 0.0
        %2905 = vmatprep.subr.mxu0 0.0
        %2906 = vmatpush1.msra.mxu0 0.0
        %2907 = vmatprep.subr.mxu0 0.0
        %2908 = vmatpush1.msra.mxu0 0.0
        %2909 = vmatprep.mubr.f32.mxu0 0.0
        %2910 = vmatmul.mubr.f32.gmra.mrb[0].mxu0 %v2843
        %v2911 = vpop.f32.mrb[0].mxu0
        %v2912 = vadd.f32 0.0, %v2911
        %v2913 = vpop.f32.mrb[0].mxu0
        %2914 = vdwg.mxu0
        %v2915 = vadd.f32 %v2757, %v2912
        %v2916 = vld [vmem:[%s8] sm:$0x1]
        %v2918 = vlaneseq
        %v2919 = vshrl.u32 %v2918, 7
        %v2920 = vsub.s32 0, %v2919
        %v2921 = vrot.slane %v2916, %v2920
        %v2923 = vadd.f32 %v2915, %v2921
        %v2924 = vmax.f32 %v2923, 0.0
        %vm2925 = vcmp.eq.s32.totalorder %v885, 0
        %vm2926 = vcmp.ge.s32.totalorder %v888, 0
        %vm2927 = vmand %vm2925, %vm2926
        %vm2928 = vcmp.lt.s32.totalorder %v888, 1
        %vm2929 = vmand %vm2927, %vm2928
        %v2930 = vsel %vm2929, 1.0, 0.0
        %v2931 = vadd.f32 %v2930, 0.0
        %vm2932 = vcmp.eq.s32.totalorder %v885, 1
        %vm2933 = vcmp.ge.s32.totalorder %v888, 1
        %vm2934 = vmand %vm2932, %vm2933
        %vm2935 = vcmp.lt.s32.totalorder %v888, 2
        %vm2936 = vmand %vm2934, %vm2935
        %v2937 = vsel %vm2936, 1.0, 0.0
        %v2938 = vadd.f32 %v2931, %v2937
        %vm2939 = vcmp.eq.s32.totalorder %v885, 2
        %vm2940 = vcmp.ge.s32.totalorder %v888, 2
        %vm2941 = vmand %vm2939, %vm2940
        %vm2942 = vcmp.lt.s32.totalorder %v888, 3
        %vm2943 = vmand %vm2941, %vm2942
        %v2944 = vsel %vm2943, 1.0, 0.0
        %v2945 = vadd.f32 %v2938, %v2944
        %vm2946 = vcmp.eq.s32.totalorder %v885, 3
        %vm2947 = vcmp.ge.s32.totalorder %v888, 3
        %vm2948 = vmand %vm2946, %vm2947
        %vm2949 = vcmp.lt.s32.totalorder %v888, 4
        %vm2950 = vmand %vm2948, %vm2949
        %v2951 = vsel %vm2950, 1.0, 0.0
        %v2952 = vadd.f32 %v2945, %v2951
        %v2954 = vsel %vm2451, %v2952, 0
        %v2957 = vsel %vm904, %v2924, 0
        %2959 = vmatprep.subr.mxu0 0.0
        %2960 = vmatpush1.msra.mxu0 %v2957
        %2961 = vmatprep.subr.mxu0 0.0
        %2962 = vmatpush1.msra.mxu0 0.0
        %2963 = vmatprep.subr.mxu0 0.0
        %2964 = vmatpush1.msra.mxu0 0.0
        %2965 = vmatprep.subr.mxu0 0.0
        %2966 = vmatpush1.msra.mxu0 0.0
        %2967 = vmatprep.subr.mxu0 0.0
        %2968 = vmatpush1.msra.mxu0 0.0
        %2969 = vmatprep.subr.mxu0 0.0
        %2970 = vmatpush1.msra.mxu0 0.0
        %2971 = vmatprep.subr.mxu0 0.0
        %2972 = vmatpush1.msra.mxu0 0.0
        %2973 = vmatprep.subr.mxu0 0.0
        %2974 = vmatpush1.msra.mxu0 0.0
        %2975 = vmatprep.subr.mxu0 0.0
        %2976 = vmatpush1.msra.mxu0 0.0
        %2977 = vmatprep.subr.mxu0 0.0
        %2978 = vmatpush1.msra.mxu0 0.0
        %2979 = vmatprep.subr.mxu0 0.0
        %2980 = vmatpush1.msra.mxu0 0.0
        %2981 = vmatprep.subr.mxu0 0.0
        %2982 = vmatpush1.msra.mxu0 0.0
        %2983 = vmatprep.subr.mxu0 0.0
        %2984 = vmatpush1.msra.mxu0 0.0
        %2985 = vmatprep.subr.mxu0 0.0
        %2986 = vmatpush1.msra.mxu0 0.0
        %2987 = vmatprep.subr.mxu0 0.0
        %2988 = vmatpush1.msra.mxu0 0.0
        %2989 = vmatprep.subr.mxu0 0.0
        %2990 = vmatpush1.msra.mxu0 0.0
        %2991 = vmatprep.subr.mxu0 0.0
        %2992 = vmatpush1.msra.mxu0 0.0
        %2993 = vmatprep.subr.mxu0 0.0
        %2994 = vmatpush1.msra.mxu0 0.0
        %2995 = vmatprep.subr.mxu0 0.0
        %2996 = vmatpush1.msra.mxu0 0.0
        %2997 = vmatprep.subr.mxu0 0.0
        %2998 = vmatpush1.msra.mxu0 0.0
        %2999 = vmatprep.subr.mxu0 0.0
        %3000 = vmatpush1.msra.mxu0 0.0
        %3001 = vmatprep.subr.mxu0 0.0
        %3002 = vmatpush1.msra.mxu0 0.0
        %3003 = vmatprep.subr.mxu0 0.0
        %3004 = vmatpush1.msra.mxu0 0.0
        %3005 = vmatprep.subr.mxu0 0.0
        %3006 = vmatpush1.msra.mxu0 0.0
        %3007 = vmatprep.subr.mxu0 0.0
        %3008 = vmatpush1.msra.mxu0 0.0
        %3009 = vmatprep.subr.mxu0 0.0
        %3010 = vmatpush1.msra.mxu0 0.0
        %3011 = vmatprep.subr.mxu0 0.0
        %3012 = vmatpush1.msra.mxu0 0.0
        %3013 = vmatprep.subr.mxu0 0.0
        %3014 = vmatpush1.msra.mxu0 0.0
        %3015 = vmatprep.subr.mxu0 0.0
        %3016 = vmatpush1.msra.mxu0 0.0
        %3017 = vmatprep.subr.mxu0 0.0
        %3018 = vmatpush1.msra.mxu0 0.0
        %3019 = vmatprep.subr.mxu0 0.0
        %3020 = vmatpush1.msra.mxu0 0.0
        %3021 = vmatprep.subr.mxu0 0.0
        %3022 = vmatpush1.msra.mxu0 0.0
        %3023 = vmatprep.mubr.f32.mxu0 0.0
        %3024 = vmatmul.mubr.f32.gmra.mrb[0].mxu0 %v2954
        %v3025 = vpop.f32.mrb[0].mxu0
        %v3026 = vadd.f32 0.0, %v3025
        %v3027 = vpop.f32.mrb[0].mxu0
        %3028 = vdwg.mxu0
        %v3029 = vld [vmem:[%s9] sm:$0xff]
        %v3030 = vld [vmem:[%s9 + $0x8] sm:$0xff]
        %v3031 = vld [vmem:[%s9 + $0x10] sm:$0xff]
        %v3032 = vld [vmem:[%s9 + $0x18] sm:$0xff]
        %s3033 = scalar_lea.vmem %s9, 32
        %v3034 = vld [vmem:[%s3033] sm:$0xff]
        %v3035 = vld [vmem:[%s3033 + $0x8] sm:$0xff]
        %v3036 = vld [vmem:[%s3033 + $0x10] sm:$0xff]
        %v3037 = vld [vmem:[%s3033 + $0x18] sm:$0xff]
        %v3039 = vrot.slane %v3026, 1
        %v3040 = vsel %vm2613, %v3039, 0
        %3042 = vmatprep.subr.mxu0 0.0
        %3043 = vmatpush1.msra.mxu0 %v3034
        %3044 = vmatprep.subr.mxu0 0.0
        %3045 = vmatpush1.msra.mxu0 %v3035
        %3046 = vmatprep.subr.mxu0 0.0
        %3047 = vmatpush1.msra.mxu0 %v3036
        %3048 = vmatprep.subr.mxu0 0.0
        %3049 = vmatpush1.msra.mxu0 %v3037
        %3050 = vmatprep.subr.mxu0 0.0
        %3051 = vmatpush1.msra.mxu0 0.0
        %3052 = vmatprep.subr.mxu0 0.0
        %3053 = vmatpush1.msra.mxu0 0.0
        %3054 = vmatprep.subr.mxu0 0.0
        %3055 = vmatpush1.msra.mxu0 0.0
        %3056 = vmatprep.subr.mxu0 0.0
        %3057 = vmatpush1.msra.mxu0 0.0
        %3058 = vmatprep.subr.mxu0 0.0
        %3059 = vmatpush1.msra.mxu0 0.0
        %3060 = vmatprep.subr.mxu0 0.0
        %3061 = vmatpush1.msra.mxu0 0.0
        %3062 = vmatprep.subr.mxu0 0.0
        %3063 = vmatpush1.msra.mxu0 0.0
        %3064 = vmatprep.subr.mxu0 0.0
        %3065 = vmatpush1.msra.mxu0 0.0
        %3066 = vmatprep.subr.mxu0 0.0
        %3067 = vmatpush1.msra.mxu0 0.0
        %3068 = vmatprep.subr.mxu0 0.0
        %3069 = vmatpush1.msra.mxu0 0.0
        %3070 = vmatprep.subr.mxu0 0.0
        %3071 = vmatpush1.msra.mxu0 0.0
        %3072 = vmatprep.subr.mxu0 0.0
        %3073 = vmatpush1.msra.mxu0 0.0
        %3074 = vmatprep.subr.mxu0 0.0
        %3075 = vmatpush1.msra.mxu0 0.0
        %3076 = vmatprep.subr.mxu0 0.0
        %3077 = vmatpush1.msra.mxu0 0.0
        %3078 = vmatprep.subr.mxu0 0.0
        %3079 = vmatpush1.msra.mxu0 0.0
        %3080 = vmatprep.subr.mxu0 0.0
        %3081 = vmatpush1.msra.mxu0 0.0
        %3082 = vmatprep.subr.mxu0 0.0
        %3083 = vmatpush1.msra.mxu0 0.0
        %3084 = vmatprep.subr.mxu0 0.0
        %3085 = vmatpush1.msra.mxu0 0.0
        %3086 = vmatprep.subr.mxu0 0.0
        %3087 = vmatpush1.msra.mxu0 0.0
        %3088 = vmatprep.subr.mxu0 0.0
        %3089 = vmatpush1.msra.mxu0 0.0
        %3090 = vmatprep.subr.mxu0 0.0
        %3091 = vmatpush1.msra.mxu0 0.0
        %3092 = vmatprep.subr.mxu0 0.0
        %3093 = vmatpush1.msra.mxu0 0.0
        %3094 = vmatprep.subr.mxu0 0.0
        %3095 = vmatpush1.msra.mxu0 0.0
        %3096 = vmatprep.subr.mxu0 0.0
        %3097 = vmatpush1.msra.mxu0 0.0
        %3098 = vmatprep.subr.mxu0 0.0
        %3099 = vmatpush1.msra.mxu0 0.0
        %3100 = vmatprep.subr.mxu0 0.0
        %3101 = vmatpush1.msra.mxu0 0.0
        %3102 = vmatprep.subr.mxu0 0.0
        %3103 = vmatpush1.msra.mxu0 0.0
        %3104 = vmatprep.subr.mxu0 0.0
        %3105 = vmatpush1.msra.mxu0 0.0
        %3106 = vmatprep.mubr.f32.mxu0 0.0
        %3107 = vmatmul.mubr.f32.gmra.mrb[0].mxu0 %v3040
        %v3108 = vpop.f32.mrb[0].mxu0
        %v3109 = vadd.f32 0.0, %v3108
        %v3110 = vpop.f32.mrb[0].mxu0
        %3111 = vdwg.mxu0
        %v3112 = vsel %vm2613, %v3026, 0
        %3114 = vmatprep.subr.mxu0 0.0
        %3115 = vmatpush1.msra.mxu0 %v3029
        %3116 = vmatprep.subr.mxu0 0.0
        %3117 = vmatpush1.msra.mxu0 %v3030
        %3118 = vmatprep.subr.mxu0 0.0
        %3119 = vmatpush1.msra.mxu0 %v3031
        %3120 = vmatprep.subr.mxu0 0.0
        %3121 = vmatpush1.msra.mxu0 %v3032
        %3122 = vmatprep.subr.mxu0 0.0
        %3123 = vmatpush1.msra.mxu0 0.0
        %3124 = vmatprep.subr.mxu0 0.0
        %3125 = vmatpush1.msra.mxu0 0.0
        %3126 = vmatprep.subr.mxu0 0.0
        %3127 = vmatpush1.msra.mxu0 0.0
        %3128 = vmatprep.subr.mxu0 0.0
        %3129 = vmatpush1.msra.mxu0 0.0
        %3130 = vmatprep.subr.mxu0 0.0
        %3131 = vmatpush1.msra.mxu0 0.0
        %3132 = vmatprep.subr.mxu0 0.0
        %3133 = vmatpush1.msra.mxu0 0.0
        %3134 = vmatprep.subr.mxu0 0.0
        %3135 = vmatpush1.msra.mxu0 0.0
        %3136 = vmatprep.subr.mxu0 0.0
        %3137 = vmatpush1.msra.mxu0 0.0
        %3138 = vmatprep.subr.mxu0 0.0
        %3139 = vmatpush1.msra.mxu0 0.0
        %3140 = vmatprep.subr.mxu0 0.0
        %3141 = vmatpush1.msra.mxu0 0.0
        %3142 = vmatprep.subr.mxu0 0.0
        %3143 = vmatpush1.msra.mxu0 0.0
        %3144 = vmatprep.subr.mxu0 0.0
        %3145 = vmatpush1.msra.mxu0 0.0
        %3146 = vmatprep.subr.mxu0 0.0
        %3147 = vmatpush1.msra.mxu0 0.0
        %3148 = vmatprep.subr.mxu0 0.0
        %3149 = vmatpush1.msra.mxu0 0.0
        %3150 = vmatprep.subr.mxu0 0.0
        %3151 = vmatpush1.msra.mxu0 0.0
        %3152 = vmatprep.subr.mxu0 0.0
        %3153 = vmatpush1.msra.mxu0 0.0
        %3154 = vmatprep.subr.mxu0 0.0
        %3155 = vmatpush1.msra.mxu0 0.0
        %3156 = vmatprep.subr.mxu0 0.0
        %3157 = vmatpush1.msra.mxu0 0.0
        %3158 = vmatprep.subr.mxu0 0.0
        %3159 = vmatpush1.msra.mxu0 0.0
        %3160 = vmatprep.subr.mxu0 0.0
        %3161 = vmatpush1.msra.mxu0 0.0
        %3162 = vmatprep.subr.mxu0 0.0
        %3163 = vmatpush1.msra.mxu0 0.0
        %3164 = vmatprep.subr.mxu0 0.0
        %3165 = vmatpush1.msra.mxu0 0.0
        %3166 = vmatprep.subr.mxu0 0.0
        %3167 = vmatpush1.msra.mxu0 0.0
        %3168 = vmatprep.subr.mxu0 0.0
        %3169 = vmatpush1.msra.mxu0 0.0
        %3170 = vmatprep.subr.mxu0 0.0
        %3171 = vmatpush1.msra.mxu0 0.0
        %3172 = vmatprep.subr.mxu0 0.0
        %3173 = vmatpush1.msra.mxu0 0.0
        %3174 = vmatprep.subr.mxu0 0.0
        %3175 = vmatpush1.msra.mxu0 0.0
        %3176 = vmatprep.subr.mxu0 0.0
        %3177 = vmatpush1.msra.mxu0 0.0
        %3178 = vmatprep.mubr.f32.mxu0 0.0
        %3179 = vmatmul.mubr.f32.gmra.mrb[0].mxu0 %v3112
        %v3180 = vpop.f32.mrb[0].mxu0
        %v3181 = vadd.f32 %v3109, %v3180
        %v3182 = vpop.f32.mrb[0].mxu0
        %3183 = vdwg.mxu0
        %s3184 = scalar_lea.vmem %s9, 64
        %v3185 = vld [vmem:[%s3184] sm:$0xff]
        %v3186 = vld [vmem:[%s3184 + $0x8] sm:$0xff]
        %v3187 = vld [vmem:[%s3184 + $0x10] sm:$0xff]
        %v3188 = vld [vmem:[%s3184 + $0x18] sm:$0xff]
        %v3189 = vrot.slane %v3026, 2
        %v3190 = vsel %vm2613, %v3189, 0
        %3192 = vmatprep.subr.mxu0 0.0
        %3193 = vmatpush1.msra.mxu0 %v3185
        %3194 = vmatprep.subr.mxu0 0.0
        %3195 = vmatpush1.msra.mxu0 %v3186
        %3196 = vmatprep.subr.mxu0 0.0
        %3197 = vmatpush1.msra.mxu0 %v3187
        %3198 = vmatprep.subr.mxu0 0.0
        %3199 = vmatpush1.msra.mxu0 %v3188
        %3200 = vmatprep.subr.mxu0 0.0
        %3201 = vmatpush1.msra.mxu0 0.0
        %3202 = vmatprep.subr.mxu0 0.0
        %3203 = vmatpush1.msra.mxu0 0.0
        %3204 = vmatprep.subr.mxu0 0.0
        %3205 = vmatpush1.msra.mxu0 0.0
        %3206 = vmatprep.subr.mxu0 0.0
        %3207 = vmatpush1.msra.mxu0 0.0
        %3208 = vmatprep.subr.mxu0 0.0
        %3209 = vmatpush1.msra.mxu0 0.0
        %3210 = vmatprep.subr.mxu0 0.0
        %3211 = vmatpush1.msra.mxu0 0.0
        %3212 = vmatprep.subr.mxu0 0.0
        %3213 = vmatpush1.msra.mxu0 0.0
        %3214 = vmatprep.subr.mxu0 0.0
        %3215 = vmatpush1.msra.mxu0 0.0
        %3216 = vmatprep.subr.mxu0 0.0
        %3217 = vmatpush1.msra.mxu0 0.0
        %3218 = vmatprep.subr.mxu0 0.0
        %3219 = vmatpush1.msra.mxu0 0.0
        %3220 = vmatprep.subr.mxu0 0.0
        %3221 = vmatpush1.msra.mxu0 0.0
        %3222 = vmatprep.subr.mxu0 0.0
        %3223 = vmatpush1.msra.mxu0 0.0
        %3224 = vmatprep.subr.mxu0 0.0
        %3225 = vmatpush1.msra.mxu0 0.0
        %3226 = vmatprep.subr.mxu0 0.0
        %3227 = vmatpush1.msra.mxu0 0.0
        %3228 = vmatprep.subr.mxu0 0.0
        %3229 = vmatpush1.msra.mxu0 0.0
        %3230 = vmatprep.subr.mxu0 0.0
        %3231 = vmatpush1.msra.mxu0 0.0
        %3232 = vmatprep.subr.mxu0 0.0
        %3233 = vmatpush1.msra.mxu0 0.0
        %3234 = vmatprep.subr.mxu0 0.0
        %3235 = vmatpush1.msra.mxu0 0.0
        %3236 = vmatprep.subr.mxu0 0.0
        %3237 = vmatpush1.msra.mxu0 0.0
        %3238 = vmatprep.subr.mxu0 0.0
        %3239 = vmatpush1.msra.mxu0 0.0
        %3240 = vmatprep.subr.mxu0 0.0
        %3241 = vmatpush1.msra.mxu0 0.0
        %3242 = vmatprep.subr.mxu0 0.0
        %3243 = vmatpush1.msra.mxu0 0.0
        %3244 = vmatprep.subr.mxu0 0.0
        %3245 = vmatpush1.msra.mxu0 0.0
        %3246 = vmatprep.subr.mxu0 0.0
        %3247 = vmatpush1.msra.mxu0 0.0
        %3248 = vmatprep.subr.mxu0 0.0
        %3249 = vmatpush1.msra.mxu0 0.0
        %3250 = vmatprep.subr.mxu0 0.0
        %3251 = vmatpush1.msra.mxu0 0.0
        %3252 = vmatprep.subr.mxu0 0.0
        %3253 = vmatpush1.msra.mxu0 0.0
        %3254 = vmatprep.subr.mxu0 0.0
        %3255 = vmatpush1.msra.mxu0 0.0
        %3256 = vmatprep.mubr.f32.mxu0 0.0
        %3257 = vmatmul.mubr.f32.gmra.mrb[0].mxu0 %v3190
        %v3258 = vpop.f32.mrb[0].mxu0
        %v3259 = vadd.f32 0.0, %v3258
        %v3260 = vpop.f32.mrb[0].mxu0
        %3261 = vdwg.mxu0
        %v3262 = vadd.f32 %v3181, %v3259
        %s3263 = scalar_lea.vmem %s9, 96
        %v3264 = vld [vmem:[%s3263] sm:$0xff]
        %v3265 = vld [vmem:[%s3263 + $0x8] sm:$0xff]
        %v3266 = vld [vmem:[%s3263 + $0x10] sm:$0xff]
        %v3267 = vld [vmem:[%s3263 + $0x18] sm:$0xff]
        %v3268 = vrot.slane %v3026, 3
        %v3269 = vsel %vm2613, %v3268, 0
        %3271 = vmatprep.subr.mxu0 0.0
        %3272 = vmatpush1.msra.mxu0 %v3264
        %3273 = vmatprep.subr.mxu0 0.0
        %3274 = vmatpush1.msra.mxu0 %v3265
        %3275 = vmatprep.subr.mxu0 0.0
        %3276 = vmatpush1.msra.mxu0 %v3266
        %3277 = vmatprep.subr.mxu0 0.0
        %3278 = vmatpush1.msra.mxu0 %v3267
        %3279 = vmatprep.subr.mxu0 0.0
        %3280 = vmatpush1.msra.mxu0 0.0
        %3281 = vmatprep.subr.mxu0 0.0
        %3282 = vmatpush1.msra.mxu0 0.0
        %3283 = vmatprep.subr.mxu0 0.0
        %3284 = vmatpush1.msra.mxu0 0.0
        %3285 = vmatprep.subr.mxu0 0.0
        %3286 = vmatpush1.msra.mxu0 0.0
        %3287 = vmatprep.subr.mxu0 0.0
        %3288 = vmatpush1.msra.mxu0 0.0
        %3289 = vmatprep.subr.mxu0 0.0
        %3290 = vmatpush1.msra.mxu0 0.0
        %3291 = vmatprep.subr.mxu0 0.0
        %3292 = vmatpush1.msra.mxu0 0.0
        %3293 = vmatprep.subr.mxu0 0.0
        %3294 = vmatpush1.msra.mxu0 0.0
        %3295 = vmatprep.subr.mxu0 0.0
        %3296 = vmatpush1.msra.mxu0 0.0
        %3297 = vmatprep.subr.mxu0 0.0
        %3298 = vmatpush1.msra.mxu0 0.0
        %3299 = vmatprep.subr.mxu0 0.0
        %3300 = vmatpush1.msra.mxu0 0.0
        %3301 = vmatprep.subr.mxu0 0.0
        %3302 = vmatpush1.msra.mxu0 0.0
        %3303 = vmatprep.subr.mxu0 0.0
        %3304 = vmatpush1.msra.mxu0 0.0
        %3305 = vmatprep.subr.mxu0 0.0
        %3306 = vmatpush1.msra.mxu0 0.0
        %3307 = vmatprep.subr.mxu0 0.0
        %3308 = vmatpush1.msra.mxu0 0.0
        %3309 = vmatprep.subr.mxu0 0.0
        %3310 = vmatpush1.msra.mxu0 0.0
        %3311 = vmatprep.subr.mxu0 0.0
        %3312 = vmatpush1.msra.mxu0 0.0
        %3313 = vmatprep.subr.mxu0 0.0
        %3314 = vmatpush1.msra.mxu0 0.0
        %3315 = vmatprep.subr.mxu0 0.0
        %3316 = vmatpush1.msra.mxu0 0.0
        %3317 = vmatprep.subr.mxu0 0.0
        %3318 = vmatpush1.msra.mxu0 0.0
        %3319 = vmatprep.subr.mxu0 0.0
        %3320 = vmatpush1.msra.mxu0 0.0
        %3321 = vmatprep.subr.mxu0 0.0
        %3322 = vmatpush1.msra.mxu0 0.0
        %3323 = vmatprep.subr.mxu0 0.0
        %3324 = vmatpush1.msra.mxu0 0.0
        %3325 = vmatprep.subr.mxu0 0.0
        %3326 = vmatpush1.msra.mxu0 0.0
        %3327 = vmatprep.subr.mxu0 0.0
        %3328 = vmatpush1.msra.mxu0 0.0
        %3329 = vmatprep.subr.mxu0 0.0
        %3330 = vmatpush1.msra.mxu0 0.0
        %3331 = vmatprep.subr.mxu0 0.0
        %3332 = vmatpush1.msra.mxu0 0.0
        %3333 = vmatprep.subr.mxu0 0.0
        %3334 = vmatpush1.msra.mxu0 0.0
        %3335 = vmatprep.mubr.f32.mxu0 0.0
        %3336 = vmatmul.mubr.f32.gmra.mrb[0].mxu0 %v3269
        %v3337 = vpop.f32.mrb[0].mxu0
        %v3338 = vadd.f32 0.0, %v3337
        %v3339 = vpop.f32.mrb[0].mxu0
        %3340 = vdwg.mxu0
        %v3341 = vadd.f32 %v3262, %v3338
        %v3342 = vld [vmem:[%s10] sm:$0x1]
        %v3343 = vadd.f32 %v3341, %v3342
        %v3344 = vmax.f32 %v3343, 0.0
        %v3345 = vld [vmem:[%s11] sm:$0xff]
        %v3346 = vld [vmem:[%s11 + $0x8] sm:$0xff]
        %v3347 = vld [vmem:[%s11 + $0x10] sm:$0xff]
        %v3348 = vld [vmem:[%s11 + $0x18] sm:$0xff]
        %v3349 = vld [vmem:[%s12] sm:$0x1]
        %v3351 = vsel %vm2613, %v3344, 0
        %3353 = vmatprep.subr.mxu0 0.0
        %3354 = vmatpush1.msra.mxu0 %v3345
        %3355 = vmatprep.subr.mxu0 0.0
        %3356 = vmatpush1.msra.mxu0 %v3346
        %3357 = vmatprep.subr.mxu0 0.0
        %3358 = vmatpush1.msra.mxu0 %v3347
        %3359 = vmatprep.subr.mxu0 0.0
        %3360 = vmatpush1.msra.mxu0 %v3348
        %3361 = vmatprep.subr.mxu0 0.0
        %3362 = vmatpush1.msra.mxu0 0.0
        %3363 = vmatprep.subr.mxu0 0.0
        %3364 = vmatpush1.msra.mxu0 0.0
        %3365 = vmatprep.subr.mxu0 0.0
        %3366 = vmatpush1.msra.mxu0 0.0
        %3367 = vmatprep.subr.mxu0 0.0
        %3368 = vmatpush1.msra.mxu0 0.0
        %3369 = vmatprep.subr.mxu0 0.0
        %3370 = vmatpush1.msra.mxu0 0.0
        %3371 = vmatprep.subr.mxu0 0.0
        %3372 = vmatpush1.msra.mxu0 0.0
        %3373 = vmatprep.subr.mxu0 0.0
        %3374 = vmatpush1.msra.mxu0 0.0
        %3375 = vmatprep.subr.mxu0 0.0
        %3376 = vmatpush1.msra.mxu0 0.0
        %3377 = vmatprep.subr.mxu0 0.0
        %3378 = vmatpush1.msra.mxu0 0.0
        %3379 = vmatprep.subr.mxu0 0.0
        %3380 = vmatpush1.msra.mxu0 0.0
        %3381 = vmatprep.subr.mxu0 0.0
        %3382 = vmatpush1.msra.mxu0 0.0
        %3383 = vmatprep.subr.mxu0 0.0
        %3384 = vmatpush1.msra.mxu0 0.0
        %3385 = vmatprep.subr.mxu0 0.0
        %3386 = vmatpush1.msra.mxu0 0.0
        %3387 = vmatprep.subr.mxu0 0.0
        %3388 = vmatpush1.msra.mxu0 0.0
        %3389 = vmatprep.subr.mxu0 0.0
        %3390 = vmatpush1.msra.mxu0 0.0
        %3391 = vmatprep.subr.mxu0 0.0
        %3392 = vmatpush1.msra.mxu0 0.0
        %3393 = vmatprep.subr.mxu0 0.0
        %3394 = vmatpush1.msra.mxu0 0.0
        %3395 = vmatprep.subr.mxu0 0.0
        %3396 = vmatpush1.msra.mxu0 0.0
        %3397 = vmatprep.subr.mxu0 0.0
        %3398 = vmatpush1.msra.mxu0 0.0
        %3399 = vmatprep.subr.mxu0 0.0
        %3400 = vmatpush1.msra.mxu0 0.0
        %3401 = vmatprep.subr.mxu0 0.0
        %3402 = vmatpush1.msra.mxu0 0.0
        %3403 = vmatprep.subr.mxu0 0.0
        %3404 = vmatpush1.msra.mxu0 0.0
        %3405 = vmatprep.subr.mxu0 0.0
        %3406 = vmatpush1.msra.mxu0 0.0
        %3407 = vmatprep.subr.mxu0 0.0
        %3408 = vmatpush1.msra.mxu0 0.0
        %3409 = vmatprep.subr.mxu0 0.0
        %3410 = vmatpush1.msra.mxu0 0.0
        %3411 = vmatprep.subr.mxu0 0.0
        %3412 = vmatpush1.msra.mxu0 0.0
        %3413 = vmatprep.subr.mxu0 0.0
        %3414 = vmatpush1.msra.mxu0 0.0
        %3415 = vmatprep.subr.mxu0 0.0
        %3416 = vmatpush1.msra.mxu0 0.0
        %3417 = vmatprep.mubr.f32.mxu0 0.0
        %3418 = vmatmul.mubr.f32.gmra.mrb[0].mxu0 %v3351
        %v3419 = vpop.f32.mrb[0].mxu0
        %v3420 = vadd.f32 %v3349, %v3419
        %v3421 = vpop.f32.mrb[0].mxu0
        %3422 = vdwg.mxu0
        %v3423 = vmax.f32 %v3420, 0.0
        %v3424 = vld [vmem:[%s13] sm:$0xff]
        %v3425 = vld [vmem:[%s13 + $0x8] sm:$0xff]
        %v3426 = vld [vmem:[%s14] sm:$0x1]
        %v3428 = vsel %vm1993, %v3423, 0
        %3430 = vmatprep.subr.mxu0 0.0
        %3431 = vmatpush1.msra.mxu0 %v3424
        %3432 = vmatprep.subr.mxu0 0.0
        %3433 = vmatpush1.msra.mxu0 %v3425
        %3434 = vmatprep.subr.mxu0 0.0
        %3435 = vmatpush1.msra.mxu0 0.0
        %3436 = vmatprep.subr.mxu0 0.0
        %3437 = vmatpush1.msra.mxu0 0.0
        %3438 = vmatprep.subr.mxu0 0.0
        %3439 = vmatpush1.msra.mxu0 0.0
        %3440 = vmatprep.subr.mxu0 0.0
        %3441 = vmatpush1.msra.mxu0 0.0
        %3442 = vmatprep.subr.mxu0 0.0
        %3443 = vmatpush1.msra.mxu0 0.0
        %3444 = vmatprep.subr.mxu0 0.0
        %3445 = vmatpush1.msra.mxu0 0.0
        %3446 = vmatprep.subr.mxu0 0.0
        %3447 = vmatpush1.msra.mxu0 0.0
        %3448 = vmatprep.subr.mxu0 0.0
        %3449 = vmatpush1.msra.mxu0 0.0
        %3450 = vmatprep.subr.mxu0 0.0
        %3451 = vmatpush1.msra.mxu0 0.0
        %3452 = vmatprep.subr.mxu0 0.0
        %3453 = vmatpush1.msra.mxu0 0.0
        %3454 = vmatprep.subr.mxu0 0.0
        %3455 = vmatpush1.msra.mxu0 0.0
        %3456 = vmatprep.subr.mxu0 0.0
        %3457 = vmatpush1.msra.mxu0 0.0
        %3458 = vmatprep.subr.mxu0 0.0
        %3459 = vmatpush1.msra.mxu0 0.0
        %3460 = vmatprep.subr.mxu0 0.0
        %3461 = vmatpush1.msra.mxu0 0.0
        %3462 = vmatprep.subr.mxu0 0.0
        %3463 = vmatpush1.msra.mxu0 0.0
        %3464 = vmatprep.subr.mxu0 0.0
        %3465 = vmatpush1.msra.mxu0 0.0
        %3466 = vmatprep.subr.mxu0 0.0
        %3467 = vmatpush1.msra.mxu0 0.0
        %3468 = vmatprep.subr.mxu0 0.0
        %3469 = vmatpush1.msra.mxu0 0.0
        %3470 = vmatprep.subr.mxu0 0.0
        %3471 = vmatpush1.msra.mxu0 0.0
        %3472 = vmatprep.subr.mxu0 0.0
        %3473 = vmatpush1.msra.mxu0 0.0
        %3474 = vmatprep.subr.mxu0 0.0
        %3475 = vmatpush1.msra.mxu0 0.0
        %3476 = vmatprep.subr.mxu0 0.0
        %3477 = vmatpush1.msra.mxu0 0.0
        %3478 = vmatprep.subr.mxu0 0.0
        %3479 = vmatpush1.msra.mxu0 0.0
        %3480 = vmatprep.subr.mxu0 0.0
        %3481 = vmatpush1.msra.mxu0 0.0
        %3482 = vmatprep.subr.mxu0 0.0
        %3483 = vmatpush1.msra.mxu0 0.0
        %3484 = vmatprep.subr.mxu0 0.0
        %3485 = vmatpush1.msra.mxu0 0.0
        %3486 = vmatprep.subr.mxu0 0.0
        %3487 = vmatpush1.msra.mxu0 0.0
        %3488 = vmatprep.subr.mxu0 0.0
        %3489 = vmatpush1.msra.mxu0 0.0
        %3490 = vmatprep.subr.mxu0 0.0
        %3491 = vmatpush1.msra.mxu0 0.0
        %3492 = vmatprep.subr.mxu0 0.0
        %3493 = vmatpush1.msra.mxu0 0.0
        %3494 = vmatprep.mubr.f32.mxu0 0.0
        %3495 = vmatmul.mubr.f32.gmra.mrb[0].mxu0 %v3428
        %v3496 = vpop.f32.mrb[0].mxu0
        %v3497 = vadd.f32 %v3426, %v3496
        %v3498 = vpop.f32.mrb[0].mxu0
        %3499 = vdwg.mxu0
        %vm3500 = vcmask 16384
        %3501 = vst.msk [vmem:[%s486] sm:$0x1] %vm3500, %v3497
        %s3502 = sand.u32 %s357, 1
        %s3503 = scalar_lea.sflag [#allocation3], %s3502
        %s3504 = sand.u32 %s357, 1
        %s3505 = scalar_lea.vmem [#allocation2], %s3504
        // Predicated region
        $region81: #{cnn_16khz_seg_forward.1} parent=79 // pred_check
          %p3506 = pneg %p367
        $region82: #{cnn_16khz_seg_forward.1} parent=79 // pred_check_branch
          %3508 = sbr.rel (%p3506) target = $region84
        $region83: #{cnn_16khz_seg_forward.1} parent=79 // pred_region
          %s3510 = ssub.s32 16, 16
          %3511 = vsyncadd %s3503, %s3510
          %s3512 = smul.addr %s29, 16
          %s3513 = scalar_lea.hbm %s15, %s3512
          %s3515 = sshll.u32 %s3505, 4
          %s3516 = int_to_ptr.vmem [resolvable:$true] %s3515
          %3518 = dma.vmem_to_hbm [thread:$0]  %s3516, 16, %s3513, %s3503
        $region84: #{cnn_16khz_seg_forward.1} parent=79 // pred_fallthru
          _
      $region80: #{cnn_16khz_seg_forward.1} parent=5 // pred_fallthru
        _
      %p3519 = scmp.le.s32.totalorder 2, %s24
      // Predicated region
      $region85: #{cnn_16khz_seg_forward.1} parent=5 // pred_check
        %p3520 = pneg %p3519
      $region86: #{cnn_16khz_seg_forward.1} parent=5 // pred_check_branch
        %3522 = sbr.rel (%p3520) target = $region88
      $region87: #{cnn_16khz_seg_forward.1} parent=5 // pred_region
        %s3523 = ssub.s32 %s24, 2
        // Predicated region
        $region89: #{cnn_16khz_seg_forward.1} parent=87 // pred_check
          %p3524 = pneg %p373
        $region90: #{cnn_16khz_seg_forward.1} parent=87 // pred_check_branch
          %3526 = sbr.rel (%p3524) target = $region92
        $region91: #{cnn_16khz_seg_forward.1} parent=87 // pred_region
          %s3527 = sand.u32 %s358, 1
          %s3528 = scalar_lea.sflag [#allocation3], %s3527
          %s3529 = sand.u32 %s358, 1
          %s3530 = scalar_lea.vmem [#allocation2], %s3529
          %3531 = dma.done %s3528, 16
        $region92: #{cnn_16khz_seg_forward.1} parent=87 // pred_fallthru
          _
      $region88: #{cnn_16khz_seg_forward.1} parent=5 // pred_fallthru
        _
    $region6: #{cnn_16khz_seg_forward.1} parent=1 // loop_footer
      %s28 = sadd.s32 1, %s24
    $region7: #{cnn_16khz_seg_forward.1} parent=1 // loop_footer_branch
      %23 = sbr.rel target = $region3
    $region8: #{cnn_16khz_seg_forward.1} parent=1 // loop_exit
      _
    %3532 = vsyncpa [#allocation3], 1
    %s3533 = scalar_lea.sflag [#allocation3], 1
    %3534 = vsyncpa %s3533, 1

</llo_original>
